<compile_context>
chip_gen: v7x
topology: tpu7x:2x2x1
jax: 0.10.0
libtpu: 0.0.40
codegen_flags: <defaults>
</compile_context>

<pallas_src>
import jax
import jax.numpy as jnp
from jax.experimental import pallas as pl
from jax.experimental.pallas import tpu as pltpu

KH, KW = 3, 3
STRIDE = 2
CIN, COUT = 192, 320
K_TOTAL = KH * KW * CIN          # 1728 = total contraction size
TCO = 128                        # cout tile (lane-dense, one MXU N-block)
COUT_PAD = 384                   # 320 -> 3 * 128


def _round_up(v, m):
    return (v + m - 1) // m * m


def _make_conv_kernel(prows, ow_pad):
    """Kernel specialized to static patch-row count / padded phase width."""

    def kernel(xp_ref, w_ref, o_ref):
        # xp_ref: (1, 4, H2P * OW_PAD, CIN) f32   stride-2 phase-split input (one image)
        # w_ref:  (K_TOTAL, TCO)            bf16  one 128-wide cout block of the weight
        # o_ref:  (1, PROWS, TCO)           f32   output patch-rows for this cout block
        acc = jnp.zeros((prows, TCO), jnp.float32)
        for kh in range(KH):                      # static 9-tap unroll
            for kw in range(KW):
                t = kh * KW + kw
                p = (kh % 2) * 2 + (kw % 2)              # which stride-2 phase
                start = (kh // 2) * ow_pad + (kw // 2)   # flat row offset inside phase
                # Contiguous 2-D tap slice: row j corresponds to output position
                # (oh, ow) = (j // ow_pad, j % ow_pad); columns ow >= OW are padding
                # and get sliced off in the wrapper.
                tap = xp_ref[0, p, start:start + prows, :]      # (PROWS, CIN) f32
                wt = w_ref[t * CIN:(t + 1) * CIN, :]            # (CIN, TCO)   bf16
                acc = acc + jnp.dot(tap.astype(jnp.bfloat16), wt,
                                    preferred_element_type=jnp.float32)
        o_ref[0] = acc

    return kernel


def conv2d_3x3_s2(x_nchw, weight_oihw):
    """x: (N, 192, H, W) f32, weight: (320, 192, 3, 3) f32 -> (N, 320, OH, OW) f32."""
    N, C, H, W = x_nchw.shape
    assert C == CIN and weight_oihw.shape == (COUT, CIN, KH, KW)
    OH = (H - KH) // STRIDE + 1
    OW = (W - KW) // STRIDE + 1
    assert OH >= 1 and OW >= 1

    ow_pad = _round_up(OW + 1, 8)    # padded output width == phase width (>= OW+1)
    h2p = _round_up(OH + 2, 8)       # phase height: covers all taps + flat-slice overrun
    prows = OH * ow_pad              # padded patch rows per image (multiple of 8)

    # ---- glue: NCHW -> NHWC, stride-2 phase split (no 9x im2col inflation) ----
    x_nhwc = jnp.transpose(x_nchw, (0, 2, 3, 1)).astype(jnp.float32)  # (N, H, W, CIN)
    phases = []
    for hp in range(2):
        for wp in range(2):
            ph = x_nhwc[:, hp::2, wp::2, :]                   # (N, h2, w2, CIN)
            ph = jnp.pad(ph, ((0, 0),
                              (0, h2p - ph.shape[1]),
                              (0, ow_pad - ph.shape[2]),
                              (0, 0)))
            phases.append(ph)
    xp = jnp.stack(phases, axis=1)                            # (N, 4, h2p, ow_pad, CIN)
    xp = xp.reshape(N, 4, h2p * ow_pad, CIN)                  # flatten phase spatial dims

    # weight (Cout, Cin, 3, 3) -> (kh, kw, cin, cout) -> (1728, 320) -> pad -> bf16
    w = jnp.transpose(weight_oihw, (2, 3, 1, 0)).reshape(K_TOTAL, COUT)
    w = jnp.pad(w, ((0, 0), (0, COUT_PAD - COUT))).astype(jnp.bfloat16)

    kernel = _make_conv_kernel(prows, ow_pad)
    out_pad = pl.pallas_call(
        kernel,
        out_shape=jax.ShapeDtypeStruct((N, prows, COUT_PAD), jnp.float32),
        grid=(N, COUT_PAD // TCO),
        in_specs=[
            # whole (phase-split) image; constant across the cout axis -> fetched once/image
            pl.BlockSpec((1, 4, h2p * ow_pad, CIN), lambda n, j: (n, 0, 0, 0)),
            # one 128-wide cout block of the weight per step
            pl.BlockSpec((K_TOTAL, TCO), lambda n, j: (0, j)),
        ],
        out_specs=pl.BlockSpec((1, prows, TCO), lambda n, j: (n, 0, j)),
        compiler_params=pltpu.CompilerParams(
            dimension_semantics=("parallel", "parallel"),  # shardable across v7x's 2 TCs
        ),
    )(xp, w)

    # (N, prows, 384) -> (N, OH, ow_pad, 384) -> drop padded cols / couts -> NCHW
    out = out_pad.reshape(N, OH, ow_pad, COUT_PAD)[:, :, :OW, :COUT]
    return jnp.transpose(out, (0, 3, 1, 2))


if __name__ == "__main__":
    key = jax.random.PRNGKey(0)
    kx, kw_key = jax.random.split(key)

    # Input consistent with the module: (1, 192, 12, 12)
    x = jax.random.normal(kx, (1, CIN, 12, 12), dtype=jnp.float32)

    # Deterministic weight init (kaiming-uniform-like scale), shape (320, 192, 3, 3)
    fan_in = CIN * KH * KW
    bound = 1.0 / (fan_in ** 0.5)
    weight = jax.random.uniform(
        kw_key, (COUT, CIN, KH, KW), dtype=jnp.float32, minval=-bound, maxval=bound
    )

    conv = jax.jit(conv2d_3x3_s2)
    y = jax.block_until_ready(conv(x, weight))
    assert y.shape == (1, COUT, 5, 5), y.shape

    # Reference check (f32 XLA conv).  Kernel uses bf16 MXU inputs with f32
    # accumulation, so tolerances are sized for bf16 rounding over K=1728.
    y_ref = jax.lax.conv_general_dilated(
        x, weight, window_strides=(STRIDE, STRIDE), padding="VALID",
        dimension_numbers=("NCHW", "OIHW", "NCHW"),
    )
    max_err = float(jnp.max(jnp.abs(y - y_ref)))
    assert jnp.allclose(y, y_ref, atol=5e-2, rtol=5e-2), max_err

    print("KERNEL_OK")
</pallas_src>

<mosaic_0001>
module attributes {stable_mosaic.version = 11 : i64} {
  func.func @kernel(%arg0: i32, %arg1: i32, %arg2: memref<1x4x64x192xf32, #tpu.memory_space<vmem>>, %arg3: memref<1728x128xbf16, #tpu.memory_space<vmem>>, %arg4: memref<1x40x128xf32, #tpu.memory_space<vmem>>) attributes {dimension_semantics = [#tpu.dimension_semantics<parallel>, #tpu.dimension_semantics<parallel>], iteration_bounds = array<i64: 1, 3>, scalar_prefetch = 0 : i64, scratch_operands = 0 : i64, tpu.core_type = #tpu.core_type<tc>, window_params = [{transform_indices = @transform_0, window_bounds = array<i64: 1, 4, 64, 192>}, {transform_indices = @transform_1, window_bounds = array<i64: 1728, 128>}, {transform_indices = @transform_2, window_bounds = array<i64: 1, 40, 128>}]} {
    %cst = arith.constant 0.000000e+00 : f32
    %0 = vector.broadcast %cst : f32 to vector<40x128xf32>
    %c0 = arith.constant 0 : index
    %c0_0 = arith.constant 0 : index
    %c0_1 = arith.constant 0 : index
    %c0_2 = arith.constant 0 : index
    %1 = vector.load %arg2[%c0, %c0_0, %c0_1, %c0_2] : memref<1x4x64x192xf32, #tpu.memory_space<vmem>>, vector<1x1x40x192xf32>
    %2 = vector.shape_cast %1 : vector<1x1x40x192xf32> to vector<40x192xf32>
    %c0_3 = arith.constant 0 : index
    %c0_4 = arith.constant 0 : index
    %3 = vector.load %arg3[%c0_3, %c0_4] : memref<1728x128xbf16, #tpu.memory_space<vmem>>, vector<192x128xbf16>
    %4 = arith.truncf %2 : vector<40x192xf32> to vector<40x192xbf16>
    %cst_5 = arith.constant dense<0.000000e+00> : vector<40x128xf32>
    %5 = tpu.matmul %4, %3, %cst_5 {dimension_numbers = #tpu.dot_dimension_numbers<[1], [0], [0], [1], [0, 0, 1, 1], [], []>} : vector<40x192xbf16>, vector<192x128xbf16>, vector<40x128xf32> -> vector<40x128xf32>
    %6 = arith.addf %0, %5 : vector<40x128xf32>
    %c0_6 = arith.constant 0 : index
    %c1 = arith.constant 1 : index
    %c0_7 = arith.constant 0 : index
    %c0_8 = arith.constant 0 : index
    %7 = vector.load %arg2[%c0_6, %c1, %c0_7, %c0_8] : memref<1x4x64x192xf32, #tpu.memory_space<vmem>>, vector<1x1x40x192xf32>
    %8 = vector.shape_cast %7 : vector<1x1x40x192xf32> to vector<40x192xf32>
    %c192 = arith.constant 192 : index
    %c0_9 = arith.constant 0 : index
    %9 = vector.load %arg3[%c192, %c0_9] : memref<1728x128xbf16, #tpu.memory_space<vmem>>, vector<192x128xbf16>
    %10 = arith.truncf %8 : vector<40x192xf32> to vector<40x192xbf16>
    %cst_10 = arith.constant dense<0.000000e+00> : vector<40x128xf32>
    %11 = tpu.matmul %10, %9, %cst_10 {dimension_numbers = #tpu.dot_dimension_numbers<[1], [0], [0], [1], [0, 0, 1, 1], [], []>} : vector<40x192xbf16>, vector<192x128xbf16>, vector<40x128xf32> -> vector<40x128xf32>
    %12 = arith.addf %6, %11 : vector<40x128xf32>
    %c0_11 = arith.constant 0 : index
    %c0_12 = arith.constant 0 : index
    %c1_13 = arith.constant 1 : index
    %c0_14 = arith.constant 0 : index
    %13 = vector.load %arg2[%c0_11, %c0_12, %c1_13, %c0_14] : memref<1x4x64x192xf32, #tpu.memory_space<vmem>>, vector<1x1x40x192xf32>
    %14 = vector.shape_cast %13 : vector<1x1x40x192xf32> to vector<40x192xf32>
    %c384 = arith.constant 384 : index
    %c0_15 = arith.constant 0 : index
    %15 = vector.load %arg3[%c384, %c0_15] : memref<1728x128xbf16, #tpu.memory_space<vmem>>, vector<192x128xbf16>
    %16 = arith.truncf %14 : vector<40x192xf32> to vector<40x192xbf16>
    %cst_16 = arith.constant dense<0.000000e+00> : vector<40x128xf32>
    %17 = tpu.matmul %16, %15, %cst_16 {dimension_numbers = #tpu.dot_dimension_numbers<[1], [0], [0], [1], [0, 0, 1, 1], [], []>} : vector<40x192xbf16>, vector<192x128xbf16>, vector<40x128xf32> -> vector<40x128xf32>
    %18 = arith.addf %12, %17 : vector<40x128xf32>
    %c0_17 = arith.constant 0 : index
    %c2 = arith.constant 2 : index
    %c0_18 = arith.constant 0 : index
    %c0_19 = arith.constant 0 : index
    %19 = vector.load %arg2[%c0_17, %c2, %c0_18, %c0_19] : memref<1x4x64x192xf32, #tpu.memory_space<vmem>>, vector<1x1x40x192xf32>
    %20 = vector.shape_cast %19 : vector<1x1x40x192xf32> to vector<40x192xf32>
    %c576 = arith.constant 576 : index
    %c0_20 = arith.constant 0 : index
    %21 = vector.load %arg3[%c576, %c0_20] : memref<1728x128xbf16, #tpu.memory_space<vmem>>, vector<192x128xbf16>
    %22 = arith.truncf %20 : vector<40x192xf32> to vector<40x192xbf16>
    %cst_21 = arith.constant dense<0.000000e+00> : vector<40x128xf32>
    %23 = tpu.matmul %22, %21, %cst_21 {dimension_numbers = #tpu.dot_dimension_numbers<[1], [0], [0], [1], [0, 0, 1, 1], [], []>} : vector<40x192xbf16>, vector<192x128xbf16>, vector<40x128xf32> -> vector<40x128xf32>
    %24 = arith.addf %18, %23 : vector<40x128xf32>
    %c0_22 = arith.constant 0 : index
    %c3 = arith.constant 3 : index
    %c0_23 = arith.constant 0 : index
    %c0_24 = arith.constant 0 : index
    %25 = vector.load %arg2[%c0_22, %c3, %c0_23, %c0_24] : memref<1x4x64x192xf32, #tpu.memory_space<vmem>>, vector<1x1x40x192xf32>
    %26 = vector.shape_cast %25 : vector<1x1x40x192xf32> to vector<40x192xf32>
    %c768 = arith.constant 768 : index
    %c0_25 = arith.constant 0 : index
    %27 = vector.load %arg3[%c768, %c0_25] : memref<1728x128xbf16, #tpu.memory_space<vmem>>, vector<192x128xbf16>
    %28 = arith.truncf %26 : vector<40x192xf32> to vector<40x192xbf16>
    %cst_26 = arith.constant dense<0.000000e+00> : vector<40x128xf32>
    %29 = tpu.matmul %28, %27, %cst_26 {dimension_numbers = #tpu.dot_dimension_numbers<[1], [0], [0], [1], [0, 0, 1, 1], [], []>} : vector<40x192xbf16>, vector<192x128xbf16>, vector<40x128xf32> -> vector<40x128xf32>
    %30 = arith.addf %24, %29 : vector<40x128xf32>
    %c0_27 = arith.constant 0 : index
    %c2_28 = arith.constant 2 : index
    %c1_29 = arith.constant 1 : index
    %c0_30 = arith.constant 0 : index
    %31 = vector.load %arg2[%c0_27, %c2_28, %c1_29, %c0_30] : memref<1x4x64x192xf32, #tpu.memory_space<vmem>>, vector<1x1x40x192xf32>
    %32 = vector.shape_cast %31 : vector<1x1x40x192xf32> to vector<40x192xf32>
    %c960 = arith.constant 960 : index
    %c0_31 = arith.constant 0 : index
    %33 = vector.load %arg3[%c960, %c0_31] : memref<1728x128xbf16, #tpu.memory_space<vmem>>, vector<192x128xbf16>
    %34 = arith.truncf %32 : vector<40x192xf32> to vector<40x192xbf16>
    %cst_32 = arith.constant dense<0.000000e+00> : vector<40x128xf32>
    %35 = tpu.matmul %34, %33, %cst_32 {dimension_numbers = #tpu.dot_dimension_numbers<[1], [0], [0], [1], [0, 0, 1, 1], [], []>} : vector<40x192xbf16>, vector<192x128xbf16>, vector<40x128xf32> -> vector<40x128xf32>
    %36 = arith.addf %30, %35 : vector<40x128xf32>
    %c0_33 = arith.constant 0 : index
    %c0_34 = arith.constant 0 : index
    %c8 = arith.constant 8 : index
    %c0_35 = arith.constant 0 : index
    %37 = vector.load %arg2[%c0_33, %c0_34, %c8, %c0_35] : memref<1x4x64x192xf32, #tpu.memory_space<vmem>>, vector<1x1x40x192xf32>
    %38 = vector.shape_cast %37 : vector<1x1x40x192xf32> to vector<40x192xf32>
    %c1152 = arith.constant 1152 : index
    %c0_36 = arith.constant 0 : index
    %39 = vector.load %arg3[%c1152, %c0_36] : memref<1728x128xbf16, #tpu.memory_space<vmem>>, vector<192x128xbf16>
    %40 = arith.truncf %38 : vector<40x192xf32> to vector<40x192xbf16>
    %cst_37 = arith.constant dense<0.000000e+00> : vector<40x128xf32>
    %41 = tpu.matmul %40, %39, %cst_37 {dimension_numbers = #tpu.dot_dimension_numbers<[1], [0], [0], [1], [0, 0, 1, 1], [], []>} : vector<40x192xbf16>, vector<192x128xbf16>, vector<40x128xf32> -> vector<40x128xf32>
    %42 = arith.addf %36, %41 : vector<40x128xf32>
    %c0_38 = arith.constant 0 : index
    %c1_39 = arith.constant 1 : index
    %c8_40 = arith.constant 8 : index
    %c0_41 = arith.constant 0 : index
    %43 = vector.load %arg2[%c0_38, %c1_39, %c8_40, %c0_41] : memref<1x4x64x192xf32, #tpu.memory_space<vmem>>, vector<1x1x40x192xf32>
    %44 = vector.shape_cast %43 : vector<1x1x40x192xf32> to vector<40x192xf32>
    %c1344 = arith.constant 1344 : index
    %c0_42 = arith.constant 0 : index
    %45 = vector.load %arg3[%c1344, %c0_42] : memref<1728x128xbf16, #tpu.memory_space<vmem>>, vector<192x128xbf16>
    %46 = arith.truncf %44 : vector<40x192xf32> to vector<40x192xbf16>
    %cst_43 = arith.constant dense<0.000000e+00> : vector<40x128xf32>
    %47 = tpu.matmul %46, %45, %cst_43 {dimension_numbers = #tpu.dot_dimension_numbers<[1], [0], [0], [1], [0, 0, 1, 1], [], []>} : vector<40x192xbf16>, vector<192x128xbf16>, vector<40x128xf32> -> vector<40x128xf32>
    %48 = arith.addf %42, %47 : vector<40x128xf32>
    %c0_44 = arith.constant 0 : index
    %c0_45 = arith.constant 0 : index
    %c9 = arith.constant 9 : index
    %c0_46 = arith.constant 0 : index
    %49 = vector.load %arg2[%c0_44, %c0_45, %c9, %c0_46] : memref<1x4x64x192xf32, #tpu.memory_space<vmem>>, vector<1x1x40x192xf32>
    %50 = vector.shape_cast %49 : vector<1x1x40x192xf32> to vector<40x192xf32>
    %c1536 = arith.constant 1536 : index
    %c0_47 = arith.constant 0 : index
    %51 = vector.load %arg3[%c1536, %c0_47] : memref<1728x128xbf16, #tpu.memory_space<vmem>>, vector<192x128xbf16>
    %52 = arith.truncf %50 : vector<40x192xf32> to vector<40x192xbf16>
    %cst_48 = arith.constant dense<0.000000e+00> : vector<40x128xf32>
    %53 = tpu.matmul %52, %51, %cst_48 {dimension_numbers = #tpu.dot_dimension_numbers<[1], [0], [0], [1], [0, 0, 1, 1], [], []>} : vector<40x192xbf16>, vector<192x128xbf16>, vector<40x128xf32> -> vector<40x128xf32>
    %54 = arith.addf %48, %53 : vector<40x128xf32>
    %c0_49 = arith.constant 0 : index
    %c0_50 = arith.constant 0 : index
    %c0_51 = arith.constant 0 : index
    %55 = vector.load %arg4[%c0_49, %c0_50, %c0_51] : memref<1x40x128xf32, #tpu.memory_space<vmem>>, vector<1x40x128xf32>
    %56 = vector.shape_cast %55 : vector<1x40x128xf32> to vector<40x128xf32>
    %57 = vector.shape_cast %54 : vector<40x128xf32> to vector<1x40x128xf32>
    tpu.vector_store %arg4[%c0_49, %c0_50, %c0_51], %57 {strides = array<i32>} : memref<1x40x128xf32, #tpu.memory_space<vmem>>, vector<1x40x128xf32>,
    return
  }
  func.func @transform_0(%arg0: i32, %arg1: i32) -> (i32, i32, i32, i32) {
    %c0_i32 = arith.constant 0 : i32
    %c0_i32_0 = arith.constant 0 : i32
    %c0_i32_1 = arith.constant 0 : i32
    %c0_i32_2 = arith.constant 0 : i32
    return %arg0, %c0_i32, %c0_i32_0, %c0_i32_1 : i32, i32, i32, i32
  }
  func.func @transform_1(%arg0: i32, %arg1: i32) -> (i32, i32) {
    %c0_i32 = arith.constant 0 : i32
    %c0_i32_0 = arith.constant 0 : i32
    return %c0_i32, %arg1 : i32, i32
  }
  func.func @transform_2(%arg0: i32, %arg1: i32) -> (i32, i32, i32) {
    %c0_i32 = arith.constant 0 : i32
    %c0_i32_0 = arith.constant 0 : i32
    return %arg0, %c0_i32, %arg1 : i32, i32, i32
  }
}

</mosaic_0001>

<llo_original>
// kernel: conv2d_3x3_s2.1
$region0: #{conv2d_3x3_s2.1}
  #allocation0 [shape = 'u32[]', space=smem, size = 0x4, offset = 0x4, fixed_abs, tag = 'smem constant byte address 0x4 - core index']
  #allocation1 [shape = 'u32[144,128]{1,0:T(1,128)}', space=vmem, size = 0x12000, scoped, tag = 'internal scratch']
  %s0 = inlined_call_operand.vmem [shape: f32[1,4,64,192], index: 0, kind: input, shape index: {}]
  %s1 = inlined_call_operand.vmem [shape: bf16[1728,384], index: 1, kind: input, shape index: {}]
  %s2 = inlined_call_operand.vmem [shape: f32[1,40,384], index: 2, kind: output, shape index: {}]
  %s3 = sld [smem:[#allocation0]]
  $region116: #{conv2d_3x3_s2.1} parent=0
    _
  %s5 = ssub.s32 1, %s3
  %s6 = scalar_select 0, %s5, %s3
  $region1: #{conv2d_3x3_s2.1} parent=0
    #allocation2 [shape = 'u8[884736]{0}', space=vmem, size = 0xd8000, scoped, tag = 'input window, operand 1']
    #allocation3 [shape = 'u8[40960]{0}', space=vmem, size = 0xa000, scoped, tag = 'output window, operand 0']
    loop: start=0, step=1, limit=5
    $region2: #{conv2d_3x3_s2.1} parent=1 // loop_pre_header
      _
    $region3: #{conv2d_3x3_s2.1} parent=1 // loop_header
      %s8 = sphi 0, %s12
      %p9 = scmp.ge.s32.totalorder %s8, 5
      %s15 = sphi 0, %s27
      %s16 = sphi 0, %s23
      %s17 = sphi 0, %s15
      %s18 = sphi 0, %s16
      %s19 = sphi 0, %s17
      %s20 = sphi 0, %s18
      %s30 = sphi 0, %s32
      %s33 = sphi 0, %s30
      %s34 = sphi 0, %s33
      %s50 = sphi 0, %s34
      %s56 = sphi 0, %s58
      %s59 = sphi 0, %s56
      %s60 = sphi 0, %s59
      %s76 = sphi 0, %s60
      %s84 = sphi 0, %s86
      %s87 = sphi 0, %s84
      %s88 = sphi 0, %s87
      %s104 = sphi 0, %s88
    $region4: #{conv2d_3x3_s2.1} parent=1 // loop_header_branch
      %11 = sbr.rel (%p9) target = $region8
    $region5: #{conv2d_3x3_s2.1} parent=1 // loop_body
      %s13 = ssub.s32 %s8, 1
      %s14 = ssub.s32 %s8, 2
      %s21 = sadd.s32 1, %s16
      %p22 = scmp.ge.s32.totalorder %s21, 3
      %s23 = scalar_select %p22, 0, %s21
      %s24 = sadd.s32 1, %s15
      %s25 = scalar_select %p22, %s24, %s15
      %p26 = scmp.ge.s32.totalorder %s25, 1
      %s27 = scalar_select %p26, 0, %s25
      %s28 = ssub.s32 %s15, %s27
      %p29 = scmp.eq.s32.totalorder %s28, 0
      %s31 = sadd.s32 %s30, 1
      %s32 = scalar_select %p29, %s30, %s31
      %p35 = pneg %p29
      %p36 = scmp.eq.s32.totalorder %s8, 2
      %p37 = por %p35, %p36
      %p38 = scmp.ne.s32.totalorder %s30, %s33
      %p39 = scmp.eq.s32.totalorder %s8, 0
      %p40 = por %p38, %p39
      %p41 = scmp.ne.s32.totalorder %s30, %s33
      %p42 = scmp.eq.s32.totalorder %s13, 2
      %p43 = por %p41, %p42
      %p44 = scmp.ne.s32.totalorder %s33, %s34
      %p45 = scmp.eq.s32.totalorder %s13, 0
      %p46 = por %p44, %p45
      %p47 = scmp.ne.s32.totalorder %s33, %s34
      %p48 = scmp.eq.s32.totalorder %s14, 2
      %p49 = por %p47, %p48
      %p51 = scmp.ne.s32.totalorder %s34, %s50
      %p52 = scmp.eq.s32.totalorder %s14, 0
      %p53 = por %p51, %p52
      %s54 = ssub.s32 %s16, %s23
      %p55 = scmp.eq.s32.totalorder %s54, 0
      %s57 = sadd.s32 %s56, 1
      %s58 = scalar_select %p55, %s56, %s57
      %p61 = pneg %p55
      %p62 = scmp.eq.s32.totalorder %s8, 2
      %p63 = por %p61, %p62
      %p64 = scmp.ne.s32.totalorder %s56, %s59
      %p65 = scmp.eq.s32.totalorder %s8, 0
      %p66 = por %p64, %p65
      %p67 = scmp.ne.s32.totalorder %s56, %s59
      %p68 = scmp.eq.s32.totalorder %s13, 2
      %p69 = por %p67, %p68
      %p70 = scmp.ne.s32.totalorder %s59, %s60
      %p71 = scmp.eq.s32.totalorder %s13, 0
      %p72 = por %p70, %p71
      %p73 = scmp.ne.s32.totalorder %s59, %s60
      %p74 = scmp.eq.s32.totalorder %s14, 2
      %p75 = por %p73, %p74
      %p77 = scmp.ne.s32.totalorder %s60, %s76
      %p78 = scmp.eq.s32.totalorder %s14, 0
      %p79 = por %p77, %p78
      %s80 = ssub.s32 %s15, %s27
      %s81 = ssub.s32 %s16, %s23
      %s82 = sor.u32 %s80, %s81
      %p83 = scmp.eq.s32.totalorder %s82, 0
      %s85 = sadd.s32 %s84, 1
      %s86 = scalar_select %p83, %s84, %s85
      %p89 = pneg %p83
      %p90 = scmp.eq.s32.totalorder %s8, 2
      %p91 = por %p89, %p90
      %p92 = scmp.ne.s32.totalorder %s84, %s87
      %p93 = scmp.eq.s32.totalorder %s8, 0
      %p94 = por %p92, %p93
      %p95 = scmp.ne.s32.totalorder %s84, %s87
      %p96 = scmp.eq.s32.totalorder %s13, 2
      %p97 = por %p95, %p96
      %p98 = scmp.ne.s32.totalorder %s87, %s88
      %p99 = scmp.eq.s32.totalorder %s13, 0
      %p100 = por %p98, %p99
      %p101 = scmp.ne.s32.totalorder %s87, %s88
      %p102 = scmp.eq.s32.totalorder %s14, 2
      %p103 = por %p101, %p102
      %p105 = scmp.ne.s32.totalorder %s88, %s104
      %p106 = scmp.eq.s32.totalorder %s14, 0
      %p107 = por %p105, %p106
      %p108 = scmp.le.s32.totalorder 1, %s8
      %p109 = scmp.lt.s32.totalorder %s8, 4
      %p110 = pnand %p108, %p109
      %p111 = pneg %p110
      // Predicated region
      $region9: #{conv2d_3x3_s2.1} parent=5 // pred_check
        _
      $region10: #{conv2d_3x3_s2.1} parent=5 // pred_check_branch
        %113 = sbr.rel (%p110) target = $region12
      $region11: #{conv2d_3x3_s2.1} parent=5 // pred_region
        %s114 = ssub.s32 %s8, 1
        // Predicated region
        $region13: #{conv2d_3x3_s2.1} parent=11 // pred_check
          %p115 = pneg %p46
        $region14: #{conv2d_3x3_s2.1} parent=11 // pred_check_branch
          %117 = sbr.rel (%p115) target = $region16
        $region15: #{conv2d_3x3_s2.1} parent=11 // pred_region
          %p118 = scmp.lt.s32.totalorder %s17, 0
          %s119 = scalar_select %p118, %s17, 0
          %s120 = smul.addr %s119, 64
          %s121 = smul.addr %s120, 8
          %s122 = scalar_lea.vmem %s0, %s121
        $region16: #{conv2d_3x3_s2.1} parent=11 // pred_fallthru
          _
      $region12: #{conv2d_3x3_s2.1} parent=5 // pred_fallthru
        _
      %p123 = scmp.lt.s32.totalorder %s8, 3
      // Predicated region
      $region17: #{conv2d_3x3_s2.1} parent=5 // pred_check
        %p124 = pneg %p123
      $region18: #{conv2d_3x3_s2.1} parent=5 // pred_check_branch
        %126 = sbr.rel (%p124) target = $region20
      $region19: #{conv2d_3x3_s2.1} parent=5 // pred_region
        // Predicated region
        $region21: #{conv2d_3x3_s2.1} parent=19 // pred_check
          %p127 = pneg %p66
        $region22: #{conv2d_3x3_s2.1} parent=19 // pred_check_branch
          %129 = sbr.rel (%p127) target = $region24
        $region23: #{conv2d_3x3_s2.1} parent=19 // pred_region
          %s130 = sand.u32 %s56, 1
          %s131 = sand.u32 %s56, 1
          %s132 = smul.addr %s131, 864
          %s133 = scalar_lea.vmem [#allocation2], %s132
          %s134 = smul.addr %s16, 4
          %s135 = scalar_lea.vmem %s1, %s134
          // Predicated region
          $region25: #{conv2d_3x3_s2.1} parent=23 // pred_check
            _
          $region26: #{conv2d_3x3_s2.1} parent=23 // pred_check_branch
            %137 = sbr.rel (0) target = $region28
          $region27: #{conv2d_3x3_s2.1} parent=23 // pred_region
            // Predicated region
            $region29: #{conv2d_3x3_s2.1} parent=27 // pred_check
              _
            $region30: #{conv2d_3x3_s2.1} parent=27 // pred_check_branch
              %139 = sbr.rel target = $region32
            $region31: #{conv2d_3x3_s2.1} parent=27 // pred_region
              // Predicated region
              $region44: #{conv2d_3x3_s2.1} parent=31 // pred_check
                _
              $region45: #{conv2d_3x3_s2.1} parent=31 // pred_check_branch
                %584 = sbr.rel (0) target = $region47
              $region46: #{conv2d_3x3_s2.1} parent=31 // pred_region
                loop: start=0, step=1, limit=1
                $region48: #{conv2d_3x3_s2.1} parent=46 // loop_pre_header
                  _
                $region49: #{conv2d_3x3_s2.1} parent=46 // loop_header
                  %s586 = sphi 0, %s590
                  %p587 = scmp.ge.s32.totalorder %s586, 1
                  %s591 = sphi %s135, %s135
                  %s592 = sphi %s133, %s133
                $region50: #{conv2d_3x3_s2.1} parent=46 // loop_header_branch
                  %589 = sbr.rel (%p587) target = $region54
                $region51: #{conv2d_3x3_s2.1} parent=46 // loop_body
                  _
                $region52: #{conv2d_3x3_s2.1} parent=46 // loop_footer
                  %s590 = sadd.s32 1, %s586
                $region53: #{conv2d_3x3_s2.1} parent=46 // loop_footer_branch
                  %585 = sbr.rel target = $region49
                $region54: #{conv2d_3x3_s2.1} parent=46 // loop_exit
                  _
                loop: start=0, step=1, limit=1
                $region55: #{conv2d_3x3_s2.1} parent=46 // loop_pre_header
                  _
                $region56: #{conv2d_3x3_s2.1} parent=46 // loop_header
                  %s595 = sphi 0, %s599
                  %p596 = scmp.ge.s32.totalorder %s595, 1
                  %s600 = sphi %s135, %s135
                  %s601 = sphi %s133, %s133
                $region57: #{conv2d_3x3_s2.1} parent=46 // loop_header_branch
                  %598 = sbr.rel (%p596) target = $region61
                $region58: #{conv2d_3x3_s2.1} parent=46 // loop_body
                  %v602 = vld [vmem:[%s600] sm:$0xf]
                  %603 = vst [vmem:[%s601] sm:$0xf] %v602
                  %v604 = vld [vmem:[%s600 + $0xc] sm:$0xf]
                  %605 = vst [vmem:[%s601 + $0x4] sm:$0xf] %v604
                  %v606 = vld [vmem:[%s600 + $0x18] sm:$0xf]
                  %607 = vst [vmem:[%s601 + $0x8] sm:$0xf] %v606
                  %v608 = vld [vmem:[%s600 + $0x24] sm:$0xf]
                  %609 = vst [vmem:[%s601 + $0xc] sm:$0xf] %v608
                  %v610 = vld [vmem:[%s600 + $0x30] sm:$0xf]
                  %611 = vst [vmem:[%s601 + $0x10] sm:$0xf] %v610
                  %v612 = vld [vmem:[%s600 + $0x3c] sm:$0xf]
                  %613 = vst [vmem:[%s601 + $0x14] sm:$0xf] %v612
                  %v614 = vld [vmem:[%s600 + $0x48] sm:$0xf]
                  %615 = vst [vmem:[%s601 + $0x18] sm:$0xf] %v614
                  %v616 = vld [vmem:[%s600 + $0x54] sm:$0xf]
                  %617 = vst [vmem:[%s601 + $0x1c] sm:$0xf] %v616
                  %v618 = vld [vmem:[%s600 + $0x60] sm:$0xf]
                  %619 = vst [vmem:[%s601 + $0x20] sm:$0xf] %v618
                  %v620 = vld [vmem:[%s600 + $0x6c] sm:$0xf]
                  %621 = vst [vmem:[%s601 + $0x24] sm:$0xf] %v620
                  %v622 = vld [vmem:[%s600 + $0x78] sm:$0xf]
                  %623 = vst [vmem:[%s601 + $0x28] sm:$0xf] %v622
                  %v624 = vld [vmem:[%s600 + $0x84] sm:$0xf]
                  %625 = vst [vmem:[%s601 + $0x2c] sm:$0xf] %v624
                  %v626 = vld [vmem:[%s600 + $0x90] sm:$0xf]
                  %627 = vst [vmem:[%s601 + $0x30] sm:$0xf] %v626
                  %v628 = vld [vmem:[%s600 + $0x9c] sm:$0xf]
                  %629 = vst [vmem:[%s601 + $0x34] sm:$0xf] %v628
                  %v630 = vld [vmem:[%s600 + $0xa8] sm:$0xf]
                  %631 = vst [vmem:[%s601 + $0x38] sm:$0xf] %v630
                  %v632 = vld [vmem:[%s600 + $0xb4] sm:$0xf]
                  %633 = vst [vmem:[%s601 + $0x3c] sm:$0xf] %v632
                  %v634 = vld [vmem:[%s600 + $0xc0] sm:$0xf]
                  %635 = vst [vmem:[%s601 + $0x40] sm:$0xf] %v634
                  %v636 = vld [vmem:[%s600 + $0xcc] sm:$0xf]
                  %637 = vst [vmem:[%s601 + $0x44] sm:$0xf] %v636
                  %v638 = vld [vmem:[%s600 + $0xd8] sm:$0xf]
                  %639 = vst [vmem:[%s601 + $0x48] sm:$0xf] %v638
                  %v640 = vld [vmem:[%s600 + $0xe4] sm:$0xf]
                  %641 = vst [vmem:[%s601 + $0x4c] sm:$0xf] %v640
                  %v642 = vld [vmem:[%s600 + $0xf0] sm:$0xf]
                  %643 = vst [vmem:[%s601 + $0x50] sm:$0xf] %v642
                  %v644 = vld [vmem:[%s600 + $0xfc] sm:$0xf]
                  %645 = vst [vmem:[%s601 + $0x54] sm:$0xf] %v644
                  %v646 = vld [vmem:[%s600 + $0x108] sm:$0xf]
                  %647 = vst [vmem:[%s601 + $0x58] sm:$0xf] %v646
                  %v648 = vld [vmem:[%s600 + $0x114] sm:$0xf]
                  %649 = vst [vmem:[%s601 + $0x5c] sm:$0xf] %v648
                  %v650 = vld [vmem:[%s600 + $0x120] sm:$0xf]
                  %651 = vst [vmem:[%s601 + $0x60] sm:$0xf] %v650
                  %v652 = vld [vmem:[%s600 + $0x12c] sm:$0xf]
                  %653 = vst [vmem:[%s601 + $0x64] sm:$0xf] %v652
                  %v654 = vld [vmem:[%s600 + $0x138] sm:$0xf]
                  %655 = vst [vmem:[%s601 + $0x68] sm:$0xf] %v654
                  %v656 = vld [vmem:[%s600 + $0x144] sm:$0xf]
                  %657 = vst [vmem:[%s601 + $0x6c] sm:$0xf] %v656
                  %v658 = vld [vmem:[%s600 + $0x150] sm:$0xf]
                  %659 = vst [vmem:[%s601 + $0x70] sm:$0xf] %v658
                  %v660 = vld [vmem:[%s600 + $0x15c] sm:$0xf]
                  %661 = vst [vmem:[%s601 + $0x74] sm:$0xf] %v660
                  %v662 = vld [vmem:[%s600 + $0x168] sm:$0xf]
                  %663 = vst [vmem:[%s601 + $0x78] sm:$0xf] %v662
                  %v664 = vld [vmem:[%s600 + $0x174] sm:$0xf]
                  %665 = vst [vmem:[%s601 + $0x7c] sm:$0xf] %v664
                  %v666 = vld [vmem:[%s600 + $0x180] sm:$0xf]
                  %667 = vst [vmem:[%s601 + $0x80] sm:$0xf] %v666
                  %v668 = vld [vmem:[%s600 + $0x18c] sm:$0xf]
                  %669 = vst [vmem:[%s601 + $0x84] sm:$0xf] %v668
                  %v670 = vld [vmem:[%s600 + $0x198] sm:$0xf]
                  %671 = vst [vmem:[%s601 + $0x88] sm:$0xf] %v670
                  %v672 = vld [vmem:[%s600 + $0x1a4] sm:$0xf]
                  %673 = vst [vmem:[%s601 + $0x8c] sm:$0xf] %v672
                  %v674 = vld [vmem:[%s600 + $0x1b0] sm:$0xf]
                  %675 = vst [vmem:[%s601 + $0x90] sm:$0xf] %v674
                  %v676 = vld [vmem:[%s600 + $0x1bc] sm:$0xf]
                  %677 = vst [vmem:[%s601 + $0x94] sm:$0xf] %v676
                  %v678 = vld [vmem:[%s600 + $0x1c8] sm:$0xf]
                  %679 = vst [vmem:[%s601 + $0x98] sm:$0xf] %v678
                  %v680 = vld [vmem:[%s600 + $0x1d4] sm:$0xf]
                  %681 = vst [vmem:[%s601 + $0x9c] sm:$0xf] %v680
                  %v682 = vld [vmem:[%s600 + $0x1e0] sm:$0xf]
                  %683 = vst [vmem:[%s601 + $0xa0] sm:$0xf] %v682
                  %v684 = vld [vmem:[%s600 + $0x1ec] sm:$0xf]
                  %685 = vst [vmem:[%s601 + $0xa4] sm:$0xf] %v684
                  %v686 = vld [vmem:[%s600 + $0x1f8] sm:$0xf]
                  %687 = vst [vmem:[%s601 + $0xa8] sm:$0xf] %v686
                  %v688 = vld [vmem:[%s600 + $0x204] sm:$0xf]
                  %689 = vst [vmem:[%s601 + $0xac] sm:$0xf] %v688
                  %v690 = vld [vmem:[%s600 + $0x210] sm:$0xf]
                  %691 = vst [vmem:[%s601 + $0xb0] sm:$0xf] %v690
                  %v692 = vld [vmem:[%s600 + $0x21c] sm:$0xf]
                  %693 = vst [vmem:[%s601 + $0xb4] sm:$0xf] %v692
                  %v694 = vld [vmem:[%s600 + $0x228] sm:$0xf]
                  %695 = vst [vmem:[%s601 + $0xb8] sm:$0xf] %v694
                  %v696 = vld [vmem:[%s600 + $0x234] sm:$0xf]
                  %697 = vst [vmem:[%s601 + $0xbc] sm:$0xf] %v696
                  %v698 = vld [vmem:[%s600 + $0x240] sm:$0xf]
                  %699 = vst [vmem:[%s601 + $0xc0] sm:$0xf] %v698
                  %v700 = vld [vmem:[%s600 + $0x24c] sm:$0xf]
                  %701 = vst [vmem:[%s601 + $0xc4] sm:$0xf] %v700
                  %v702 = vld [vmem:[%s600 + $0x258] sm:$0xf]
                  %703 = vst [vmem:[%s601 + $0xc8] sm:$0xf] %v702
                  %v704 = vld [vmem:[%s600 + $0x264] sm:$0xf]
                  %705 = vst [vmem:[%s601 + $0xcc] sm:$0xf] %v704
                  %v706 = vld [vmem:[%s600 + $0x270] sm:$0xf]
                  %707 = vst [vmem:[%s601 + $0xd0] sm:$0xf] %v706
                  %v708 = vld [vmem:[%s600 + $0x27c] sm:$0xf]
                  %709 = vst [vmem:[%s601 + $0xd4] sm:$0xf] %v708
                  %v710 = vld [vmem:[%s600 + $0x288] sm:$0xf]
                  %711 = vst [vmem:[%s601 + $0xd8] sm:$0xf] %v710
                  %v712 = vld [vmem:[%s600 + $0x294] sm:$0xf]
                  %713 = vst [vmem:[%s601 + $0xdc] sm:$0xf] %v712
                  %v714 = vld [vmem:[%s600 + $0x2a0] sm:$0xf]
                  %715 = vst [vmem:[%s601 + $0xe0] sm:$0xf] %v714
                  %v716 = vld [vmem:[%s600 + $0x2ac] sm:$0xf]
                  %717 = vst [vmem:[%s601 + $0xe4] sm:$0xf] %v716
                  %v718 = vld [vmem:[%s600 + $0x2b8] sm:$0xf]
                  %719 = vst [vmem:[%s601 + $0xe8] sm:$0xf] %v718
                  %v720 = vld [vmem:[%s600 + $0x2c4] sm:$0xf]
                  %721 = vst [vmem:[%s601 + $0xec] sm:$0xf] %v720
                  %v722 = vld [vmem:[%s600 + $0x2d0] sm:$0xf]
                  %723 = vst [vmem:[%s601 + $0xf0] sm:$0xf] %v722
                  %v724 = vld [vmem:[%s600 + $0x2dc] sm:$0xf]
                  %725 = vst [vmem:[%s601 + $0xf4] sm:$0xf] %v724
                  %v726 = vld [vmem:[%s600 + $0x2e8] sm:$0xf]
                  %727 = vst [vmem:[%s601 + $0xf8] sm:$0xf] %v726
                  %v728 = vld [vmem:[%s600 + $0x2f4] sm:$0xf]
                  %729 = vst [vmem:[%s601 + $0xfc] sm:$0xf] %v728
                  %v730 = vld [vmem:[%s600 + $0x300] sm:$0xf]
                  %731 = vst [vmem:[%s601 + $0x100] sm:$0xf] %v730
                  %v732 = vld [vmem:[%s600 + $0x30c] sm:$0xf]
                  %733 = vst [vmem:[%s601 + $0x104] sm:$0xf] %v732
                  %v734 = vld [vmem:[%s600 + $0x318] sm:$0xf]
                  %735 = vst [vmem:[%s601 + $0x108] sm:$0xf] %v734
                  %v736 = vld [vmem:[%s600 + $0x324] sm:$0xf]
                  %737 = vst [vmem:[%s601 + $0x10c] sm:$0xf] %v736
                  %v738 = vld [vmem:[%s600 + $0x330] sm:$0xf]
                  %739 = vst [vmem:[%s601 + $0x110] sm:$0xf] %v738
                  %v740 = vld [vmem:[%s600 + $0x33c] sm:$0xf]
                  %741 = vst [vmem:[%s601 + $0x114] sm:$0xf] %v740
                  %v742 = vld [vmem:[%s600 + $0x348] sm:$0xf]
                  %743 = vst [vmem:[%s601 + $0x118] sm:$0xf] %v742
                  %v744 = vld [vmem:[%s600 + $0x354] sm:$0xf]
                  %745 = vst [vmem:[%s601 + $0x11c] sm:$0xf] %v744
                  %v746 = vld [vmem:[%s600 + $0x360] sm:$0xf]
                  %747 = vst [vmem:[%s601 + $0x120] sm:$0xf] %v746
                  %v748 = vld [vmem:[%s600 + $0x36c] sm:$0xf]
                  %749 = vst [vmem:[%s601 + $0x124] sm:$0xf] %v748
                  %v750 = vld [vmem:[%s600 + $0x378] sm:$0xf]
                  %751 = vst [vmem:[%s601 + $0x128] sm:$0xf] %v750
                  %v752 = vld [vmem:[%s600 + $0x384] sm:$0xf]
                  %753 = vst [vmem:[%s601 + $0x12c] sm:$0xf] %v752
                  %v754 = vld [vmem:[%s600 + $0x390] sm:$0xf]
                  %755 = vst [vmem:[%s601 + $0x130] sm:$0xf] %v754
                  %v756 = vld [vmem:[%s600 + $0x39c] sm:$0xf]
                  %757 = vst [vmem:[%s601 + $0x134] sm:$0xf] %v756
                  %v758 = vld [vmem:[%s600 + $0x3a8] sm:$0xf]
                  %759 = vst [vmem:[%s601 + $0x138] sm:$0xf] %v758
                  %v760 = vld [vmem:[%s600 + $0x3b4] sm:$0xf]
                  %761 = vst [vmem:[%s601 + $0x13c] sm:$0xf] %v760
                  %v762 = vld [vmem:[%s600 + $0x3c0] sm:$0xf]
                  %763 = vst [vmem:[%s601 + $0x140] sm:$0xf] %v762
                  %v764 = vld [vmem:[%s600 + $0x3cc] sm:$0xf]
                  %765 = vst [vmem:[%s601 + $0x144] sm:$0xf] %v764
                  %v766 = vld [vmem:[%s600 + $0x3d8] sm:$0xf]
                  %767 = vst [vmem:[%s601 + $0x148] sm:$0xf] %v766
                  %v768 = vld [vmem:[%s600 + $0x3e4] sm:$0xf]
                  %769 = vst [vmem:[%s601 + $0x14c] sm:$0xf] %v768
                  %v770 = vld [vmem:[%s600 + $0x3f0] sm:$0xf]
                  %771 = vst [vmem:[%s601 + $0x150] sm:$0xf] %v770
                  %v772 = vld [vmem:[%s600 + $0x3fc] sm:$0xf]
                  %773 = vst [vmem:[%s601 + $0x154] sm:$0xf] %v772
                  %v774 = vld [vmem:[%s600 + $0x408] sm:$0xf]
                  %775 = vst [vmem:[%s601 + $0x158] sm:$0xf] %v774
                  %v776 = vld [vmem:[%s600 + $0x414] sm:$0xf]
                  %777 = vst [vmem:[%s601 + $0x15c] sm:$0xf] %v776
                  %v778 = vld [vmem:[%s600 + $0x420] sm:$0xf]
                  %779 = vst [vmem:[%s601 + $0x160] sm:$0xf] %v778
                  %v780 = vld [vmem:[%s600 + $0x42c] sm:$0xf]
                  %781 = vst [vmem:[%s601 + $0x164] sm:$0xf] %v780
                  %v782 = vld [vmem:[%s600 + $0x438] sm:$0xf]
                  %783 = vst [vmem:[%s601 + $0x168] sm:$0xf] %v782
                  %v784 = vld [vmem:[%s600 + $0x444] sm:$0xf]
                  %785 = vst [vmem:[%s601 + $0x16c] sm:$0xf] %v784
                  %v786 = vld [vmem:[%s600 + $0x450] sm:$0xf]
                  %787 = vst [vmem:[%s601 + $0x170] sm:$0xf] %v786
                  %v788 = vld [vmem:[%s600 + $0x45c] sm:$0xf]
                  %789 = vst [vmem:[%s601 + $0x174] sm:$0xf] %v788
                  %v790 = vld [vmem:[%s600 + $0x468] sm:$0xf]
                  %791 = vst [vmem:[%s601 + $0x178] sm:$0xf] %v790
                  %v792 = vld [vmem:[%s600 + $0x474] sm:$0xf]
                  %793 = vst [vmem:[%s601 + $0x17c] sm:$0xf] %v792
                  %v794 = vld [vmem:[%s600 + $0x480] sm:$0xf]
                  %795 = vst [vmem:[%s601 + $0x180] sm:$0xf] %v794
                  %v796 = vld [vmem:[%s600 + $0x48c] sm:$0xf]
                  %797 = vst [vmem:[%s601 + $0x184] sm:$0xf] %v796
                  %v798 = vld [vmem:[%s600 + $0x498] sm:$0xf]
                  %799 = vst [vmem:[%s601 + $0x188] sm:$0xf] %v798
                  %v800 = vld [vmem:[%s600 + $0x4a4] sm:$0xf]
                  %801 = vst [vmem:[%s601 + $0x18c] sm:$0xf] %v800
                  %v802 = vld [vmem:[%s600 + $0x4b0] sm:$0xf]
                  %803 = vst [vmem:[%s601 + $0x190] sm:$0xf] %v802
                  %v804 = vld [vmem:[%s600 + $0x4bc] sm:$0xf]
                  %805 = vst [vmem:[%s601 + $0x194] sm:$0xf] %v804
                  %v806 = vld [vmem:[%s600 + $0x4c8] sm:$0xf]
                  %807 = vst [vmem:[%s601 + $0x198] sm:$0xf] %v806
                  %v808 = vld [vmem:[%s600 + $0x4d4] sm:$0xf]
                  %809 = vst [vmem:[%s601 + $0x19c] sm:$0xf] %v808
                  %v810 = vld [vmem:[%s600 + $0x4e0] sm:$0xf]
                  %811 = vst [vmem:[%s601 + $0x1a0] sm:$0xf] %v810
                  %v812 = vld [vmem:[%s600 + $0x4ec] sm:$0xf]
                  %813 = vst [vmem:[%s601 + $0x1a4] sm:$0xf] %v812
                  %v814 = vld [vmem:[%s600 + $0x4f8] sm:$0xf]
                  %815 = vst [vmem:[%s601 + $0x1a8] sm:$0xf] %v814
                  %v816 = vld [vmem:[%s600 + $0x504] sm:$0xf]
                  %817 = vst [vmem:[%s601 + $0x1ac] sm:$0xf] %v816
                  %v818 = vld [vmem:[%s600 + $0x510] sm:$0xf]
                  %819 = vst [vmem:[%s601 + $0x1b0] sm:$0xf] %v818
                  %v820 = vld [vmem:[%s600 + $0x51c] sm:$0xf]
                  %821 = vst [vmem:[%s601 + $0x1b4] sm:$0xf] %v820
                  %v822 = vld [vmem:[%s600 + $0x528] sm:$0xf]
                  %823 = vst [vmem:[%s601 + $0x1b8] sm:$0xf] %v822
                  %v824 = vld [vmem:[%s600 + $0x534] sm:$0xf]
                  %825 = vst [vmem:[%s601 + $0x1bc] sm:$0xf] %v824
                  %v826 = vld [vmem:[%s600 + $0x540] sm:$0xf]
                  %827 = vst [vmem:[%s601 + $0x1c0] sm:$0xf] %v826
                  %v828 = vld [vmem:[%s600 + $0x54c] sm:$0xf]
                  %829 = vst [vmem:[%s601 + $0x1c4] sm:$0xf] %v828
                  %v830 = vld [vmem:[%s600 + $0x558] sm:$0xf]
                  %831 = vst [vmem:[%s601 + $0x1c8] sm:$0xf] %v830
                  %v832 = vld [vmem:[%s600 + $0x564] sm:$0xf]
                  %833 = vst [vmem:[%s601 + $0x1cc] sm:$0xf] %v832
                  %v834 = vld [vmem:[%s600 + $0x570] sm:$0xf]
                  %835 = vst [vmem:[%s601 + $0x1d0] sm:$0xf] %v834
                  %v836 = vld [vmem:[%s600 + $0x57c] sm:$0xf]
                  %837 = vst [vmem:[%s601 + $0x1d4] sm:$0xf] %v836
                  %v838 = vld [vmem:[%s600 + $0x588] sm:$0xf]
                  %839 = vst [vmem:[%s601 + $0x1d8] sm:$0xf] %v838
                  %v840 = vld [vmem:[%s600 + $0x594] sm:$0xf]
                  %841 = vst [vmem:[%s601 + $0x1dc] sm:$0xf] %v840
                  %v842 = vld [vmem:[%s600 + $0x5a0] sm:$0xf]
                  %843 = vst [vmem:[%s601 + $0x1e0] sm:$0xf] %v842
                  %v844 = vld [vmem:[%s600 + $0x5ac] sm:$0xf]
                  %845 = vst [vmem:[%s601 + $0x1e4] sm:$0xf] %v844
                  %v846 = vld [vmem:[%s600 + $0x5b8] sm:$0xf]
                  %847 = vst [vmem:[%s601 + $0x1e8] sm:$0xf] %v846
                  %v848 = vld [vmem:[%s600 + $0x5c4] sm:$0xf]
                  %849 = vst [vmem:[%s601 + $0x1ec] sm:$0xf] %v848
                  %v850 = vld [vmem:[%s600 + $0x5d0] sm:$0xf]
                  %851 = vst [vmem:[%s601 + $0x1f0] sm:$0xf] %v850
                  %v852 = vld [vmem:[%s600 + $0x5dc] sm:$0xf]
                  %853 = vst [vmem:[%s601 + $0x1f4] sm:$0xf] %v852
                  %v854 = vld [vmem:[%s600 + $0x5e8] sm:$0xf]
                  %855 = vst [vmem:[%s601 + $0x1f8] sm:$0xf] %v854
                  %v856 = vld [vmem:[%s600 + $0x5f4] sm:$0xf]
                  %857 = vst [vmem:[%s601 + $0x1fc] sm:$0xf] %v856
                  %v858 = vld [vmem:[%s600 + $0x600] sm:$0xf]
                  %859 = vst [vmem:[%s601 + $0x200] sm:$0xf] %v858
                  %v860 = vld [vmem:[%s600 + $0x60c] sm:$0xf]
                  %861 = vst [vmem:[%s601 + $0x204] sm:$0xf] %v860
                  %v862 = vld [vmem:[%s600 + $0x618] sm:$0xf]
                  %863 = vst [vmem:[%s601 + $0x208] sm:$0xf] %v862
                  %v864 = vld [vmem:[%s600 + $0x624] sm:$0xf]
                  %865 = vst [vmem:[%s601 + $0x20c] sm:$0xf] %v864
                  %v866 = vld [vmem:[%s600 + $0x630] sm:$0xf]
                  %867 = vst [vmem:[%s601 + $0x210] sm:$0xf] %v866
                  %v868 = vld [vmem:[%s600 + $0x63c] sm:$0xf]
                  %869 = vst [vmem:[%s601 + $0x214] sm:$0xf] %v868
                  %v870 = vld [vmem:[%s600 + $0x648] sm:$0xf]
                  %871 = vst [vmem:[%s601 + $0x218] sm:$0xf] %v870
                  %v872 = vld [vmem:[%s600 + $0x654] sm:$0xf]
                  %873 = vst [vmem:[%s601 + $0x21c] sm:$0xf] %v872
                  %v874 = vld [vmem:[%s600 + $0x660] sm:$0xf]
                  %875 = vst [vmem:[%s601 + $0x220] sm:$0xf] %v874
                  %v876 = vld [vmem:[%s600 + $0x66c] sm:$0xf]
                  %877 = vst [vmem:[%s601 + $0x224] sm:$0xf] %v876
                  %v878 = vld [vmem:[%s600 + $0x678] sm:$0xf]
                  %879 = vst [vmem:[%s601 + $0x228] sm:$0xf] %v878
                  %v880 = vld [vmem:[%s600 + $0x684] sm:$0xf]
                  %881 = vst [vmem:[%s601 + $0x22c] sm:$0xf] %v880
                  %v882 = vld [vmem:[%s600 + $0x690] sm:$0xf]
                  %883 = vst [vmem:[%s601 + $0x230] sm:$0xf] %v882
                  %v884 = vld [vmem:[%s600 + $0x69c] sm:$0xf]
                  %885 = vst [vmem:[%s601 + $0x234] sm:$0xf] %v884
                  %v886 = vld [vmem:[%s600 + $0x6a8] sm:$0xf]
                  %887 = vst [vmem:[%s601 + $0x238] sm:$0xf] %v886
                  %v888 = vld [vmem:[%s600 + $0x6b4] sm:$0xf]
                  %889 = vst [vmem:[%s601 + $0x23c] sm:$0xf] %v888
                  %v890 = vld [vmem:[%s600 + $0x6c0] sm:$0xf]
                  %891 = vst [vmem:[%s601 + $0x240] sm:$0xf] %v890
                  %v892 = vld [vmem:[%s600 + $0x6cc] sm:$0xf]
                  %893 = vst [vmem:[%s601 + $0x244] sm:$0xf] %v892
                  %v894 = vld [vmem:[%s600 + $0x6d8] sm:$0xf]
                  %895 = vst [vmem:[%s601 + $0x248] sm:$0xf] %v894
                  %v896 = vld [vmem:[%s600 + $0x6e4] sm:$0xf]
                  %897 = vst [vmem:[%s601 + $0x24c] sm:$0xf] %v896
                  %v898 = vld [vmem:[%s600 + $0x6f0] sm:$0xf]
                  %899 = vst [vmem:[%s601 + $0x250] sm:$0xf] %v898
                  %v900 = vld [vmem:[%s600 + $0x6fc] sm:$0xf]
                  %901 = vst [vmem:[%s601 + $0x254] sm:$0xf] %v900
                  %v902 = vld [vmem:[%s600 + $0x708] sm:$0xf]
                  %903 = vst [vmem:[%s601 + $0x258] sm:$0xf] %v902
                  %v904 = vld [vmem:[%s600 + $0x714] sm:$0xf]
                  %905 = vst [vmem:[%s601 + $0x25c] sm:$0xf] %v904
                  %v906 = vld [vmem:[%s600 + $0x720] sm:$0xf]
                  %907 = vst [vmem:[%s601 + $0x260] sm:$0xf] %v906
                  %v908 = vld [vmem:[%s600 + $0x72c] sm:$0xf]
                  %909 = vst [vmem:[%s601 + $0x264] sm:$0xf] %v908
                  %v910 = vld [vmem:[%s600 + $0x738] sm:$0xf]
                  %911 = vst [vmem:[%s601 + $0x268] sm:$0xf] %v910
                  %v912 = vld [vmem:[%s600 + $0x744] sm:$0xf]
                  %913 = vst [vmem:[%s601 + $0x26c] sm:$0xf] %v912
                  %v914 = vld [vmem:[%s600 + $0x750] sm:$0xf]
                  %915 = vst [vmem:[%s601 + $0x270] sm:$0xf] %v914
                  %v916 = vld [vmem:[%s600 + $0x75c] sm:$0xf]
                  %917 = vst [vmem:[%s601 + $0x274] sm:$0xf] %v916
                  %v918 = vld [vmem:[%s600 + $0x768] sm:$0xf]
                  %919 = vst [vmem:[%s601 + $0x278] sm:$0xf] %v918
                  %v920 = vld [vmem:[%s600 + $0x774] sm:$0xf]
                  %921 = vst [vmem:[%s601 + $0x27c] sm:$0xf] %v920
                  %v922 = vld [vmem:[%s600 + $0x780] sm:$0xf]
                  %923 = vst [vmem:[%s601 + $0x280] sm:$0xf] %v922
                  %v924 = vld [vmem:[%s600 + $0x78c] sm:$0xf]
                  %925 = vst [vmem:[%s601 + $0x284] sm:$0xf] %v924
                  %v926 = vld [vmem:[%s600 + $0x798] sm:$0xf]
                  %927 = vst [vmem:[%s601 + $0x288] sm:$0xf] %v926
                  %v928 = vld [vmem:[%s600 + $0x7a4] sm:$0xf]
                  %929 = vst [vmem:[%s601 + $0x28c] sm:$0xf] %v928
                  %v930 = vld [vmem:[%s600 + $0x7b0] sm:$0xf]
                  %931 = vst [vmem:[%s601 + $0x290] sm:$0xf] %v930
                  %v932 = vld [vmem:[%s600 + $0x7bc] sm:$0xf]
                  %933 = vst [vmem:[%s601 + $0x294] sm:$0xf] %v932
                  %v934 = vld [vmem:[%s600 + $0x7c8] sm:$0xf]
                  %935 = vst [vmem:[%s601 + $0x298] sm:$0xf] %v934
                  %v936 = vld [vmem:[%s600 + $0x7d4] sm:$0xf]
                  %937 = vst [vmem:[%s601 + $0x29c] sm:$0xf] %v936
                  %v938 = vld [vmem:[%s600 + $0x7e0] sm:$0xf]
                  %939 = vst [vmem:[%s601 + $0x2a0] sm:$0xf] %v938
                  %v940 = vld [vmem:[%s600 + $0x7ec] sm:$0xf]
                  %941 = vst [vmem:[%s601 + $0x2a4] sm:$0xf] %v940
                  %v942 = vld [vmem:[%s600 + $0x7f8] sm:$0xf]
                  %943 = vst [vmem:[%s601 + $0x2a8] sm:$0xf] %v942
                  %v944 = vld [vmem:[%s600 + $0x804] sm:$0xf]
                  %945 = vst [vmem:[%s601 + $0x2ac] sm:$0xf] %v944
                  %v946 = vld [vmem:[%s600 + $0x810] sm:$0xf]
                  %947 = vst [vmem:[%s601 + $0x2b0] sm:$0xf] %v946
                  %v948 = vld [vmem:[%s600 + $0x81c] sm:$0xf]
                  %949 = vst [vmem:[%s601 + $0x2b4] sm:$0xf] %v948
                  %v950 = vld [vmem:[%s600 + $0x828] sm:$0xf]
                  %951 = vst [vmem:[%s601 + $0x2b8] sm:$0xf] %v950
                  %v952 = vld [vmem:[%s600 + $0x834] sm:$0xf]
                  %953 = vst [vmem:[%s601 + $0x2bc] sm:$0xf] %v952
                  %v954 = vld [vmem:[%s600 + $0x840] sm:$0xf]
                  %955 = vst [vmem:[%s601 + $0x2c0] sm:$0xf] %v954
                  %v956 = vld [vmem:[%s600 + $0x84c] sm:$0xf]
                  %957 = vst [vmem:[%s601 + $0x2c4] sm:$0xf] %v956
                  %v958 = vld [vmem:[%s600 + $0x858] sm:$0xf]
                  %959 = vst [vmem:[%s601 + $0x2c8] sm:$0xf] %v958
                  %v960 = vld [vmem:[%s600 + $0x864] sm:$0xf]
                  %961 = vst [vmem:[%s601 + $0x2cc] sm:$0xf] %v960
                  %v962 = vld [vmem:[%s600 + $0x870] sm:$0xf]
                  %963 = vst [vmem:[%s601 + $0x2d0] sm:$0xf] %v962
                  %v964 = vld [vmem:[%s600 + $0x87c] sm:$0xf]
                  %965 = vst [vmem:[%s601 + $0x2d4] sm:$0xf] %v964
                  %v966 = vld [vmem:[%s600 + $0x888] sm:$0xf]
                  %967 = vst [vmem:[%s601 + $0x2d8] sm:$0xf] %v966
                  %v968 = vld [vmem:[%s600 + $0x894] sm:$0xf]
                  %969 = vst [vmem:[%s601 + $0x2dc] sm:$0xf] %v968
                  %v970 = vld [vmem:[%s600 + $0x8a0] sm:$0xf]
                  %971 = vst [vmem:[%s601 + $0x2e0] sm:$0xf] %v970
                  %v972 = vld [vmem:[%s600 + $0x8ac] sm:$0xf]
                  %973 = vst [vmem:[%s601 + $0x2e4] sm:$0xf] %v972
                  %v974 = vld [vmem:[%s600 + $0x8b8] sm:$0xf]
                  %975 = vst [vmem:[%s601 + $0x2e8] sm:$0xf] %v974
                  %v976 = vld [vmem:[%s600 + $0x8c4] sm:$0xf]
                  %977 = vst [vmem:[%s601 + $0x2ec] sm:$0xf] %v976
                  %v978 = vld [vmem:[%s600 + $0x8d0] sm:$0xf]
                  %979 = vst [vmem:[%s601 + $0x2f0] sm:$0xf] %v978
                  %v980 = vld [vmem:[%s600 + $0x8dc] sm:$0xf]
                  %981 = vst [vmem:[%s601 + $0x2f4] sm:$0xf] %v980
                  %v982 = vld [vmem:[%s600 + $0x8e8] sm:$0xf]
                  %983 = vst [vmem:[%s601 + $0x2f8] sm:$0xf] %v982
                  %v984 = vld [vmem:[%s600 + $0x8f4] sm:$0xf]
                  %985 = vst [vmem:[%s601 + $0x2fc] sm:$0xf] %v984
                  %v986 = vld [vmem:[%s600 + $0x900] sm:$0xf]
                  %987 = vst [vmem:[%s601 + $0x300] sm:$0xf] %v986
                  %v988 = vld [vmem:[%s600 + $0x90c] sm:$0xf]
                  %989 = vst [vmem:[%s601 + $0x304] sm:$0xf] %v988
                  %v990 = vld [vmem:[%s600 + $0x918] sm:$0xf]
                  %991 = vst [vmem:[%s601 + $0x308] sm:$0xf] %v990
                  %v992 = vld [vmem:[%s600 + $0x924] sm:$0xf]
                  %993 = vst [vmem:[%s601 + $0x30c] sm:$0xf] %v992
                  %v994 = vld [vmem:[%s600 + $0x930] sm:$0xf]
                  %995 = vst [vmem:[%s601 + $0x310] sm:$0xf] %v994
                  %v996 = vld [vmem:[%s600 + $0x93c] sm:$0xf]
                  %997 = vst [vmem:[%s601 + $0x314] sm:$0xf] %v996
                  %v998 = vld [vmem:[%s600 + $0x948] sm:$0xf]
                  %999 = vst [vmem:[%s601 + $0x318] sm:$0xf] %v998
                  %v1000 = vld [vmem:[%s600 + $0x954] sm:$0xf]
                  %1001 = vst [vmem:[%s601 + $0x31c] sm:$0xf] %v1000
                  %v1002 = vld [vmem:[%s600 + $0x960] sm:$0xf]
                  %1003 = vst [vmem:[%s601 + $0x320] sm:$0xf] %v1002
                  %v1004 = vld [vmem:[%s600 + $0x96c] sm:$0xf]
                  %1005 = vst [vmem:[%s601 + $0x324] sm:$0xf] %v1004
                  %v1006 = vld [vmem:[%s600 + $0x978] sm:$0xf]
                  %1007 = vst [vmem:[%s601 + $0x328] sm:$0xf] %v1006
                  %v1008 = vld [vmem:[%s600 + $0x984] sm:$0xf]
                  %1009 = vst [vmem:[%s601 + $0x32c] sm:$0xf] %v1008
                  %v1010 = vld [vmem:[%s600 + $0x990] sm:$0xf]
                  %1011 = vst [vmem:[%s601 + $0x330] sm:$0xf] %v1010
                  %v1012 = vld [vmem:[%s600 + $0x99c] sm:$0xf]
                  %1013 = vst [vmem:[%s601 + $0x334] sm:$0xf] %v1012
                  %v1014 = vld [vmem:[%s600 + $0x9a8] sm:$0xf]
                  %1015 = vst [vmem:[%s601 + $0x338] sm:$0xf] %v1014
                  %v1016 = vld [vmem:[%s600 + $0x9b4] sm:$0xf]
                  %1017 = vst [vmem:[%s601 + $0x33c] sm:$0xf] %v1016
                  %v1018 = vld [vmem:[%s600 + $0x9c0] sm:$0xf]
                  %1019 = vst [vmem:[%s601 + $0x340] sm:$0xf] %v1018
                  %v1020 = vld [vmem:[%s600 + $0x9cc] sm:$0xf]
                  %1021 = vst [vmem:[%s601 + $0x344] sm:$0xf] %v1020
                  %v1022 = vld [vmem:[%s600 + $0x9d8] sm:$0xf]
                  %1023 = vst [vmem:[%s601 + $0x348] sm:$0xf] %v1022
                  %v1024 = vld [vmem:[%s600 + $0x9e4] sm:$0xf]
                  %1025 = vst [vmem:[%s601 + $0x34c] sm:$0xf] %v1024
                  %v1026 = vld [vmem:[%s600 + $0x9f0] sm:$0xf]
                  %1027 = vst [vmem:[%s601 + $0x350] sm:$0xf] %v1026
                  %v1028 = vld [vmem:[%s600 + $0x9fc] sm:$0xf]
                  %1029 = vst [vmem:[%s601 + $0x354] sm:$0xf] %v1028
                  %v1030 = vld [vmem:[%s600 + $0xa08] sm:$0xf]
                  %1031 = vst [vmem:[%s601 + $0x358] sm:$0xf] %v1030
                  %v1032 = vld [vmem:[%s600 + $0xa14] sm:$0xf]
                  %1033 = vst [vmem:[%s601 + $0x35c] sm:$0xf] %v1032
                $region59: #{conv2d_3x3_s2.1} parent=46 // loop_footer
                  %s599 = sadd.s32 1, %s595
                $region60: #{conv2d_3x3_s2.1} parent=46 // loop_footer_branch
                  %594 = sbr.rel target = $region56
                $region61: #{conv2d_3x3_s2.1} parent=46 // loop_exit
                  _
              $region47: #{conv2d_3x3_s2.1} parent=31 // pred_fallthru
                _
            $region32: #{conv2d_3x3_s2.1} parent=27 // pred_fallthru
              _
            // Predicated region
            $region33: #{conv2d_3x3_s2.1} parent=27 // pred_check
              _
            $region34: #{conv2d_3x3_s2.1} parent=27 // pred_check_branch
              %141 = sbr.rel (0) target = $region36
            $region35: #{conv2d_3x3_s2.1} parent=27 // pred_region
              loop: start=0, step=1, limit=1
              $region37: #{conv2d_3x3_s2.1} parent=35 // loop_pre_header
                _
              $region38: #{conv2d_3x3_s2.1} parent=35 // loop_header
                %s144 = sphi 0, %s148
                %p145 = scmp.ge.s32.totalorder %s144, 1
                %s149 = sphi %s135, %s135
                %s150 = sphi %s133, %s133
              $region39: #{conv2d_3x3_s2.1} parent=35 // loop_header_branch
                %147 = sbr.rel (%p145) target = $region43
              $region40: #{conv2d_3x3_s2.1} parent=35 // loop_body
                %v151 = vld [vmem:[%s149] sm:$0xf]
                %152 = vst [vmem:[%s150] sm:$0xf] %v151
                %v153 = vld [vmem:[%s149 + $0xc] sm:$0xf]
                %154 = vst [vmem:[%s150 + $0x4] sm:$0xf] %v153
                %v155 = vld [vmem:[%s149 + $0x18] sm:$0xf]
                %156 = vst [vmem:[%s150 + $0x8] sm:$0xf] %v155
                %v157 = vld [vmem:[%s149 + $0x24] sm:$0xf]
                %158 = vst [vmem:[%s150 + $0xc] sm:$0xf] %v157
                %v159 = vld [vmem:[%s149 + $0x30] sm:$0xf]
                %160 = vst [vmem:[%s150 + $0x10] sm:$0xf] %v159
                %v161 = vld [vmem:[%s149 + $0x3c] sm:$0xf]
                %162 = vst [vmem:[%s150 + $0x14] sm:$0xf] %v161
                %v163 = vld [vmem:[%s149 + $0x48] sm:$0xf]
                %164 = vst [vmem:[%s150 + $0x18] sm:$0xf] %v163
                %v165 = vld [vmem:[%s149 + $0x54] sm:$0xf]
                %166 = vst [vmem:[%s150 + $0x1c] sm:$0xf] %v165
                %v167 = vld [vmem:[%s149 + $0x60] sm:$0xf]
                %168 = vst [vmem:[%s150 + $0x20] sm:$0xf] %v167
                %v169 = vld [vmem:[%s149 + $0x6c] sm:$0xf]
                %170 = vst [vmem:[%s150 + $0x24] sm:$0xf] %v169
                %v171 = vld [vmem:[%s149 + $0x78] sm:$0xf]
                %172 = vst [vmem:[%s150 + $0x28] sm:$0xf] %v171
                %v173 = vld [vmem:[%s149 + $0x84] sm:$0xf]
                %174 = vst [vmem:[%s150 + $0x2c] sm:$0xf] %v173
                %v175 = vld [vmem:[%s149 + $0x90] sm:$0xf]
                %176 = vst [vmem:[%s150 + $0x30] sm:$0xf] %v175
                %v177 = vld [vmem:[%s149 + $0x9c] sm:$0xf]
                %178 = vst [vmem:[%s150 + $0x34] sm:$0xf] %v177
                %v179 = vld [vmem:[%s149 + $0xa8] sm:$0xf]
                %180 = vst [vmem:[%s150 + $0x38] sm:$0xf] %v179
                %v181 = vld [vmem:[%s149 + $0xb4] sm:$0xf]
                %182 = vst [vmem:[%s150 + $0x3c] sm:$0xf] %v181
                %v183 = vld [vmem:[%s149 + $0xc0] sm:$0xf]
                %184 = vst [vmem:[%s150 + $0x40] sm:$0xf] %v183
                %v185 = vld [vmem:[%s149 + $0xcc] sm:$0xf]
                %186 = vst [vmem:[%s150 + $0x44] sm:$0xf] %v185
                %v187 = vld [vmem:[%s149 + $0xd8] sm:$0xf]
                %188 = vst [vmem:[%s150 + $0x48] sm:$0xf] %v187
                %v189 = vld [vmem:[%s149 + $0xe4] sm:$0xf]
                %190 = vst [vmem:[%s150 + $0x4c] sm:$0xf] %v189
                %v191 = vld [vmem:[%s149 + $0xf0] sm:$0xf]
                %192 = vst [vmem:[%s150 + $0x50] sm:$0xf] %v191
                %v193 = vld [vmem:[%s149 + $0xfc] sm:$0xf]
                %194 = vst [vmem:[%s150 + $0x54] sm:$0xf] %v193
                %v195 = vld [vmem:[%s149 + $0x108] sm:$0xf]
                %196 = vst [vmem:[%s150 + $0x58] sm:$0xf] %v195
                %v197 = vld [vmem:[%s149 + $0x114] sm:$0xf]
                %198 = vst [vmem:[%s150 + $0x5c] sm:$0xf] %v197
                %v199 = vld [vmem:[%s149 + $0x120] sm:$0xf]
                %200 = vst [vmem:[%s150 + $0x60] sm:$0xf] %v199
                %v201 = vld [vmem:[%s149 + $0x12c] sm:$0xf]
                %202 = vst [vmem:[%s150 + $0x64] sm:$0xf] %v201
                %v203 = vld [vmem:[%s149 + $0x138] sm:$0xf]
                %204 = vst [vmem:[%s150 + $0x68] sm:$0xf] %v203
                %v205 = vld [vmem:[%s149 + $0x144] sm:$0xf]
                %206 = vst [vmem:[%s150 + $0x6c] sm:$0xf] %v205
                %v207 = vld [vmem:[%s149 + $0x150] sm:$0xf]
                %208 = vst [vmem:[%s150 + $0x70] sm:$0xf] %v207
                %v209 = vld [vmem:[%s149 + $0x15c] sm:$0xf]
                %210 = vst [vmem:[%s150 + $0x74] sm:$0xf] %v209
                %v211 = vld [vmem:[%s149 + $0x168] sm:$0xf]
                %212 = vst [vmem:[%s150 + $0x78] sm:$0xf] %v211
                %v213 = vld [vmem:[%s149 + $0x174] sm:$0xf]
                %214 = vst [vmem:[%s150 + $0x7c] sm:$0xf] %v213
                %v215 = vld [vmem:[%s149 + $0x180] sm:$0xf]
                %216 = vst [vmem:[%s150 + $0x80] sm:$0xf] %v215
                %v217 = vld [vmem:[%s149 + $0x18c] sm:$0xf]
                %218 = vst [vmem:[%s150 + $0x84] sm:$0xf] %v217
                %v219 = vld [vmem:[%s149 + $0x198] sm:$0xf]
                %220 = vst [vmem:[%s150 + $0x88] sm:$0xf] %v219
                %v221 = vld [vmem:[%s149 + $0x1a4] sm:$0xf]
                %222 = vst [vmem:[%s150 + $0x8c] sm:$0xf] %v221
                %v223 = vld [vmem:[%s149 + $0x1b0] sm:$0xf]
                %224 = vst [vmem:[%s150 + $0x90] sm:$0xf] %v223
                %v225 = vld [vmem:[%s149 + $0x1bc] sm:$0xf]
                %226 = vst [vmem:[%s150 + $0x94] sm:$0xf] %v225
                %v227 = vld [vmem:[%s149 + $0x1c8] sm:$0xf]
                %228 = vst [vmem:[%s150 + $0x98] sm:$0xf] %v227
                %v229 = vld [vmem:[%s149 + $0x1d4] sm:$0xf]
                %230 = vst [vmem:[%s150 + $0x9c] sm:$0xf] %v229
                %v231 = vld [vmem:[%s149 + $0x1e0] sm:$0xf]
                %232 = vst [vmem:[%s150 + $0xa0] sm:$0xf] %v231
                %v233 = vld [vmem:[%s149 + $0x1ec] sm:$0xf]
                %234 = vst [vmem:[%s150 + $0xa4] sm:$0xf] %v233
                %v235 = vld [vmem:[%s149 + $0x1f8] sm:$0xf]
                %236 = vst [vmem:[%s150 + $0xa8] sm:$0xf] %v235
                %v237 = vld [vmem:[%s149 + $0x204] sm:$0xf]
                %238 = vst [vmem:[%s150 + $0xac] sm:$0xf] %v237
                %v239 = vld [vmem:[%s149 + $0x210] sm:$0xf]
                %240 = vst [vmem:[%s150 + $0xb0] sm:$0xf] %v239
                %v241 = vld [vmem:[%s149 + $0x21c] sm:$0xf]
                %242 = vst [vmem:[%s150 + $0xb4] sm:$0xf] %v241
                %v243 = vld [vmem:[%s149 + $0x228] sm:$0xf]
                %244 = vst [vmem:[%s150 + $0xb8] sm:$0xf] %v243
                %v245 = vld [vmem:[%s149 + $0x234] sm:$0xf]
                %246 = vst [vmem:[%s150 + $0xbc] sm:$0xf] %v245
                %v247 = vld [vmem:[%s149 + $0x240] sm:$0xf]
                %248 = vst [vmem:[%s150 + $0xc0] sm:$0xf] %v247
                %v249 = vld [vmem:[%s149 + $0x24c] sm:$0xf]
                %250 = vst [vmem:[%s150 + $0xc4] sm:$0xf] %v249
                %v251 = vld [vmem:[%s149 + $0x258] sm:$0xf]
                %252 = vst [vmem:[%s150 + $0xc8] sm:$0xf] %v251
                %v253 = vld [vmem:[%s149 + $0x264] sm:$0xf]
                %254 = vst [vmem:[%s150 + $0xcc] sm:$0xf] %v253
                %v255 = vld [vmem:[%s149 + $0x270] sm:$0xf]
                %256 = vst [vmem:[%s150 + $0xd0] sm:$0xf] %v255
                %v257 = vld [vmem:[%s149 + $0x27c] sm:$0xf]
                %258 = vst [vmem:[%s150 + $0xd4] sm:$0xf] %v257
                %v259 = vld [vmem:[%s149 + $0x288] sm:$0xf]
                %260 = vst [vmem:[%s150 + $0xd8] sm:$0xf] %v259
                %v261 = vld [vmem:[%s149 + $0x294] sm:$0xf]
                %262 = vst [vmem:[%s150 + $0xdc] sm:$0xf] %v261
                %v263 = vld [vmem:[%s149 + $0x2a0] sm:$0xf]
                %264 = vst [vmem:[%s150 + $0xe0] sm:$0xf] %v263
                %v265 = vld [vmem:[%s149 + $0x2ac] sm:$0xf]
                %266 = vst [vmem:[%s150 + $0xe4] sm:$0xf] %v265
                %v267 = vld [vmem:[%s149 + $0x2b8] sm:$0xf]
                %268 = vst [vmem:[%s150 + $0xe8] sm:$0xf] %v267
                %v269 = vld [vmem:[%s149 + $0x2c4] sm:$0xf]
                %270 = vst [vmem:[%s150 + $0xec] sm:$0xf] %v269
                %v271 = vld [vmem:[%s149 + $0x2d0] sm:$0xf]
                %272 = vst [vmem:[%s150 + $0xf0] sm:$0xf] %v271
                %v273 = vld [vmem:[%s149 + $0x2dc] sm:$0xf]
                %274 = vst [vmem:[%s150 + $0xf4] sm:$0xf] %v273
                %v275 = vld [vmem:[%s149 + $0x2e8] sm:$0xf]
                %276 = vst [vmem:[%s150 + $0xf8] sm:$0xf] %v275
                %v277 = vld [vmem:[%s149 + $0x2f4] sm:$0xf]
                %278 = vst [vmem:[%s150 + $0xfc] sm:$0xf] %v277
                %v279 = vld [vmem:[%s149 + $0x300] sm:$0xf]
                %280 = vst [vmem:[%s150 + $0x100] sm:$0xf] %v279
                %v281 = vld [vmem:[%s149 + $0x30c] sm:$0xf]
                %282 = vst [vmem:[%s150 + $0x104] sm:$0xf] %v281
                %v283 = vld [vmem:[%s149 + $0x318] sm:$0xf]
                %284 = vst [vmem:[%s150 + $0x108] sm:$0xf] %v283
                %v285 = vld [vmem:[%s149 + $0x324] sm:$0xf]
                %286 = vst [vmem:[%s150 + $0x10c] sm:$0xf] %v285
                %v287 = vld [vmem:[%s149 + $0x330] sm:$0xf]
                %288 = vst [vmem:[%s150 + $0x110] sm:$0xf] %v287
                %v289 = vld [vmem:[%s149 + $0x33c] sm:$0xf]
                %290 = vst [vmem:[%s150 + $0x114] sm:$0xf] %v289
                %v291 = vld [vmem:[%s149 + $0x348] sm:$0xf]
                %292 = vst [vmem:[%s150 + $0x118] sm:$0xf] %v291
                %v293 = vld [vmem:[%s149 + $0x354] sm:$0xf]
                %294 = vst [vmem:[%s150 + $0x11c] sm:$0xf] %v293
                %v295 = vld [vmem:[%s149 + $0x360] sm:$0xf]
                %296 = vst [vmem:[%s150 + $0x120] sm:$0xf] %v295
                %v297 = vld [vmem:[%s149 + $0x36c] sm:$0xf]
                %298 = vst [vmem:[%s150 + $0x124] sm:$0xf] %v297
                %v299 = vld [vmem:[%s149 + $0x378] sm:$0xf]
                %300 = vst [vmem:[%s150 + $0x128] sm:$0xf] %v299
                %v301 = vld [vmem:[%s149 + $0x384] sm:$0xf]
                %302 = vst [vmem:[%s150 + $0x12c] sm:$0xf] %v301
                %v303 = vld [vmem:[%s149 + $0x390] sm:$0xf]
                %304 = vst [vmem:[%s150 + $0x130] sm:$0xf] %v303
                %v305 = vld [vmem:[%s149 + $0x39c] sm:$0xf]
                %306 = vst [vmem:[%s150 + $0x134] sm:$0xf] %v305
                %v307 = vld [vmem:[%s149 + $0x3a8] sm:$0xf]
                %308 = vst [vmem:[%s150 + $0x138] sm:$0xf] %v307
                %v309 = vld [vmem:[%s149 + $0x3b4] sm:$0xf]
                %310 = vst [vmem:[%s150 + $0x13c] sm:$0xf] %v309
                %v311 = vld [vmem:[%s149 + $0x3c0] sm:$0xf]
                %312 = vst [vmem:[%s150 + $0x140] sm:$0xf] %v311
                %v313 = vld [vmem:[%s149 + $0x3cc] sm:$0xf]
                %314 = vst [vmem:[%s150 + $0x144] sm:$0xf] %v313
                %v315 = vld [vmem:[%s149 + $0x3d8] sm:$0xf]
                %316 = vst [vmem:[%s150 + $0x148] sm:$0xf] %v315
                %v317 = vld [vmem:[%s149 + $0x3e4] sm:$0xf]
                %318 = vst [vmem:[%s150 + $0x14c] sm:$0xf] %v317
                %v319 = vld [vmem:[%s149 + $0x3f0] sm:$0xf]
                %320 = vst [vmem:[%s150 + $0x150] sm:$0xf] %v319
                %v321 = vld [vmem:[%s149 + $0x3fc] sm:$0xf]
                %322 = vst [vmem:[%s150 + $0x154] sm:$0xf] %v321
                %v323 = vld [vmem:[%s149 + $0x408] sm:$0xf]
                %324 = vst [vmem:[%s150 + $0x158] sm:$0xf] %v323
                %v325 = vld [vmem:[%s149 + $0x414] sm:$0xf]
                %326 = vst [vmem:[%s150 + $0x15c] sm:$0xf] %v325
                %v327 = vld [vmem:[%s149 + $0x420] sm:$0xf]
                %328 = vst [vmem:[%s150 + $0x160] sm:$0xf] %v327
                %v329 = vld [vmem:[%s149 + $0x42c] sm:$0xf]
                %330 = vst [vmem:[%s150 + $0x164] sm:$0xf] %v329
                %v331 = vld [vmem:[%s149 + $0x438] sm:$0xf]
                %332 = vst [vmem:[%s150 + $0x168] sm:$0xf] %v331
                %v333 = vld [vmem:[%s149 + $0x444] sm:$0xf]
                %334 = vst [vmem:[%s150 + $0x16c] sm:$0xf] %v333
                %v335 = vld [vmem:[%s149 + $0x450] sm:$0xf]
                %336 = vst [vmem:[%s150 + $0x170] sm:$0xf] %v335
                %v337 = vld [vmem:[%s149 + $0x45c] sm:$0xf]
                %338 = vst [vmem:[%s150 + $0x174] sm:$0xf] %v337
                %v339 = vld [vmem:[%s149 + $0x468] sm:$0xf]
                %340 = vst [vmem:[%s150 + $0x178] sm:$0xf] %v339
                %v341 = vld [vmem:[%s149 + $0x474] sm:$0xf]
                %342 = vst [vmem:[%s150 + $0x17c] sm:$0xf] %v341
                %v343 = vld [vmem:[%s149 + $0x480] sm:$0xf]
                %344 = vst [vmem:[%s150 + $0x180] sm:$0xf] %v343
                %v345 = vld [vmem:[%s149 + $0x48c] sm:$0xf]
                %346 = vst [vmem:[%s150 + $0x184] sm:$0xf] %v345
                %v347 = vld [vmem:[%s149 + $0x498] sm:$0xf]
                %348 = vst [vmem:[%s150 + $0x188] sm:$0xf] %v347
                %v349 = vld [vmem:[%s149 + $0x4a4] sm:$0xf]
                %350 = vst [vmem:[%s150 + $0x18c] sm:$0xf] %v349
                %v351 = vld [vmem:[%s149 + $0x4b0] sm:$0xf]
                %352 = vst [vmem:[%s150 + $0x190] sm:$0xf] %v351
                %v353 = vld [vmem:[%s149 + $0x4bc] sm:$0xf]
                %354 = vst [vmem:[%s150 + $0x194] sm:$0xf] %v353
                %v355 = vld [vmem:[%s149 + $0x4c8] sm:$0xf]
                %356 = vst [vmem:[%s150 + $0x198] sm:$0xf] %v355
                %v357 = vld [vmem:[%s149 + $0x4d4] sm:$0xf]
                %358 = vst [vmem:[%s150 + $0x19c] sm:$0xf] %v357
                %v359 = vld [vmem:[%s149 + $0x4e0] sm:$0xf]
                %360 = vst [vmem:[%s150 + $0x1a0] sm:$0xf] %v359
                %v361 = vld [vmem:[%s149 + $0x4ec] sm:$0xf]
                %362 = vst [vmem:[%s150 + $0x1a4] sm:$0xf] %v361
                %v363 = vld [vmem:[%s149 + $0x4f8] sm:$0xf]
                %364 = vst [vmem:[%s150 + $0x1a8] sm:$0xf] %v363
                %v365 = vld [vmem:[%s149 + $0x504] sm:$0xf]
                %366 = vst [vmem:[%s150 + $0x1ac] sm:$0xf] %v365
                %v367 = vld [vmem:[%s149 + $0x510] sm:$0xf]
                %368 = vst [vmem:[%s150 + $0x1b0] sm:$0xf] %v367
                %v369 = vld [vmem:[%s149 + $0x51c] sm:$0xf]
                %370 = vst [vmem:[%s150 + $0x1b4] sm:$0xf] %v369
                %v371 = vld [vmem:[%s149 + $0x528] sm:$0xf]
                %372 = vst [vmem:[%s150 + $0x1b8] sm:$0xf] %v371
                %v373 = vld [vmem:[%s149 + $0x534] sm:$0xf]
                %374 = vst [vmem:[%s150 + $0x1bc] sm:$0xf] %v373
                %v375 = vld [vmem:[%s149 + $0x540] sm:$0xf]
                %376 = vst [vmem:[%s150 + $0x1c0] sm:$0xf] %v375
                %v377 = vld [vmem:[%s149 + $0x54c] sm:$0xf]
                %378 = vst [vmem:[%s150 + $0x1c4] sm:$0xf] %v377
                %v379 = vld [vmem:[%s149 + $0x558] sm:$0xf]
                %380 = vst [vmem:[%s150 + $0x1c8] sm:$0xf] %v379
                %v381 = vld [vmem:[%s149 + $0x564] sm:$0xf]
                %382 = vst [vmem:[%s150 + $0x1cc] sm:$0xf] %v381
                %v383 = vld [vmem:[%s149 + $0x570] sm:$0xf]
                %384 = vst [vmem:[%s150 + $0x1d0] sm:$0xf] %v383
                %v385 = vld [vmem:[%s149 + $0x57c] sm:$0xf]
                %386 = vst [vmem:[%s150 + $0x1d4] sm:$0xf] %v385
                %v387 = vld [vmem:[%s149 + $0x588] sm:$0xf]
                %388 = vst [vmem:[%s150 + $0x1d8] sm:$0xf] %v387
                %v389 = vld [vmem:[%s149 + $0x594] sm:$0xf]
                %390 = vst [vmem:[%s150 + $0x1dc] sm:$0xf] %v389
                %v391 = vld [vmem:[%s149 + $0x5a0] sm:$0xf]
                %392 = vst [vmem:[%s150 + $0x1e0] sm:$0xf] %v391
                %v393 = vld [vmem:[%s149 + $0x5ac] sm:$0xf]
                %394 = vst [vmem:[%s150 + $0x1e4] sm:$0xf] %v393
                %v395 = vld [vmem:[%s149 + $0x5b8] sm:$0xf]
                %396 = vst [vmem:[%s150 + $0x1e8] sm:$0xf] %v395
                %v397 = vld [vmem:[%s149 + $0x5c4] sm:$0xf]
                %398 = vst [vmem:[%s150 + $0x1ec] sm:$0xf] %v397
                %v399 = vld [vmem:[%s149 + $0x5d0] sm:$0xf]
                %400 = vst [vmem:[%s150 + $0x1f0] sm:$0xf] %v399
                %v401 = vld [vmem:[%s149 + $0x5dc] sm:$0xf]
                %402 = vst [vmem:[%s150 + $0x1f4] sm:$0xf] %v401
                %v403 = vld [vmem:[%s149 + $0x5e8] sm:$0xf]
                %404 = vst [vmem:[%s150 + $0x1f8] sm:$0xf] %v403
                %v405 = vld [vmem:[%s149 + $0x5f4] sm:$0xf]
                %406 = vst [vmem:[%s150 + $0x1fc] sm:$0xf] %v405
                %v407 = vld [vmem:[%s149 + $0x600] sm:$0xf]
                %408 = vst [vmem:[%s150 + $0x200] sm:$0xf] %v407
                %v409 = vld [vmem:[%s149 + $0x60c] sm:$0xf]
                %410 = vst [vmem:[%s150 + $0x204] sm:$0xf] %v409
                %v411 = vld [vmem:[%s149 + $0x618] sm:$0xf]
                %412 = vst [vmem:[%s150 + $0x208] sm:$0xf] %v411
                %v413 = vld [vmem:[%s149 + $0x624] sm:$0xf]
                %414 = vst [vmem:[%s150 + $0x20c] sm:$0xf] %v413
                %v415 = vld [vmem:[%s149 + $0x630] sm:$0xf]
                %416 = vst [vmem:[%s150 + $0x210] sm:$0xf] %v415
                %v417 = vld [vmem:[%s149 + $0x63c] sm:$0xf]
                %418 = vst [vmem:[%s150 + $0x214] sm:$0xf] %v417
                %v419 = vld [vmem:[%s149 + $0x648] sm:$0xf]
                %420 = vst [vmem:[%s150 + $0x218] sm:$0xf] %v419
                %v421 = vld [vmem:[%s149 + $0x654] sm:$0xf]
                %422 = vst [vmem:[%s150 + $0x21c] sm:$0xf] %v421
                %v423 = vld [vmem:[%s149 + $0x660] sm:$0xf]
                %424 = vst [vmem:[%s150 + $0x220] sm:$0xf] %v423
                %v425 = vld [vmem:[%s149 + $0x66c] sm:$0xf]
                %426 = vst [vmem:[%s150 + $0x224] sm:$0xf] %v425
                %v427 = vld [vmem:[%s149 + $0x678] sm:$0xf]
                %428 = vst [vmem:[%s150 + $0x228] sm:$0xf] %v427
                %v429 = vld [vmem:[%s149 + $0x684] sm:$0xf]
                %430 = vst [vmem:[%s150 + $0x22c] sm:$0xf] %v429
                %v431 = vld [vmem:[%s149 + $0x690] sm:$0xf]
                %432 = vst [vmem:[%s150 + $0x230] sm:$0xf] %v431
                %v433 = vld [vmem:[%s149 + $0x69c] sm:$0xf]
                %434 = vst [vmem:[%s150 + $0x234] sm:$0xf] %v433
                %v435 = vld [vmem:[%s149 + $0x6a8] sm:$0xf]
                %436 = vst [vmem:[%s150 + $0x238] sm:$0xf] %v435
                %v437 = vld [vmem:[%s149 + $0x6b4] sm:$0xf]
                %438 = vst [vmem:[%s150 + $0x23c] sm:$0xf] %v437
                %v439 = vld [vmem:[%s149 + $0x6c0] sm:$0xf]
                %440 = vst [vmem:[%s150 + $0x240] sm:$0xf] %v439
                %v441 = vld [vmem:[%s149 + $0x6cc] sm:$0xf]
                %442 = vst [vmem:[%s150 + $0x244] sm:$0xf] %v441
                %v443 = vld [vmem:[%s149 + $0x6d8] sm:$0xf]
                %444 = vst [vmem:[%s150 + $0x248] sm:$0xf] %v443
                %v445 = vld [vmem:[%s149 + $0x6e4] sm:$0xf]
                %446 = vst [vmem:[%s150 + $0x24c] sm:$0xf] %v445
                %v447 = vld [vmem:[%s149 + $0x6f0] sm:$0xf]
                %448 = vst [vmem:[%s150 + $0x250] sm:$0xf] %v447
                %v449 = vld [vmem:[%s149 + $0x6fc] sm:$0xf]
                %450 = vst [vmem:[%s150 + $0x254] sm:$0xf] %v449
                %v451 = vld [vmem:[%s149 + $0x708] sm:$0xf]
                %452 = vst [vmem:[%s150 + $0x258] sm:$0xf] %v451
                %v453 = vld [vmem:[%s149 + $0x714] sm:$0xf]
                %454 = vst [vmem:[%s150 + $0x25c] sm:$0xf] %v453
                %v455 = vld [vmem:[%s149 + $0x720] sm:$0xf]
                %456 = vst [vmem:[%s150 + $0x260] sm:$0xf] %v455
                %v457 = vld [vmem:[%s149 + $0x72c] sm:$0xf]
                %458 = vst [vmem:[%s150 + $0x264] sm:$0xf] %v457
                %v459 = vld [vmem:[%s149 + $0x738] sm:$0xf]
                %460 = vst [vmem:[%s150 + $0x268] sm:$0xf] %v459
                %v461 = vld [vmem:[%s149 + $0x744] sm:$0xf]
                %462 = vst [vmem:[%s150 + $0x26c] sm:$0xf] %v461
                %v463 = vld [vmem:[%s149 + $0x750] sm:$0xf]
                %464 = vst [vmem:[%s150 + $0x270] sm:$0xf] %v463
                %v465 = vld [vmem:[%s149 + $0x75c] sm:$0xf]
                %466 = vst [vmem:[%s150 + $0x274] sm:$0xf] %v465
                %v467 = vld [vmem:[%s149 + $0x768] sm:$0xf]
                %468 = vst [vmem:[%s150 + $0x278] sm:$0xf] %v467
                %v469 = vld [vmem:[%s149 + $0x774] sm:$0xf]
                %470 = vst [vmem:[%s150 + $0x27c] sm:$0xf] %v469
                %v471 = vld [vmem:[%s149 + $0x780] sm:$0xf]
                %472 = vst [vmem:[%s150 + $0x280] sm:$0xf] %v471
                %v473 = vld [vmem:[%s149 + $0x78c] sm:$0xf]
                %474 = vst [vmem:[%s150 + $0x284] sm:$0xf] %v473
                %v475 = vld [vmem:[%s149 + $0x798] sm:$0xf]
                %476 = vst [vmem:[%s150 + $0x288] sm:$0xf] %v475
                %v477 = vld [vmem:[%s149 + $0x7a4] sm:$0xf]
                %478 = vst [vmem:[%s150 + $0x28c] sm:$0xf] %v477
                %v479 = vld [vmem:[%s149 + $0x7b0] sm:$0xf]
                %480 = vst [vmem:[%s150 + $0x290] sm:$0xf] %v479
                %v481 = vld [vmem:[%s149 + $0x7bc] sm:$0xf]
                %482 = vst [vmem:[%s150 + $0x294] sm:$0xf] %v481
                %v483 = vld [vmem:[%s149 + $0x7c8] sm:$0xf]
                %484 = vst [vmem:[%s150 + $0x298] sm:$0xf] %v483
                %v485 = vld [vmem:[%s149 + $0x7d4] sm:$0xf]
                %486 = vst [vmem:[%s150 + $0x29c] sm:$0xf] %v485
                %v487 = vld [vmem:[%s149 + $0x7e0] sm:$0xf]
                %488 = vst [vmem:[%s150 + $0x2a0] sm:$0xf] %v487
                %v489 = vld [vmem:[%s149 + $0x7ec] sm:$0xf]
                %490 = vst [vmem:[%s150 + $0x2a4] sm:$0xf] %v489
                %v491 = vld [vmem:[%s149 + $0x7f8] sm:$0xf]
                %492 = vst [vmem:[%s150 + $0x2a8] sm:$0xf] %v491
                %v493 = vld [vmem:[%s149 + $0x804] sm:$0xf]
                %494 = vst [vmem:[%s150 + $0x2ac] sm:$0xf] %v493
                %v495 = vld [vmem:[%s149 + $0x810] sm:$0xf]
                %496 = vst [vmem:[%s150 + $0x2b0] sm:$0xf] %v495
                %v497 = vld [vmem:[%s149 + $0x81c] sm:$0xf]
                %498 = vst [vmem:[%s150 + $0x2b4] sm:$0xf] %v497
                %v499 = vld [vmem:[%s149 + $0x828] sm:$0xf]
                %500 = vst [vmem:[%s150 + $0x2b8] sm:$0xf] %v499
                %v501 = vld [vmem:[%s149 + $0x834] sm:$0xf]
                %502 = vst [vmem:[%s150 + $0x2bc] sm:$0xf] %v501
                %v503 = vld [vmem:[%s149 + $0x840] sm:$0xf]
                %504 = vst [vmem:[%s150 + $0x2c0] sm:$0xf] %v503
                %v505 = vld [vmem:[%s149 + $0x84c] sm:$0xf]
                %506 = vst [vmem:[%s150 + $0x2c4] sm:$0xf] %v505
                %v507 = vld [vmem:[%s149 + $0x858] sm:$0xf]
                %508 = vst [vmem:[%s150 + $0x2c8] sm:$0xf] %v507
                %v509 = vld [vmem:[%s149 + $0x864] sm:$0xf]
                %510 = vst [vmem:[%s150 + $0x2cc] sm:$0xf] %v509
                %v511 = vld [vmem:[%s149 + $0x870] sm:$0xf]
                %512 = vst [vmem:[%s150 + $0x2d0] sm:$0xf] %v511
                %v513 = vld [vmem:[%s149 + $0x87c] sm:$0xf]
                %514 = vst [vmem:[%s150 + $0x2d4] sm:$0xf] %v513
                %v515 = vld [vmem:[%s149 + $0x888] sm:$0xf]
                %516 = vst [vmem:[%s150 + $0x2d8] sm:$0xf] %v515
                %v517 = vld [vmem:[%s149 + $0x894] sm:$0xf]
                %518 = vst [vmem:[%s150 + $0x2dc] sm:$0xf] %v517
                %v519 = vld [vmem:[%s149 + $0x8a0] sm:$0xf]
                %520 = vst [vmem:[%s150 + $0x2e0] sm:$0xf] %v519
                %v521 = vld [vmem:[%s149 + $0x8ac] sm:$0xf]
                %522 = vst [vmem:[%s150 + $0x2e4] sm:$0xf] %v521
                %v523 = vld [vmem:[%s149 + $0x8b8] sm:$0xf]
                %524 = vst [vmem:[%s150 + $0x2e8] sm:$0xf] %v523
                %v525 = vld [vmem:[%s149 + $0x8c4] sm:$0xf]
                %526 = vst [vmem:[%s150 + $0x2ec] sm:$0xf] %v525
                %v527 = vld [vmem:[%s149 + $0x8d0] sm:$0xf]
                %528 = vst [vmem:[%s150 + $0x2f0] sm:$0xf] %v527
                %v529 = vld [vmem:[%s149 + $0x8dc] sm:$0xf]
                %530 = vst [vmem:[%s150 + $0x2f4] sm:$0xf] %v529
                %v531 = vld [vmem:[%s149 + $0x8e8] sm:$0xf]
                %532 = vst [vmem:[%s150 + $0x2f8] sm:$0xf] %v531
                %v533 = vld [vmem:[%s149 + $0x8f4] sm:$0xf]
                %534 = vst [vmem:[%s150 + $0x2fc] sm:$0xf] %v533
                %v535 = vld [vmem:[%s149 + $0x900] sm:$0xf]
                %536 = vst [vmem:[%s150 + $0x300] sm:$0xf] %v535
                %v537 = vld [vmem:[%s149 + $0x90c] sm:$0xf]
                %538 = vst [vmem:[%s150 + $0x304] sm:$0xf] %v537
                %v539 = vld [vmem:[%s149 + $0x918] sm:$0xf]
                %540 = vst [vmem:[%s150 + $0x308] sm:$0xf] %v539
                %v541 = vld [vmem:[%s149 + $0x924] sm:$0xf]
                %542 = vst [vmem:[%s150 + $0x30c] sm:$0xf] %v541
                %v543 = vld [vmem:[%s149 + $0x930] sm:$0xf]
                %544 = vst [vmem:[%s150 + $0x310] sm:$0xf] %v543
                %v545 = vld [vmem:[%s149 + $0x93c] sm:$0xf]
                %546 = vst [vmem:[%s150 + $0x314] sm:$0xf] %v545
                %v547 = vld [vmem:[%s149 + $0x948] sm:$0xf]
                %548 = vst [vmem:[%s150 + $0x318] sm:$0xf] %v547
                %v549 = vld [vmem:[%s149 + $0x954] sm:$0xf]
                %550 = vst [vmem:[%s150 + $0x31c] sm:$0xf] %v549
                %v551 = vld [vmem:[%s149 + $0x960] sm:$0xf]
                %552 = vst [vmem:[%s150 + $0x320] sm:$0xf] %v551
                %v553 = vld [vmem:[%s149 + $0x96c] sm:$0xf]
                %554 = vst [vmem:[%s150 + $0x324] sm:$0xf] %v553
                %v555 = vld [vmem:[%s149 + $0x978] sm:$0xf]
                %556 = vst [vmem:[%s150 + $0x328] sm:$0xf] %v555
                %v557 = vld [vmem:[%s149 + $0x984] sm:$0xf]
                %558 = vst [vmem:[%s150 + $0x32c] sm:$0xf] %v557
                %v559 = vld [vmem:[%s149 + $0x990] sm:$0xf]
                %560 = vst [vmem:[%s150 + $0x330] sm:$0xf] %v559
                %v561 = vld [vmem:[%s149 + $0x99c] sm:$0xf]
                %562 = vst [vmem:[%s150 + $0x334] sm:$0xf] %v561
                %v563 = vld [vmem:[%s149 + $0x9a8] sm:$0xf]
                %564 = vst [vmem:[%s150 + $0x338] sm:$0xf] %v563
                %v565 = vld [vmem:[%s149 + $0x9b4] sm:$0xf]
                %566 = vst [vmem:[%s150 + $0x33c] sm:$0xf] %v565
                %v567 = vld [vmem:[%s149 + $0x9c0] sm:$0xf]
                %568 = vst [vmem:[%s150 + $0x340] sm:$0xf] %v567
                %v569 = vld [vmem:[%s149 + $0x9cc] sm:$0xf]
                %570 = vst [vmem:[%s150 + $0x344] sm:$0xf] %v569
                %v571 = vld [vmem:[%s149 + $0x9d8] sm:$0xf]
                %572 = vst [vmem:[%s150 + $0x348] sm:$0xf] %v571
                %v573 = vld [vmem:[%s149 + $0x9e4] sm:$0xf]
                %574 = vst [vmem:[%s150 + $0x34c] sm:$0xf] %v573
                %v575 = vld [vmem:[%s149 + $0x9f0] sm:$0xf]
                %576 = vst [vmem:[%s150 + $0x350] sm:$0xf] %v575
                %v577 = vld [vmem:[%s149 + $0x9fc] sm:$0xf]
                %578 = vst [vmem:[%s150 + $0x354] sm:$0xf] %v577
                %v579 = vld [vmem:[%s149 + $0xa08] sm:$0xf]
                %580 = vst [vmem:[%s150 + $0x358] sm:$0xf] %v579
                %v581 = vld [vmem:[%s149 + $0xa14] sm:$0xf]
                %582 = vst [vmem:[%s150 + $0x35c] sm:$0xf] %v581
              $region41: #{conv2d_3x3_s2.1} parent=35 // loop_footer
                %s148 = sadd.s32 1, %s144
              $region42: #{conv2d_3x3_s2.1} parent=35 // loop_footer_branch
                %143 = sbr.rel target = $region38
              $region43: #{conv2d_3x3_s2.1} parent=35 // loop_exit
                _
            $region36: #{conv2d_3x3_s2.1} parent=27 // pred_fallthru
              _
          $region28: #{conv2d_3x3_s2.1} parent=23 // pred_fallthru
            _
          %1034 = vnop
        $region24: #{conv2d_3x3_s2.1} parent=19 // pred_fallthru
          _
      $region20: #{conv2d_3x3_s2.1} parent=5 // pred_fallthru
        _
      %p1035 = scmp.le.s32.totalorder 1, %s8
      %p1036 = scmp.lt.s32.totalorder %s8, 4
      %p1037 = pnand %p1035, %p1036
      %p1038 = pneg %p1037
      // Predicated region
      $region62: #{conv2d_3x3_s2.1} parent=5 // pred_check
        _
      $region63: #{conv2d_3x3_s2.1} parent=5 // pred_check_branch
        %1040 = sbr.rel (%p1037) target = $region65
      $region64: #{conv2d_3x3_s2.1} parent=5 // pred_region
        %s1041 = ssub.s32 %s8, 1
        %s1042 = sand.u32 %s59, 1
        %s1043 = sand.u32 %s59, 1
        %s1044 = smul.addr %s1043, 864
        %s1045 = scalar_lea.vmem [#allocation2], %s1044
        // Predicated region
        $region66: #{conv2d_3x3_s2.1} parent=64 // pred_check
          %p1046 = pneg %p72
        $region67: #{conv2d_3x3_s2.1} parent=64 // pred_check_branch
          %1048 = sbr.rel (%p1046) target = $region69
        $region68: #{conv2d_3x3_s2.1} parent=64 // pred_region
          _
        $region69: #{conv2d_3x3_s2.1} parent=64 // pred_fallthru
          _
        %p1049 = scmp.lt.s32.totalorder %s17, 0
        %s1050 = scalar_select %p1049, %s17, 0
        %s1051 = smul.addr %s1050, 64
        %s1052 = smul.addr %s1051, 8
        %s1053 = scalar_lea.vmem %s0, %s1052
        %p1054 = pneg %p46
        %p1055 = pneg %p43
        %s1056 = sand.u32 %s59, 1
        %s1057 = sand.u32 %s59, 1
        %s1058 = smul.addr %s1057, 864
        %s1059 = scalar_lea.vmem [#allocation2], %s1058
        %p1060 = pneg %p72
        %p1061 = pneg %p69
        %p1062 = pneg %p100
        %p1063 = pneg %p97
        %s1064 = sand.u32 %s87, 1
        %s1065 = sand.u32 %s87, 1
        %s1066 = smul.addr %s1065, 40
        %s1067 = scalar_lea.vmem [#allocation3], %s1066
        %p1068 = scmp.lt.s32.totalorder %s17, 0
        %s1069 = scalar_select %p1068, %s17, 0
        %s1070 = smul.addr %s1069, 64
        %s1071 = smul.addr %s1070, 8
        %s1072 = scalar_lea.vmem %s0, %s1071
        %v1074 = vld [vmem:[%s1072] sm:$0xff]
        %v1075 = vld [vmem:[%s1072 + $0x8] sm:$0xff]
        %v1076 = vld [vmem:[%s1072 + $0x10] sm:$0xff]
        %v1077 = vld [vmem:[%s1072 + $0x18] sm:$0xff]
        %v1078 = vld [vmem:[%s1072 + $0x20] sm:$0xff]
        %v1079 = vld [vmem:[%s1072 + $0x28] sm:$0xff]
        %v1080 = vld [vmem:[%s1072 + $0x30] sm:$0xff]
        %v1081 = vld [vmem:[%s1072 + $0x38] sm:$0xff]
        %v1082 = vld [vmem:[%s1072 + $0x40] sm:$0xff]
        %v1083 = vld [vmem:[%s1072 + $0x48] sm:$0xff]
        %v1084 = vld [vmem:[%s1045] sm:$0xf]
        %v1085 = vld [vmem:[%s1045 + $0x4] sm:$0xf]
        %v1086 = vld [vmem:[%s1045 + $0x8] sm:$0xf]
        %v1087 = vld [vmem:[%s1045 + $0xc] sm:$0xf]
        %v1088 = vld [vmem:[%s1045 + $0x10] sm:$0xf]
        %v1089 = vld [vmem:[%s1045 + $0x14] sm:$0xf]
        %v1090 = vld [vmem:[%s1045 + $0x18] sm:$0xf]
        %v1091 = vld [vmem:[%s1045 + $0x1c] sm:$0xf]
        %v1092 = vld [vmem:[%s1045 + $0x20] sm:$0xf]
        %v1093 = vld [vmem:[%s1045 + $0x24] sm:$0xf]
        %v1094 = vld [vmem:[%s1045 + $0x28] sm:$0xf]
        %v1095 = vld [vmem:[%s1045 + $0x2c] sm:$0xf]
        %v1096 = vld [vmem:[%s1045 + $0x30] sm:$0xf]
        %v1097 = vld [vmem:[%s1045 + $0x34] sm:$0xf]
        %v1098 = vld [vmem:[%s1045 + $0x38] sm:$0xf]
        %v1099 = vld [vmem:[%s1045 + $0x3c] sm:$0xf]
        %v1100 = vld [vmem:[%s1045 + $0x40] sm:$0xf]
        %v1101 = vld [vmem:[%s1045 + $0x44] sm:$0xf]
        %v1102 = vld [vmem:[%s1045 + $0x48] sm:$0xf]
        %v1103 = vld [vmem:[%s1045 + $0x4c] sm:$0xf]
        %v1104 = vld [vmem:[%s1045 + $0x50] sm:$0xf]
        %v1105 = vld [vmem:[%s1045 + $0x54] sm:$0xf]
        %v1106 = vld [vmem:[%s1045 + $0x58] sm:$0xf]
        %v1107 = vld [vmem:[%s1045 + $0x5c] sm:$0xf]
        %v1108 = vpack.c.bf16 %v1076, %v1074
        %v1109 = vpack.c.bf16 %v1077, %v1075
        %v1110 = vpack.c.bf16 %v1080, %v1078
        %v1111 = vpack.c.bf16 %v1081, %v1079
        %v1112 = vpack.c.bf16 %v1082, %v1082
        %v1113 = vpack.c.bf16 %v1083, %v1083
        %s1114 = scalar_lea.vmem %s1072, 128
        %v1115 = vld [vmem:[%s1114] sm:$0xff]
        %v1116 = vld [vmem:[%s1114 + $0x8] sm:$0xff]
        %v1117 = vld [vmem:[%s1114 + $0x10] sm:$0xff]
        %v1118 = vld [vmem:[%s1114 + $0x18] sm:$0xff]
        %v1119 = vld [vmem:[%s1114 + $0x20] sm:$0xff]
        %v1120 = vld [vmem:[%s1114 + $0x28] sm:$0xff]
        %v1121 = vld [vmem:[%s1114 + $0x30] sm:$0xff]
        %v1122 = vld [vmem:[%s1114 + $0x38] sm:$0xff]
        %v1123 = vld [vmem:[%s1114 + $0x40] sm:$0xff]
        %v1124 = vld [vmem:[%s1114 + $0x48] sm:$0xff]
        %v1125 = vld [vmem:[%s1045 + $0x60] sm:$0xf]
        %v1126 = vld [vmem:[%s1045 + $0x64] sm:$0xf]
        %v1127 = vld [vmem:[%s1045 + $0x68] sm:$0xf]
        %v1128 = vld [vmem:[%s1045 + $0x6c] sm:$0xf]
        %v1129 = vld [vmem:[%s1045 + $0x70] sm:$0xf]
        %v1130 = vld [vmem:[%s1045 + $0x74] sm:$0xf]
        %v1131 = vld [vmem:[%s1045 + $0x78] sm:$0xf]
        %v1132 = vld [vmem:[%s1045 + $0x7c] sm:$0xf]
        %v1133 = vld [vmem:[%s1045 + $0x80] sm:$0xf]
        %v1134 = vld [vmem:[%s1045 + $0x84] sm:$0xf]
        %v1135 = vld [vmem:[%s1045 + $0x88] sm:$0xf]
        %v1136 = vld [vmem:[%s1045 + $0x8c] sm:$0xf]
        %v1137 = vld [vmem:[%s1045 + $0x90] sm:$0xf]
        %v1138 = vld [vmem:[%s1045 + $0x94] sm:$0xf]
        %v1139 = vld [vmem:[%s1045 + $0x98] sm:$0xf]
        %v1140 = vld [vmem:[%s1045 + $0x9c] sm:$0xf]
        %v1141 = vld [vmem:[%s1045 + $0xa0] sm:$0xf]
        %v1142 = vld [vmem:[%s1045 + $0xa4] sm:$0xf]
        %v1143 = vld [vmem:[%s1045 + $0xa8] sm:$0xf]
        %v1144 = vld [vmem:[%s1045 + $0xac] sm:$0xf]
        %v1145 = vld [vmem:[%s1045 + $0xb0] sm:$0xf]
        %v1146 = vld [vmem:[%s1045 + $0xb4] sm:$0xf]
        %v1147 = vld [vmem:[%s1045 + $0xb8] sm:$0xf]
        %v1148 = vld [vmem:[%s1045 + $0xbc] sm:$0xf]
        %v1149 = vpack.c.bf16 %v1117, %v1115
        %v1150 = vpack.c.bf16 %v1118, %v1116
        %v1151 = vpack.c.bf16 %v1121, %v1119
        %v1152 = vpack.c.bf16 %v1122, %v1120
        %v1153 = vpack.c.bf16 %v1123, %v1123
        %v1154 = vpack.c.bf16 %v1124, %v1124
        %v1179 = vunpack.c.l.b16 %v1125
        %v1180 = vunpack.c.l.b16 %v1126
        %v1181 = vunpack.c.l.b16 %v1127
        %v1182 = vunpack.c.l.b16 %v1128
        %v1183 = vunpack.c.l.b16 %v1129
        %v1184 = vunpack.c.l.b16 %v1130
        %v1185 = vunpack.c.l.b16 %v1131
        %v1186 = vunpack.c.l.b16 %v1132
        %v1187 = vunpack.c.l.b16 %v1133
        %v1188 = vunpack.c.l.b16 %v1134
        %v1189 = vunpack.c.l.b16 %v1135
        %v1190 = vunpack.c.l.b16 %v1136
        %v1191 = vunpack.c.l.b16 %v1137
        %v1192 = vunpack.c.l.b16 %v1138
        %v1193 = vunpack.c.l.b16 %v1139
        %v1194 = vunpack.c.l.b16 %v1140
        %v1195 = vunpack.c.l.b16 %v1141
        %v1196 = vunpack.c.l.b16 %v1142
        %v1197 = vunpack.c.l.b16 %v1143
        %v1198 = vunpack.c.l.b16 %v1144
        %v1199 = vunpack.c.l.b16 %v1145
        %v1200 = vunpack.c.l.b16 %v1146
        %v1201 = vunpack.c.l.b16 %v1147
        %v1202 = vunpack.c.l.b16 %v1148
        %v1203 = vpack.c.b16 %v1180, %v1179
        %v1204 = vpack.c.b16 %v1182, %v1181
        %v1205 = vpack.c.b16 %v1184, %v1183
        %v1206 = vpack.c.b16 %v1186, %v1185
        %v1207 = vpack.c.b16 %v1188, %v1187
        %v1208 = vpack.c.b16 %v1190, %v1189
        %v1209 = vpack.c.b16 %v1192, %v1191
        %v1210 = vpack.c.b16 %v1194, %v1193
        %v1211 = vpack.c.b16 %v1196, %v1195
        %v1212 = vpack.c.b16 %v1198, %v1197
        %v1213 = vpack.c.b16 %v1200, %v1199
        %v1214 = vpack.c.b16 %v1202, %v1201
        %vm1227 = vcmask 523264
        %v1229 = vsel %vm1227, %v1150, 0
        %v1232 = vsel %vm1227, %v1152, 0
        %v1235 = vsel %vm1227, %v1154, 0
        %1237 = vmatprep.subr.bf16.mxu0 0
        %1238 = vmatpush1.bf16.msra.mxu0 %v1203
        %1239 = vmatprep.subr.bf16.mxu0 0
        %1240 = vmatpush1.bf16.msra.mxu0 %v1204
        %1241 = vmatprep.subr.bf16.mxu0 0
        %1242 = vmatpush1.bf16.msra.mxu0 %v1205
        %1243 = vmatprep.subr.bf16.mxu0 0
        %1244 = vmatpush1.bf16.msra.mxu0 %v1206
        %1245 = vmatprep.subr.bf16.mxu0 0
        %1246 = vmatpush1.bf16.msra.mxu0 %v1207
        %1247 = vmatprep.subr.bf16.mxu0 0
        %1248 = vmatpush1.bf16.msra.mxu0 %v1208
        %1249 = vmatprep.subr.bf16.mxu0 0
        %1250 = vmatpush1.bf16.msra.mxu0 %v1209
        %1251 = vmatprep.subr.bf16.mxu0 0
        %1252 = vmatpush1.bf16.msra.mxu0 %v1210
        %1253 = vmatprep.subr.bf16.mxu0 0
        %1254 = vmatpush1.bf16.msra.mxu0 %v1211
        %1255 = vmatprep.subr.bf16.mxu0 0
        %1256 = vmatpush1.bf16.msra.mxu0 %v1212
        %1257 = vmatprep.subr.bf16.mxu0 0
        %1258 = vmatpush1.bf16.msra.mxu0 %v1213
        %1259 = vmatprep.subr.bf16.mxu0 0
        %1260 = vmatpush1.bf16.msra.mxu0 %v1214
        %1261 = vmatprep.subr.bf16.mxu0 0
        %1262 = vmatpush1.bf16.msra.mxu0 0
        %1263 = vmatprep.subr.bf16.mxu0 0
        %1264 = vmatpush1.bf16.msra.mxu0 0
        %1265 = vmatprep.subr.bf16.mxu0 0
        %1266 = vmatpush1.bf16.msra.mxu0 0
        %1267 = vmatprep.subr.bf16.mxu0 0
        %1268 = vmatpush1.bf16.msra.mxu0 0
        %1269 = vmatprep.mubr.bf16.mxu0 %v1229
        %1270 = vmatmul.mubr.bf16.gmra.mrb[0].mxu0 %v1149
        %v1271 = vpop.f32.mrb[0].mxu0
        %v1272 = vadd.f32 0.0, %v1271
        %v1273 = vpop.f32.mrb[0].mxu0
        %v1274 = vpop.f32.mrb[0].mxu0
        %v1275 = vadd.f32 0.0, %v1274
        %v1276 = vpop.f32.mrb[0].mxu0
        %1277 = vmatprep.mubr.bf16.mxu0 %v1232
        %1278 = vmatmul.mubr.bf16.gmra.mrb[0].mxu0 %v1151
        %v1279 = vpop.f32.mrb[0].mxu0
        %v1280 = vadd.f32 0.0, %v1279
        %v1281 = vpop.f32.mrb[0].mxu0
        %v1282 = vpop.f32.mrb[0].mxu0
        %v1283 = vadd.f32 0.0, %v1282
        %v1284 = vpop.f32.mrb[0].mxu0
        %1285 = vmatprep.mubr.bf16.mxu0 %v1235
        %1286 = vmatmul.mubr.bf16.gmra.mrb[0].mxu0 %v1153
        %v1287 = vpop.f32.mrb[0].mxu0
        %v1288 = vadd.f32 0.0, %v1287
        %v1289 = vpop.f32.mrb[0].mxu0
        %v1290 = vpop.f32.mrb[0].mxu0
        %v1291 = vpop.f32.mrb[0].mxu0
        %1292 = vdwg.mxu0
        %v1317 = vunpack.c.l.b16 %v1084
        %v1318 = vunpack.c.l.b16 %v1085
        %v1319 = vunpack.c.l.b16 %v1086
        %v1320 = vunpack.c.l.b16 %v1087
        %v1321 = vunpack.c.l.b16 %v1088
        %v1322 = vunpack.c.l.b16 %v1089
        %v1323 = vunpack.c.l.b16 %v1090
        %v1324 = vunpack.c.l.b16 %v1091
        %v1325 = vunpack.c.l.b16 %v1092
        %v1326 = vunpack.c.l.b16 %v1093
        %v1327 = vunpack.c.l.b16 %v1094
        %v1328 = vunpack.c.l.b16 %v1095
        %v1329 = vunpack.c.l.b16 %v1096
        %v1330 = vunpack.c.l.b16 %v1097
        %v1331 = vunpack.c.l.b16 %v1098
        %v1332 = vunpack.c.l.b16 %v1099
        %v1333 = vunpack.c.l.b16 %v1100
        %v1334 = vunpack.c.l.b16 %v1101
        %v1335 = vunpack.c.l.b16 %v1102
        %v1336 = vunpack.c.l.b16 %v1103
        %v1337 = vunpack.c.l.b16 %v1104
        %v1338 = vunpack.c.l.b16 %v1105
        %v1339 = vunpack.c.l.b16 %v1106
        %v1340 = vunpack.c.l.b16 %v1107
        %v1341 = vpack.c.b16 %v1318, %v1317
        %v1342 = vpack.c.b16 %v1320, %v1319
        %v1343 = vpack.c.b16 %v1322, %v1321
        %v1344 = vpack.c.b16 %v1324, %v1323
        %v1345 = vpack.c.b16 %v1326, %v1325
        %v1346 = vpack.c.b16 %v1328, %v1327
        %v1347 = vpack.c.b16 %v1330, %v1329
        %v1348 = vpack.c.b16 %v1332, %v1331
        %v1349 = vpack.c.b16 %v1334, %v1333
        %v1350 = vpack.c.b16 %v1336, %v1335
        %v1351 = vpack.c.b16 %v1338, %v1337
        %v1352 = vpack.c.b16 %v1340, %v1339
        %v1366 = vsel %vm1227, %v1109, 0
        %v1369 = vsel %vm1227, %v1111, 0
        %v1372 = vsel %vm1227, %v1113, 0
        %1374 = vmatprep.subr.bf16.mxu0 0
        %1375 = vmatpush1.bf16.msra.mxu0 %v1341
        %1376 = vmatprep.subr.bf16.mxu0 0
        %1377 = vmatpush1.bf16.msra.mxu0 %v1342
        %1378 = vmatprep.subr.bf16.mxu0 0
        %1379 = vmatpush1.bf16.msra.mxu0 %v1343
        %1380 = vmatprep.subr.bf16.mxu0 0
        %1381 = vmatpush1.bf16.msra.mxu0 %v1344
        %1382 = vmatprep.subr.bf16.mxu0 0
        %1383 = vmatpush1.bf16.msra.mxu0 %v1345
        %1384 = vmatprep.subr.bf16.mxu0 0
        %1385 = vmatpush1.bf16.msra.mxu0 %v1346
        %1386 = vmatprep.subr.bf16.mxu0 0
        %1387 = vmatpush1.bf16.msra.mxu0 %v1347
        %1388 = vmatprep.subr.bf16.mxu0 0
        %1389 = vmatpush1.bf16.msra.mxu0 %v1348
        %1390 = vmatprep.subr.bf16.mxu0 0
        %1391 = vmatpush1.bf16.msra.mxu0 %v1349
        %1392 = vmatprep.subr.bf16.mxu0 0
        %1393 = vmatpush1.bf16.msra.mxu0 %v1350
        %1394 = vmatprep.subr.bf16.mxu0 0
        %1395 = vmatpush1.bf16.msra.mxu0 %v1351
        %1396 = vmatprep.subr.bf16.mxu0 0
        %1397 = vmatpush1.bf16.msra.mxu0 %v1352
        %1398 = vmatprep.subr.bf16.mxu0 0
        %1399 = vmatpush1.bf16.msra.mxu0 0
        %1400 = vmatprep.subr.bf16.mxu0 0
        %1401 = vmatpush1.bf16.msra.mxu0 0
        %1402 = vmatprep.subr.bf16.mxu0 0
        %1403 = vmatpush1.bf16.msra.mxu0 0
        %1404 = vmatprep.subr.bf16.mxu0 0
        %1405 = vmatpush1.bf16.msra.mxu0 0
        %1406 = vmatprep.mubr.bf16.mxu0 %v1366
        %1407 = vmatmul.mubr.bf16.gmra.mrb[0].mxu0 %v1108
        %v1408 = vpop.f32.mrb[0].mxu0
        %v1409 = vadd.f32 %v1272, %v1408
        %v1410 = vpop.f32.mrb[0].mxu0
        %v1411 = vpop.f32.mrb[0].mxu0
        %v1412 = vadd.f32 %v1275, %v1411
        %v1413 = vpop.f32.mrb[0].mxu0
        %1414 = vmatprep.mubr.bf16.mxu0 %v1369
        %1415 = vmatmul.mubr.bf16.gmra.mrb[0].mxu0 %v1110
        %v1416 = vpop.f32.mrb[0].mxu0
        %v1417 = vadd.f32 %v1280, %v1416
        %v1418 = vpop.f32.mrb[0].mxu0
        %v1419 = vpop.f32.mrb[0].mxu0
        %v1420 = vadd.f32 %v1283, %v1419
        %v1421 = vpop.f32.mrb[0].mxu0
        %1422 = vmatprep.mubr.bf16.mxu0 %v1372
        %1423 = vmatmul.mubr.bf16.gmra.mrb[0].mxu0 %v1112
        %v1424 = vpop.f32.mrb[0].mxu0
        %v1425 = vadd.f32 %v1288, %v1424
        %v1426 = vpop.f32.mrb[0].mxu0
        %v1427 = vpop.f32.mrb[0].mxu0
        %v1428 = vpop.f32.mrb[0].mxu0
        %1429 = vdwg.mxu0
        %v1430 = vld [vmem:[%s1072] sm:$0xfe]
        %v1431 = vld [vmem:[%s1072 + $0x8] sm:$0xfe]
        %v1432 = vld [vmem:[%s1072 + $0x10] sm:$0xff]
        %v1433 = vld [vmem:[%s1072 + $0x18] sm:$0xff]
        %v1434 = vld [vmem:[%s1072 + $0x20] sm:$0xff]
        %v1435 = vld [vmem:[%s1072 + $0x28] sm:$0xff]
        %v1436 = vld [vmem:[%s1072 + $0x30] sm:$0xff]
        %v1437 = vld [vmem:[%s1072 + $0x38] sm:$0xff]
        %v1438 = vld [vmem:[%s1072 + $0x40] sm:$0xff]
        %v1439 = vld [vmem:[%s1072 + $0x48] sm:$0xff]
        %v1440 = vld [vmem:[%s1072 + $0x50] sm:$0x1]
        %v1441 = vld [vmem:[%s1072 + $0x58] sm:$0x1]
        %v1442 = vld [vmem:[%s1045 + $0xc0] sm:$0xf]
        %v1443 = vld [vmem:[%s1045 + $0xc4] sm:$0xf]
        %v1444 = vld [vmem:[%s1045 + $0xc8] sm:$0xf]
        %v1445 = vld [vmem:[%s1045 + $0xcc] sm:$0xf]
        %v1446 = vld [vmem:[%s1045 + $0xd0] sm:$0xf]
        %v1447 = vld [vmem:[%s1045 + $0xd4] sm:$0xf]
        %v1448 = vld [vmem:[%s1045 + $0xd8] sm:$0xf]
        %v1449 = vld [vmem:[%s1045 + $0xdc] sm:$0xf]
        %v1450 = vld [vmem:[%s1045 + $0xe0] sm:$0xf]
        %v1451 = vld [vmem:[%s1045 + $0xe4] sm:$0xf]
        %v1452 = vld [vmem:[%s1045 + $0xe8] sm:$0xf]
        %v1453 = vld [vmem:[%s1045 + $0xec] sm:$0xf]
        %v1454 = vld [vmem:[%s1045 + $0xf0] sm:$0xf]
        %v1455 = vld [vmem:[%s1045 + $0xf4] sm:$0xf]
        %v1456 = vld [vmem:[%s1045 + $0xf8] sm:$0xf]
        %v1457 = vld [vmem:[%s1045 + $0xfc] sm:$0xf]
        %v1458 = vld [vmem:[%s1045 + $0x100] sm:$0xf]
        %v1459 = vld [vmem:[%s1045 + $0x104] sm:$0xf]
        %v1460 = vld [vmem:[%s1045 + $0x108] sm:$0xf]
        %v1461 = vld [vmem:[%s1045 + $0x10c] sm:$0xf]
        %v1462 = vld [vmem:[%s1045 + $0x110] sm:$0xf]
        %v1463 = vld [vmem:[%s1045 + $0x114] sm:$0xf]
        %v1464 = vld [vmem:[%s1045 + $0x118] sm:$0xf]
        %v1465 = vld [vmem:[%s1045 + $0x11c] sm:$0xf]
        %v1466 = vpack.c.bf16 %v1432, %v1430
        %v1467 = vpack.c.bf16 %v1433, %v1431
        %v1468 = vpack.c.bf16 %v1436, %v1434
        %v1469 = vpack.c.bf16 %v1437, %v1435
        %v1470 = vpack.c.bf16 %v1440, %v1438
        %v1471 = vpack.c.bf16 %v1441, %v1439
        %vm1472 = vsmask.f32 7424
        %v1474 = vshrl.u32 %v1466, 16
        %v1476 = vshll.u32 %v1466, 16
        %v1478 = vrot.slane %v1476, 1
        %v1479 = vor.u32 %v1474, %v1478
        %v1481 = vshll.u32 %v1468, 16
        %v1483 = vrot.slane %v1481, 1
        %v1484 = vsel %vm1472, %v1479, %v1483
        %v1486 = vshrl.u32 %v1467, 16
        %v1488 = vshll.u32 %v1467, 16
        %v1490 = vrot.slane %v1488, 1
        %v1491 = vor.u32 %v1486, %v1490
        %v1493 = vshll.u32 %v1469, 16
        %v1495 = vrot.slane %v1493, 1
        %v1496 = vsel %vm1472, %v1491, %v1495
        %v1497 = vshrl.u32 %v1468, 16
        %v1499 = vor.u32 %v1497, %v1483
        %v1501 = vshll.u32 %v1470, 16
        %v1503 = vrot.slane %v1501, 1
        %v1504 = vsel %vm1472, %v1499, %v1503
        %v1505 = vshrl.u32 %v1469, 16
        %v1507 = vor.u32 %v1505, %v1495
        %v1509 = vshll.u32 %v1471, 16
        %v1511 = vrot.slane %v1509, 1
        %v1512 = vsel %vm1472, %v1507, %v1511
        %v1513 = vshrl.u32 %v1470, 16
        %v1515 = vor.u32 %v1513, %v1503
        %v1516 = vshrl.u32 %v1471, 16
        %v1518 = vor.u32 %v1516, %v1511
        %v1546 = vunpack.c.l.b16 %v1442
        %v1547 = vunpack.c.l.b16 %v1443
        %v1548 = vunpack.c.l.b16 %v1444
        %v1549 = vunpack.c.l.b16 %v1445
        %v1550 = vunpack.c.l.b16 %v1446
        %v1551 = vunpack.c.l.b16 %v1447
        %v1552 = vunpack.c.l.b16 %v1448
        %v1553 = vunpack.c.l.b16 %v1449
        %v1554 = vunpack.c.l.b16 %v1450
        %v1555 = vunpack.c.l.b16 %v1451
        %v1556 = vunpack.c.l.b16 %v1452
        %v1557 = vunpack.c.l.b16 %v1453
        %v1558 = vunpack.c.l.b16 %v1454
        %v1559 = vunpack.c.l.b16 %v1455
        %v1560 = vunpack.c.l.b16 %v1456
        %v1561 = vunpack.c.l.b16 %v1457
        %v1562 = vunpack.c.l.b16 %v1458
        %v1563 = vunpack.c.l.b16 %v1459
        %v1564 = vunpack.c.l.b16 %v1460
        %v1565 = vunpack.c.l.b16 %v1461
        %v1566 = vunpack.c.l.b16 %v1462
        %v1567 = vunpack.c.l.b16 %v1463
        %v1568 = vunpack.c.l.b16 %v1464
        %v1569 = vunpack.c.l.b16 %v1465
        %v1570 = vpack.c.b16 %v1547, %v1546
        %v1571 = vpack.c.b16 %v1549, %v1548
        %v1572 = vpack.c.b16 %v1551, %v1550
        %v1573 = vpack.c.b16 %v1553, %v1552
        %v1574 = vpack.c.b16 %v1555, %v1554
        %v1575 = vpack.c.b16 %v1557, %v1556
        %v1576 = vpack.c.b16 %v1559, %v1558
        %v1577 = vpack.c.b16 %v1561, %v1560
        %v1578 = vpack.c.b16 %v1563, %v1562
        %v1579 = vpack.c.b16 %v1565, %v1564
        %v1580 = vpack.c.b16 %v1567, %v1566
        %v1581 = vpack.c.b16 %v1569, %v1568
        %v1595 = vsel %vm1227, %v1496, 0
        %v1598 = vsel %vm1227, %v1512, 0
        %v1601 = vsel %vm1227, %v1518, 0
        %1603 = vmatprep.subr.bf16.mxu0 0
        %1604 = vmatpush1.bf16.msra.mxu0 %v1570
        %1605 = vmatprep.subr.bf16.mxu0 0
        %1606 = vmatpush1.bf16.msra.mxu0 %v1571
        %1607 = vmatprep.subr.bf16.mxu0 0
        %1608 = vmatpush1.bf16.msra.mxu0 %v1572
        %1609 = vmatprep.subr.bf16.mxu0 0
        %1610 = vmatpush1.bf16.msra.mxu0 %v1573
        %1611 = vmatprep.subr.bf16.mxu0 0
        %1612 = vmatpush1.bf16.msra.mxu0 %v1574
        %1613 = vmatprep.subr.bf16.mxu0 0
        %1614 = vmatpush1.bf16.msra.mxu0 %v1575
        %1615 = vmatprep.subr.bf16.mxu0 0
        %1616 = vmatpush1.bf16.msra.mxu0 %v1576
        %1617 = vmatprep.subr.bf16.mxu0 0
        %1618 = vmatpush1.bf16.msra.mxu0 %v1577
        %1619 = vmatprep.subr.bf16.mxu0 0
        %1620 = vmatpush1.bf16.msra.mxu0 %v1578
        %1621 = vmatprep.subr.bf16.mxu0 0
        %1622 = vmatpush1.bf16.msra.mxu0 %v1579
        %1623 = vmatprep.subr.bf16.mxu0 0
        %1624 = vmatpush1.bf16.msra.mxu0 %v1580
        %1625 = vmatprep.subr.bf16.mxu0 0
        %1626 = vmatpush1.bf16.msra.mxu0 %v1581
        %1627 = vmatprep.subr.bf16.mxu0 0
        %1628 = vmatpush1.bf16.msra.mxu0 0
        %1629 = vmatprep.subr.bf16.mxu0 0
        %1630 = vmatpush1.bf16.msra.mxu0 0
        %1631 = vmatprep.subr.bf16.mxu0 0
        %1632 = vmatpush1.bf16.msra.mxu0 0
        %1633 = vmatprep.subr.bf16.mxu0 0
        %1634 = vmatpush1.bf16.msra.mxu0 0
        %1635 = vmatprep.mubr.bf16.mxu0 %v1595
        %1636 = vmatmul.mubr.bf16.gmra.mrb[0].mxu0 %v1484
        %v1637 = vpop.f32.mrb[0].mxu0
        %v1638 = vadd.f32 0.0, %v1637
        %v1639 = vpop.f32.mrb[0].mxu0
        %v1640 = vpop.f32.mrb[0].mxu0
        %v1641 = vadd.f32 0.0, %v1640
        %v1642 = vpop.f32.mrb[0].mxu0
        %1643 = vmatprep.mubr.bf16.mxu0 %v1598
        %1644 = vmatmul.mubr.bf16.gmra.mrb[0].mxu0 %v1504
        %v1645 = vpop.f32.mrb[0].mxu0
        %v1646 = vadd.f32 0.0, %v1645
        %v1647 = vpop.f32.mrb[0].mxu0
        %v1648 = vpop.f32.mrb[0].mxu0
        %v1649 = vadd.f32 0.0, %v1648
        %v1650 = vpop.f32.mrb[0].mxu0
        %1651 = vmatprep.mubr.bf16.mxu0 %v1601
        %1652 = vmatmul.mubr.bf16.gmra.mrb[0].mxu0 %v1515
        %v1653 = vpop.f32.mrb[0].mxu0
        %v1654 = vadd.f32 0.0, %v1653
        %v1655 = vpop.f32.mrb[0].mxu0
        %v1656 = vpop.f32.mrb[0].mxu0
        %v1657 = vpop.f32.mrb[0].mxu0
        %1658 = vdwg.mxu0
        %v1659 = vadd.f32 %v1409, %v1638
        %v1660 = vadd.f32 %v1412, %v1641
        %v1661 = vadd.f32 %v1417, %v1646
        %v1662 = vadd.f32 %v1420, %v1649
        %v1663 = vadd.f32 %v1425, %v1654
        %s1664 = scalar_lea.vmem %s1072, 256
        %v1665 = vld [vmem:[%s1664] sm:$0xff]
        %v1666 = vld [vmem:[%s1664 + $0x8] sm:$0xff]
        %v1667 = vld [vmem:[%s1664 + $0x10] sm:$0xff]
        %v1668 = vld [vmem:[%s1664 + $0x18] sm:$0xff]
        %v1669 = vld [vmem:[%s1664 + $0x20] sm:$0xff]
        %v1670 = vld [vmem:[%s1664 + $0x28] sm:$0xff]
        %v1671 = vld [vmem:[%s1664 + $0x30] sm:$0xff]
        %v1672 = vld [vmem:[%s1664 + $0x38] sm:$0xff]
        %v1673 = vld [vmem:[%s1664 + $0x40] sm:$0xff]
        %v1674 = vld [vmem:[%s1664 + $0x48] sm:$0xff]
        %v1675 = vld [vmem:[%s1045 + $0x120] sm:$0xf]
        %v1676 = vld [vmem:[%s1045 + $0x124] sm:$0xf]
        %v1677 = vld [vmem:[%s1045 + $0x128] sm:$0xf]
        %v1678 = vld [vmem:[%s1045 + $0x12c] sm:$0xf]
        %v1679 = vld [vmem:[%s1045 + $0x130] sm:$0xf]
        %v1680 = vld [vmem:[%s1045 + $0x134] sm:$0xf]
        %v1681 = vld [vmem:[%s1045 + $0x138] sm:$0xf]
        %v1682 = vld [vmem:[%s1045 + $0x13c] sm:$0xf]
        %v1683 = vld [vmem:[%s1045 + $0x140] sm:$0xf]
        %v1684 = vld [vmem:[%s1045 + $0x144] sm:$0xf]
        %v1685 = vld [vmem:[%s1045 + $0x148] sm:$0xf]
        %v1686 = vld [vmem:[%s1045 + $0x14c] sm:$0xf]
        %v1687 = vld [vmem:[%s1045 + $0x150] sm:$0xf]
        %v1688 = vld [vmem:[%s1045 + $0x154] sm:$0xf]
        %v1689 = vld [vmem:[%s1045 + $0x158] sm:$0xf]
        %v1690 = vld [vmem:[%s1045 + $0x15c] sm:$0xf]
        %v1691 = vld [vmem:[%s1045 + $0x160] sm:$0xf]
        %v1692 = vld [vmem:[%s1045 + $0x164] sm:$0xf]
        %v1693 = vld [vmem:[%s1045 + $0x168] sm:$0xf]
        %v1694 = vld [vmem:[%s1045 + $0x16c] sm:$0xf]
        %v1695 = vld [vmem:[%s1045 + $0x170] sm:$0xf]
        %v1696 = vld [vmem:[%s1045 + $0x174] sm:$0xf]
        %v1697 = vld [vmem:[%s1045 + $0x178] sm:$0xf]
        %v1698 = vld [vmem:[%s1045 + $0x17c] sm:$0xf]
        %v1699 = vpack.c.bf16 %v1667, %v1665
        %v1700 = vpack.c.bf16 %v1668, %v1666
        %v1701 = vpack.c.bf16 %v1671, %v1669
        %v1702 = vpack.c.bf16 %v1672, %v1670
        %v1703 = vpack.c.bf16 %v1673, %v1673
        %v1704 = vpack.c.bf16 %v1674, %v1674
        %v1729 = vunpack.c.l.b16 %v1675
        %v1730 = vunpack.c.l.b16 %v1676
        %v1731 = vunpack.c.l.b16 %v1677
        %v1732 = vunpack.c.l.b16 %v1678
        %v1733 = vunpack.c.l.b16 %v1679
        %v1734 = vunpack.c.l.b16 %v1680
        %v1735 = vunpack.c.l.b16 %v1681
        %v1736 = vunpack.c.l.b16 %v1682
        %v1737 = vunpack.c.l.b16 %v1683
        %v1738 = vunpack.c.l.b16 %v1684
        %v1739 = vunpack.c.l.b16 %v1685
        %v1740 = vunpack.c.l.b16 %v1686
        %v1741 = vunpack.c.l.b16 %v1687
        %v1742 = vunpack.c.l.b16 %v1688
        %v1743 = vunpack.c.l.b16 %v1689
        %v1744 = vunpack.c.l.b16 %v1690
        %v1745 = vunpack.c.l.b16 %v1691
        %v1746 = vunpack.c.l.b16 %v1692
        %v1747 = vunpack.c.l.b16 %v1693
        %v1748 = vunpack.c.l.b16 %v1694
        %v1749 = vunpack.c.l.b16 %v1695
        %v1750 = vunpack.c.l.b16 %v1696
        %v1751 = vunpack.c.l.b16 %v1697
        %v1752 = vunpack.c.l.b16 %v1698
        %v1753 = vpack.c.b16 %v1730, %v1729
        %v1754 = vpack.c.b16 %v1732, %v1731
        %v1755 = vpack.c.b16 %v1734, %v1733
        %v1756 = vpack.c.b16 %v1736, %v1735
        %v1757 = vpack.c.b16 %v1738, %v1737
        %v1758 = vpack.c.b16 %v1740, %v1739
        %v1759 = vpack.c.b16 %v1742, %v1741
        %v1760 = vpack.c.b16 %v1744, %v1743
        %v1761 = vpack.c.b16 %v1746, %v1745
        %v1762 = vpack.c.b16 %v1748, %v1747
        %v1763 = vpack.c.b16 %v1750, %v1749
        %v1764 = vpack.c.b16 %v1752, %v1751
        %v1778 = vsel %vm1227, %v1700, 0
        %v1781 = vsel %vm1227, %v1702, 0
        %v1784 = vsel %vm1227, %v1704, 0
        %1786 = vmatprep.subr.bf16.mxu0 0
        %1787 = vmatpush1.bf16.msra.mxu0 %v1753
        %1788 = vmatprep.subr.bf16.mxu0 0
        %1789 = vmatpush1.bf16.msra.mxu0 %v1754
        %1790 = vmatprep.subr.bf16.mxu0 0
        %1791 = vmatpush1.bf16.msra.mxu0 %v1755
        %1792 = vmatprep.subr.bf16.mxu0 0
        %1793 = vmatpush1.bf16.msra.mxu0 %v1756
        %1794 = vmatprep.subr.bf16.mxu0 0
        %1795 = vmatpush1.bf16.msra.mxu0 %v1757
        %1796 = vmatprep.subr.bf16.mxu0 0
        %1797 = vmatpush1.bf16.msra.mxu0 %v1758
        %1798 = vmatprep.subr.bf16.mxu0 0
        %1799 = vmatpush1.bf16.msra.mxu0 %v1759
        %1800 = vmatprep.subr.bf16.mxu0 0
        %1801 = vmatpush1.bf16.msra.mxu0 %v1760
        %1802 = vmatprep.subr.bf16.mxu0 0
        %1803 = vmatpush1.bf16.msra.mxu0 %v1761
        %1804 = vmatprep.subr.bf16.mxu0 0
        %1805 = vmatpush1.bf16.msra.mxu0 %v1762
        %1806 = vmatprep.subr.bf16.mxu0 0
        %1807 = vmatpush1.bf16.msra.mxu0 %v1763
        %1808 = vmatprep.subr.bf16.mxu0 0
        %1809 = vmatpush1.bf16.msra.mxu0 %v1764
        %1810 = vmatprep.subr.bf16.mxu0 0
        %1811 = vmatpush1.bf16.msra.mxu0 0
        %1812 = vmatprep.subr.bf16.mxu0 0
        %1813 = vmatpush1.bf16.msra.mxu0 0
        %1814 = vmatprep.subr.bf16.mxu0 0
        %1815 = vmatpush1.bf16.msra.mxu0 0
        %1816 = vmatprep.subr.bf16.mxu0 0
        %1817 = vmatpush1.bf16.msra.mxu0 0
        %1818 = vmatprep.mubr.bf16.mxu0 %v1778
        %1819 = vmatmul.mubr.bf16.gmra.mrb[0].mxu0 %v1699
        %v1820 = vpop.f32.mrb[0].mxu0
        %v1821 = vadd.f32 0.0, %v1820
        %v1822 = vpop.f32.mrb[0].mxu0
        %v1823 = vpop.f32.mrb[0].mxu0
        %v1824 = vadd.f32 0.0, %v1823
        %v1825 = vpop.f32.mrb[0].mxu0
        %1826 = vmatprep.mubr.bf16.mxu0 %v1781
        %1827 = vmatmul.mubr.bf16.gmra.mrb[0].mxu0 %v1701
        %v1828 = vpop.f32.mrb[0].mxu0
        %v1829 = vadd.f32 0.0, %v1828
        %v1830 = vpop.f32.mrb[0].mxu0
        %v1831 = vpop.f32.mrb[0].mxu0
        %v1832 = vadd.f32 0.0, %v1831
        %v1833 = vpop.f32.mrb[0].mxu0
        %1834 = vmatprep.mubr.bf16.mxu0 %v1784
        %1835 = vmatmul.mubr.bf16.gmra.mrb[0].mxu0 %v1703
        %v1836 = vpop.f32.mrb[0].mxu0
        %v1837 = vadd.f32 0.0, %v1836
        %v1838 = vpop.f32.mrb[0].mxu0
        %v1839 = vpop.f32.mrb[0].mxu0
        %v1840 = vpop.f32.mrb[0].mxu0
        %1841 = vdwg.mxu0
        %v1842 = vadd.f32 %v1659, %v1821
        %v1843 = vadd.f32 %v1660, %v1824
        %v1844 = vadd.f32 %v1661, %v1829
        %v1845 = vadd.f32 %v1662, %v1832
        %v1846 = vadd.f32 %v1663, %v1837
        %s1847 = scalar_lea.vmem %s1072, 384
        %v1848 = vld [vmem:[%s1847] sm:$0xff]
        %v1849 = vld [vmem:[%s1847 + $0x8] sm:$0xff]
        %v1850 = vld [vmem:[%s1847 + $0x10] sm:$0xff]
        %v1851 = vld [vmem:[%s1847 + $0x18] sm:$0xff]
        %v1852 = vld [vmem:[%s1847 + $0x20] sm:$0xff]
        %v1853 = vld [vmem:[%s1847 + $0x28] sm:$0xff]
        %v1854 = vld [vmem:[%s1847 + $0x30] sm:$0xff]
        %v1855 = vld [vmem:[%s1847 + $0x38] sm:$0xff]
        %v1856 = vld [vmem:[%s1847 + $0x40] sm:$0xff]
        %v1857 = vld [vmem:[%s1847 + $0x48] sm:$0xff]
        %v1858 = vld [vmem:[%s1045 + $0x180] sm:$0xf]
        %v1859 = vld [vmem:[%s1045 + $0x184] sm:$0xf]
        %v1860 = vld [vmem:[%s1045 + $0x188] sm:$0xf]
        %v1861 = vld [vmem:[%s1045 + $0x18c] sm:$0xf]
        %v1862 = vld [vmem:[%s1045 + $0x190] sm:$0xf]
        %v1863 = vld [vmem:[%s1045 + $0x194] sm:$0xf]
        %v1864 = vld [vmem:[%s1045 + $0x198] sm:$0xf]
        %v1865 = vld [vmem:[%s1045 + $0x19c] sm:$0xf]
        %v1866 = vld [vmem:[%s1045 + $0x1a0] sm:$0xf]
        %v1867 = vld [vmem:[%s1045 + $0x1a4] sm:$0xf]
        %v1868 = vld [vmem:[%s1045 + $0x1a8] sm:$0xf]
        %v1869 = vld [vmem:[%s1045 + $0x1ac] sm:$0xf]
        %v1870 = vld [vmem:[%s1045 + $0x1b0] sm:$0xf]
        %v1871 = vld [vmem:[%s1045 + $0x1b4] sm:$0xf]
        %v1872 = vld [vmem:[%s1045 + $0x1b8] sm:$0xf]
        %v1873 = vld [vmem:[%s1045 + $0x1bc] sm:$0xf]
        %v1874 = vld [vmem:[%s1045 + $0x1c0] sm:$0xf]
        %v1875 = vld [vmem:[%s1045 + $0x1c4] sm:$0xf]
        %v1876 = vld [vmem:[%s1045 + $0x1c8] sm:$0xf]
        %v1877 = vld [vmem:[%s1045 + $0x1cc] sm:$0xf]
        %v1878 = vld [vmem:[%s1045 + $0x1d0] sm:$0xf]
        %v1879 = vld [vmem:[%s1045 + $0x1d4] sm:$0xf]
        %v1880 = vld [vmem:[%s1045 + $0x1d8] sm:$0xf]
        %v1881 = vld [vmem:[%s1045 + $0x1dc] sm:$0xf]
        %v1882 = vpack.c.bf16 %v1850, %v1848
        %v1883 = vpack.c.bf16 %v1851, %v1849
        %v1884 = vpack.c.bf16 %v1854, %v1852
        %v1885 = vpack.c.bf16 %v1855, %v1853
        %v1886 = vpack.c.bf16 %v1856, %v1856
        %v1887 = vpack.c.bf16 %v1857, %v1857
        %v1912 = vunpack.c.l.b16 %v1858
        %v1913 = vunpack.c.l.b16 %v1859
        %v1914 = vunpack.c.l.b16 %v1860
        %v1915 = vunpack.c.l.b16 %v1861
        %v1916 = vunpack.c.l.b16 %v1862
        %v1917 = vunpack.c.l.b16 %v1863
        %v1918 = vunpack.c.l.b16 %v1864
        %v1919 = vunpack.c.l.b16 %v1865
        %v1920 = vunpack.c.l.b16 %v1866
        %v1921 = vunpack.c.l.b16 %v1867
        %v1922 = vunpack.c.l.b16 %v1868
        %v1923 = vunpack.c.l.b16 %v1869
        %v1924 = vunpack.c.l.b16 %v1870
        %v1925 = vunpack.c.l.b16 %v1871
        %v1926 = vunpack.c.l.b16 %v1872
        %v1927 = vunpack.c.l.b16 %v1873
        %v1928 = vunpack.c.l.b16 %v1874
        %v1929 = vunpack.c.l.b16 %v1875
        %v1930 = vunpack.c.l.b16 %v1876
        %v1931 = vunpack.c.l.b16 %v1877
        %v1932 = vunpack.c.l.b16 %v1878
        %v1933 = vunpack.c.l.b16 %v1879
        %v1934 = vunpack.c.l.b16 %v1880
        %v1935 = vunpack.c.l.b16 %v1881
        %v1936 = vpack.c.b16 %v1913, %v1912
        %v1937 = vpack.c.b16 %v1915, %v1914
        %v1938 = vpack.c.b16 %v1917, %v1916
        %v1939 = vpack.c.b16 %v1919, %v1918
        %v1940 = vpack.c.b16 %v1921, %v1920
        %v1941 = vpack.c.b16 %v1923, %v1922
        %v1942 = vpack.c.b16 %v1925, %v1924
        %v1943 = vpack.c.b16 %v1927, %v1926
        %v1944 = vpack.c.b16 %v1929, %v1928
        %v1945 = vpack.c.b16 %v1931, %v1930
        %v1946 = vpack.c.b16 %v1933, %v1932
        %v1947 = vpack.c.b16 %v1935, %v1934
        %v1961 = vsel %vm1227, %v1883, 0
        %v1964 = vsel %vm1227, %v1885, 0
        %v1967 = vsel %vm1227, %v1887, 0
        %1969 = vmatprep.subr.bf16.mxu0 0
        %1970 = vmatpush1.bf16.msra.mxu0 %v1936
        %1971 = vmatprep.subr.bf16.mxu0 0
        %1972 = vmatpush1.bf16.msra.mxu0 %v1937
        %1973 = vmatprep.subr.bf16.mxu0 0
        %1974 = vmatpush1.bf16.msra.mxu0 %v1938
        %1975 = vmatprep.subr.bf16.mxu0 0
        %1976 = vmatpush1.bf16.msra.mxu0 %v1939
        %1977 = vmatprep.subr.bf16.mxu0 0
        %1978 = vmatpush1.bf16.msra.mxu0 %v1940
        %1979 = vmatprep.subr.bf16.mxu0 0
        %1980 = vmatpush1.bf16.msra.mxu0 %v1941
        %1981 = vmatprep.subr.bf16.mxu0 0
        %1982 = vmatpush1.bf16.msra.mxu0 %v1942
        %1983 = vmatprep.subr.bf16.mxu0 0
        %1984 = vmatpush1.bf16.msra.mxu0 %v1943
        %1985 = vmatprep.subr.bf16.mxu0 0
        %1986 = vmatpush1.bf16.msra.mxu0 %v1944
        %1987 = vmatprep.subr.bf16.mxu0 0
        %1988 = vmatpush1.bf16.msra.mxu0 %v1945
        %1989 = vmatprep.subr.bf16.mxu0 0
        %1990 = vmatpush1.bf16.msra.mxu0 %v1946
        %1991 = vmatprep.subr.bf16.mxu0 0
        %1992 = vmatpush1.bf16.msra.mxu0 %v1947
        %1993 = vmatprep.subr.bf16.mxu0 0
        %1994 = vmatpush1.bf16.msra.mxu0 0
        %1995 = vmatprep.subr.bf16.mxu0 0
        %1996 = vmatpush1.bf16.msra.mxu0 0
        %1997 = vmatprep.subr.bf16.mxu0 0
        %1998 = vmatpush1.bf16.msra.mxu0 0
        %1999 = vmatprep.subr.bf16.mxu0 0
        %2000 = vmatpush1.bf16.msra.mxu0 0
        %2001 = vmatprep.mubr.bf16.mxu0 %v1961
        %2002 = vmatmul.mubr.bf16.gmra.mrb[0].mxu0 %v1882
        %v2003 = vpop.f32.mrb[0].mxu0
        %v2004 = vadd.f32 0.0, %v2003
        %v2005 = vpop.f32.mrb[0].mxu0
        %v2006 = vpop.f32.mrb[0].mxu0
        %v2007 = vadd.f32 0.0, %v2006
        %v2008 = vpop.f32.mrb[0].mxu0
        %2009 = vmatprep.mubr.bf16.mxu0 %v1964
        %2010 = vmatmul.mubr.bf16.gmra.mrb[0].mxu0 %v1884
        %v2011 = vpop.f32.mrb[0].mxu0
        %v2012 = vadd.f32 0.0, %v2011
        %v2013 = vpop.f32.mrb[0].mxu0
        %v2014 = vpop.f32.mrb[0].mxu0
        %v2015 = vadd.f32 0.0, %v2014
        %v2016 = vpop.f32.mrb[0].mxu0
        %2017 = vmatprep.mubr.bf16.mxu0 %v1967
        %2018 = vmatmul.mubr.bf16.gmra.mrb[0].mxu0 %v1886
        %v2019 = vpop.f32.mrb[0].mxu0
        %v2020 = vadd.f32 0.0, %v2019
        %v2021 = vpop.f32.mrb[0].mxu0
        %v2022 = vpop.f32.mrb[0].mxu0
        %v2023 = vpop.f32.mrb[0].mxu0
        %2024 = vdwg.mxu0
        %v2025 = vadd.f32 %v1842, %v2004
        %v2026 = vadd.f32 %v1843, %v2007
        %v2027 = vadd.f32 %v1844, %v2012
        %v2028 = vadd.f32 %v1845, %v2015
        %v2029 = vadd.f32 %v1846, %v2020
        %v2030 = vld [vmem:[%s1664] sm:$0xfe]
        %v2031 = vld [vmem:[%s1664 + $0x8] sm:$0xfe]
        %v2032 = vld [vmem:[%s1664 + $0x10] sm:$0xff]
        %v2033 = vld [vmem:[%s1664 + $0x18] sm:$0xff]
        %v2034 = vld [vmem:[%s1664 + $0x20] sm:$0xff]
        %v2035 = vld [vmem:[%s1664 + $0x28] sm:$0xff]
        %v2036 = vld [vmem:[%s1664 + $0x30] sm:$0xff]
        %v2037 = vld [vmem:[%s1664 + $0x38] sm:$0xff]
        %v2038 = vld [vmem:[%s1664 + $0x40] sm:$0xff]
        %v2039 = vld [vmem:[%s1664 + $0x48] sm:$0xff]
        %v2040 = vld [vmem:[%s1664 + $0x50] sm:$0x1]
        %v2041 = vld [vmem:[%s1664 + $0x58] sm:$0x1]
        %v2042 = vld [vmem:[%s1045 + $0x1e0] sm:$0xf]
        %v2043 = vld [vmem:[%s1045 + $0x1e4] sm:$0xf]
        %v2044 = vld [vmem:[%s1045 + $0x1e8] sm:$0xf]
        %v2045 = vld [vmem:[%s1045 + $0x1ec] sm:$0xf]
        %v2046 = vld [vmem:[%s1045 + $0x1f0] sm:$0xf]
        %v2047 = vld [vmem:[%s1045 + $0x1f4] sm:$0xf]
        %v2048 = vld [vmem:[%s1045 + $0x1f8] sm:$0xf]
        %v2049 = vld [vmem:[%s1045 + $0x1fc] sm:$0xf]
        %v2050 = vld [vmem:[%s1045 + $0x200] sm:$0xf]
        %v2051 = vld [vmem:[%s1045 + $0x204] sm:$0xf]
        %v2052 = vld [vmem:[%s1045 + $0x208] sm:$0xf]
        %v2053 = vld [vmem:[%s1045 + $0x20c] sm:$0xf]
        %v2054 = vld [vmem:[%s1045 + $0x210] sm:$0xf]
        %v2055 = vld [vmem:[%s1045 + $0x214] sm:$0xf]
        %v2056 = vld [vmem:[%s1045 + $0x218] sm:$0xf]
        %v2057 = vld [vmem:[%s1045 + $0x21c] sm:$0xf]
        %v2058 = vld [vmem:[%s1045 + $0x220] sm:$0xf]
        %v2059 = vld [vmem:[%s1045 + $0x224] sm:$0xf]
        %v2060 = vld [vmem:[%s1045 + $0x228] sm:$0xf]
        %v2061 = vld [vmem:[%s1045 + $0x22c] sm:$0xf]
        %v2062 = vld [vmem:[%s1045 + $0x230] sm:$0xf]
        %v2063 = vld [vmem:[%s1045 + $0x234] sm:$0xf]
        %v2064 = vld [vmem:[%s1045 + $0x238] sm:$0xf]
        %v2065 = vld [vmem:[%s1045 + $0x23c] sm:$0xf]
        %v2066 = vpack.c.bf16 %v2032, %v2030
        %v2067 = vpack.c.bf16 %v2033, %v2031
        %v2068 = vpack.c.bf16 %v2036, %v2034
        %v2069 = vpack.c.bf16 %v2037, %v2035
        %v2070 = vpack.c.bf16 %v2040, %v2038
        %v2071 = vpack.c.bf16 %v2041, %v2039
        %v2073 = vshrl.u32 %v2066, 16
        %v2075 = vshll.u32 %v2066, 16
        %v2077 = vrot.slane %v2075, 1
        %v2078 = vor.u32 %v2073, %v2077
        %v2080 = vshll.u32 %v2068, 16
        %v2082 = vrot.slane %v2080, 1
        %v2083 = vsel %vm1472, %v2078, %v2082
        %v2085 = vshrl.u32 %v2067, 16
        %v2087 = vshll.u32 %v2067, 16
        %v2089 = vrot.slane %v2087, 1
        %v2090 = vor.u32 %v2085, %v2089
        %v2092 = vshll.u32 %v2069, 16
        %v2094 = vrot.slane %v2092, 1
        %v2095 = vsel %vm1472, %v2090, %v2094
        %v2096 = vshrl.u32 %v2068, 16
        %v2098 = vor.u32 %v2096, %v2082
        %v2100 = vshll.u32 %v2070, 16
        %v2102 = vrot.slane %v2100, 1
        %v2103 = vsel %vm1472, %v2098, %v2102
        %v2104 = vshrl.u32 %v2069, 16
        %v2106 = vor.u32 %v2104, %v2094
        %v2108 = vshll.u32 %v2071, 16
        %v2110 = vrot.slane %v2108, 1
        %v2111 = vsel %vm1472, %v2106, %v2110
        %v2112 = vshrl.u32 %v2070, 16
        %v2114 = vor.u32 %v2112, %v2102
        %v2115 = vshrl.u32 %v2071, 16
        %v2117 = vor.u32 %v2115, %v2110
        %v2145 = vunpack.c.l.b16 %v2042
        %v2146 = vunpack.c.l.b16 %v2043
        %v2147 = vunpack.c.l.b16 %v2044
        %v2148 = vunpack.c.l.b16 %v2045
        %v2149 = vunpack.c.l.b16 %v2046
        %v2150 = vunpack.c.l.b16 %v2047
        %v2151 = vunpack.c.l.b16 %v2048
        %v2152 = vunpack.c.l.b16 %v2049
        %v2153 = vunpack.c.l.b16 %v2050
        %v2154 = vunpack.c.l.b16 %v2051
        %v2155 = vunpack.c.l.b16 %v2052
        %v2156 = vunpack.c.l.b16 %v2053
        %v2157 = vunpack.c.l.b16 %v2054
        %v2158 = vunpack.c.l.b16 %v2055
        %v2159 = vunpack.c.l.b16 %v2056
        %v2160 = vunpack.c.l.b16 %v2057
        %v2161 = vunpack.c.l.b16 %v2058
        %v2162 = vunpack.c.l.b16 %v2059
        %v2163 = vunpack.c.l.b16 %v2060
        %v2164 = vunpack.c.l.b16 %v2061
        %v2165 = vunpack.c.l.b16 %v2062
        %v2166 = vunpack.c.l.b16 %v2063
        %v2167 = vunpack.c.l.b16 %v2064
        %v2168 = vunpack.c.l.b16 %v2065
        %v2169 = vpack.c.b16 %v2146, %v2145
        %v2170 = vpack.c.b16 %v2148, %v2147
        %v2171 = vpack.c.b16 %v2150, %v2149
        %v2172 = vpack.c.b16 %v2152, %v2151
        %v2173 = vpack.c.b16 %v2154, %v2153
        %v2174 = vpack.c.b16 %v2156, %v2155
        %v2175 = vpack.c.b16 %v2158, %v2157
        %v2176 = vpack.c.b16 %v2160, %v2159
        %v2177 = vpack.c.b16 %v2162, %v2161
        %v2178 = vpack.c.b16 %v2164, %v2163
        %v2179 = vpack.c.b16 %v2166, %v2165
        %v2180 = vpack.c.b16 %v2168, %v2167
        %v2194 = vsel %vm1227, %v2095, 0
        %v2197 = vsel %vm1227, %v2111, 0
        %v2200 = vsel %vm1227, %v2117, 0
        %2202 = vmatprep.subr.bf16.mxu0 0
        %2203 = vmatpush1.bf16.msra.mxu0 %v2169
        %2204 = vmatprep.subr.bf16.mxu0 0
        %2205 = vmatpush1.bf16.msra.mxu0 %v2170
        %2206 = vmatprep.subr.bf16.mxu0 0
        %2207 = vmatpush1.bf16.msra.mxu0 %v2171
        %2208 = vmatprep.subr.bf16.mxu0 0
        %2209 = vmatpush1.bf16.msra.mxu0 %v2172
        %2210 = vmatprep.subr.bf16.mxu0 0
        %2211 = vmatpush1.bf16.msra.mxu0 %v2173
        %2212 = vmatprep.subr.bf16.mxu0 0
        %2213 = vmatpush1.bf16.msra.mxu0 %v2174
        %2214 = vmatprep.subr.bf16.mxu0 0
        %2215 = vmatpush1.bf16.msra.mxu0 %v2175
        %2216 = vmatprep.subr.bf16.mxu0 0
        %2217 = vmatpush1.bf16.msra.mxu0 %v2176
        %2218 = vmatprep.subr.bf16.mxu0 0
        %2219 = vmatpush1.bf16.msra.mxu0 %v2177
        %2220 = vmatprep.subr.bf16.mxu0 0
        %2221 = vmatpush1.bf16.msra.mxu0 %v2178
        %2222 = vmatprep.subr.bf16.mxu0 0
        %2223 = vmatpush1.bf16.msra.mxu0 %v2179
        %2224 = vmatprep.subr.bf16.mxu0 0
        %2225 = vmatpush1.bf16.msra.mxu0 %v2180
        %2226 = vmatprep.subr.bf16.mxu0 0
        %2227 = vmatpush1.bf16.msra.mxu0 0
        %2228 = vmatprep.subr.bf16.mxu0 0
        %2229 = vmatpush1.bf16.msra.mxu0 0
        %2230 = vmatprep.subr.bf16.mxu0 0
        %2231 = vmatpush1.bf16.msra.mxu0 0
        %2232 = vmatprep.subr.bf16.mxu0 0
        %2233 = vmatpush1.bf16.msra.mxu0 0
        %2234 = vmatprep.mubr.bf16.mxu0 %v2194
        %2235 = vmatmul.mubr.bf16.gmra.mrb[0].mxu0 %v2083
        %v2236 = vpop.f32.mrb[0].mxu0
        %v2237 = vadd.f32 0.0, %v2236
        %v2238 = vpop.f32.mrb[0].mxu0
        %v2239 = vpop.f32.mrb[0].mxu0
        %v2240 = vadd.f32 0.0, %v2239
        %v2241 = vpop.f32.mrb[0].mxu0
        %2242 = vmatprep.mubr.bf16.mxu0 %v2197
        %2243 = vmatmul.mubr.bf16.gmra.mrb[0].mxu0 %v2103
        %v2244 = vpop.f32.mrb[0].mxu0
        %v2245 = vadd.f32 0.0, %v2244
        %v2246 = vpop.f32.mrb[0].mxu0
        %v2247 = vpop.f32.mrb[0].mxu0
        %v2248 = vadd.f32 0.0, %v2247
        %v2249 = vpop.f32.mrb[0].mxu0
        %2250 = vmatprep.mubr.bf16.mxu0 %v2200
        %2251 = vmatmul.mubr.bf16.gmra.mrb[0].mxu0 %v2114
        %v2252 = vpop.f32.mrb[0].mxu0
        %v2253 = vadd.f32 0.0, %v2252
        %v2254 = vpop.f32.mrb[0].mxu0
        %v2255 = vpop.f32.mrb[0].mxu0
        %v2256 = vpop.f32.mrb[0].mxu0
        %2257 = vdwg.mxu0
        %v2258 = vadd.f32 %v2025, %v2237
        %v2259 = vadd.f32 %v2026, %v2240
        %v2260 = vadd.f32 %v2027, %v2245
        %v2261 = vadd.f32 %v2028, %v2248
        %v2262 = vadd.f32 %v2029, %v2253
        %v2263 = vld [vmem:[%s1072 + $0x50] sm:$0xff]
        %v2264 = vld [vmem:[%s1072 + $0x58] sm:$0xff]
        %v2265 = vld [vmem:[%s1045 + $0x240] sm:$0xf]
        %v2266 = vld [vmem:[%s1045 + $0x244] sm:$0xf]
        %v2267 = vld [vmem:[%s1045 + $0x248] sm:$0xf]
        %v2268 = vld [vmem:[%s1045 + $0x24c] sm:$0xf]
        %v2269 = vld [vmem:[%s1045 + $0x250] sm:$0xf]
        %v2270 = vld [vmem:[%s1045 + $0x254] sm:$0xf]
        %v2271 = vld [vmem:[%s1045 + $0x258] sm:$0xf]
        %v2272 = vld [vmem:[%s1045 + $0x25c] sm:$0xf]
        %v2273 = vld [vmem:[%s1045 + $0x260] sm:$0xf]
        %v2274 = vld [vmem:[%s1045 + $0x264] sm:$0xf]
        %v2275 = vld [vmem:[%s1045 + $0x268] sm:$0xf]
        %v2276 = vld [vmem:[%s1045 + $0x26c] sm:$0xf]
        %v2277 = vld [vmem:[%s1045 + $0x270] sm:$0xf]
        %v2278 = vld [vmem:[%s1045 + $0x274] sm:$0xf]
        %v2279 = vld [vmem:[%s1045 + $0x278] sm:$0xf]
        %v2280 = vld [vmem:[%s1045 + $0x27c] sm:$0xf]
        %v2281 = vld [vmem:[%s1045 + $0x280] sm:$0xf]
        %v2282 = vld [vmem:[%s1045 + $0x284] sm:$0xf]
        %v2283 = vld [vmem:[%s1045 + $0x288] sm:$0xf]
        %v2284 = vld [vmem:[%s1045 + $0x28c] sm:$0xf]
        %v2285 = vld [vmem:[%s1045 + $0x290] sm:$0xf]
        %v2286 = vld [vmem:[%s1045 + $0x294] sm:$0xf]
        %v2287 = vld [vmem:[%s1045 + $0x298] sm:$0xf]
        %v2288 = vld [vmem:[%s1045 + $0x29c] sm:$0xf]
        %v2289 = vpack.c.bf16 %v1434, %v1432
        %v2290 = vpack.c.bf16 %v1435, %v1433
        %v2291 = vpack.c.bf16 %v1438, %v1436
        %v2292 = vpack.c.bf16 %v1439, %v1437
        %v2293 = vpack.c.bf16 %v2263, %v2263
        %v2294 = vpack.c.bf16 %v2264, %v2264
        %v2319 = vunpack.c.l.b16 %v2265
        %v2320 = vunpack.c.l.b16 %v2266
        %v2321 = vunpack.c.l.b16 %v2267
        %v2322 = vunpack.c.l.b16 %v2268
        %v2323 = vunpack.c.l.b16 %v2269
        %v2324 = vunpack.c.l.b16 %v2270
        %v2325 = vunpack.c.l.b16 %v2271
        %v2326 = vunpack.c.l.b16 %v2272
        %v2327 = vunpack.c.l.b16 %v2273
        %v2328 = vunpack.c.l.b16 %v2274
        %v2329 = vunpack.c.l.b16 %v2275
        %v2330 = vunpack.c.l.b16 %v2276
        %v2331 = vunpack.c.l.b16 %v2277
        %v2332 = vunpack.c.l.b16 %v2278
        %v2333 = vunpack.c.l.b16 %v2279
        %v2334 = vunpack.c.l.b16 %v2280
        %v2335 = vunpack.c.l.b16 %v2281
        %v2336 = vunpack.c.l.b16 %v2282
        %v2337 = vunpack.c.l.b16 %v2283
        %v2338 = vunpack.c.l.b16 %v2284
        %v2339 = vunpack.c.l.b16 %v2285
        %v2340 = vunpack.c.l.b16 %v2286
        %v2341 = vunpack.c.l.b16 %v2287
        %v2342 = vunpack.c.l.b16 %v2288
        %v2343 = vpack.c.b16 %v2320, %v2319
        %v2344 = vpack.c.b16 %v2322, %v2321
        %v2345 = vpack.c.b16 %v2324, %v2323
        %v2346 = vpack.c.b16 %v2326, %v2325
        %v2347 = vpack.c.b16 %v2328, %v2327
        %v2348 = vpack.c.b16 %v2330, %v2329
        %v2349 = vpack.c.b16 %v2332, %v2331
        %v2350 = vpack.c.b16 %v2334, %v2333
        %v2351 = vpack.c.b16 %v2336, %v2335
        %v2352 = vpack.c.b16 %v2338, %v2337
        %v2353 = vpack.c.b16 %v2340, %v2339
        %v2354 = vpack.c.b16 %v2342, %v2341
        %v2368 = vsel %vm1227, %v2290, 0
        %v2371 = vsel %vm1227, %v2292, 0
        %v2374 = vsel %vm1227, %v2294, 0
        %2376 = vmatprep.subr.bf16.mxu0 0
        %2377 = vmatpush1.bf16.msra.mxu0 %v2343
        %2378 = vmatprep.subr.bf16.mxu0 0
        %2379 = vmatpush1.bf16.msra.mxu0 %v2344
        %2380 = vmatprep.subr.bf16.mxu0 0
        %2381 = vmatpush1.bf16.msra.mxu0 %v2345
        %2382 = vmatprep.subr.bf16.mxu0 0
        %2383 = vmatpush1.bf16.msra.mxu0 %v2346
        %2384 = vmatprep.subr.bf16.mxu0 0
        %2385 = vmatpush1.bf16.msra.mxu0 %v2347
        %2386 = vmatprep.subr.bf16.mxu0 0
        %2387 = vmatpush1.bf16.msra.mxu0 %v2348
        %2388 = vmatprep.subr.bf16.mxu0 0
        %2389 = vmatpush1.bf16.msra.mxu0 %v2349
        %2390 = vmatprep.subr.bf16.mxu0 0
        %2391 = vmatpush1.bf16.msra.mxu0 %v2350
        %2392 = vmatprep.subr.bf16.mxu0 0
        %2393 = vmatpush1.bf16.msra.mxu0 %v2351
        %2394 = vmatprep.subr.bf16.mxu0 0
        %2395 = vmatpush1.bf16.msra.mxu0 %v2352
        %2396 = vmatprep.subr.bf16.mxu0 0
        %2397 = vmatpush1.bf16.msra.mxu0 %v2353
        %2398 = vmatprep.subr.bf16.mxu0 0
        %2399 = vmatpush1.bf16.msra.mxu0 %v2354
        %2400 = vmatprep.subr.bf16.mxu0 0
        %2401 = vmatpush1.bf16.msra.mxu0 0
        %2402 = vmatprep.subr.bf16.mxu0 0
        %2403 = vmatpush1.bf16.msra.mxu0 0
        %2404 = vmatprep.subr.bf16.mxu0 0
        %2405 = vmatpush1.bf16.msra.mxu0 0
        %2406 = vmatprep.subr.bf16.mxu0 0
        %2407 = vmatpush1.bf16.msra.mxu0 0
        %2408 = vmatprep.mubr.bf16.mxu0 %v2368
        %2409 = vmatmul.mubr.bf16.gmra.mrb[0].mxu0 %v2289
        %v2410 = vpop.f32.mrb[0].mxu0
        %v2411 = vadd.f32 0.0, %v2410
        %v2412 = vpop.f32.mrb[0].mxu0
        %v2413 = vpop.f32.mrb[0].mxu0
        %v2414 = vadd.f32 0.0, %v2413
        %v2415 = vpop.f32.mrb[0].mxu0
        %2416 = vmatprep.mubr.bf16.mxu0 %v2371
        %2417 = vmatmul.mubr.bf16.gmra.mrb[0].mxu0 %v2291
        %v2418 = vpop.f32.mrb[0].mxu0
        %v2419 = vadd.f32 0.0, %v2418
        %v2420 = vpop.f32.mrb[0].mxu0
        %v2421 = vpop.f32.mrb[0].mxu0
        %v2422 = vadd.f32 0.0, %v2421
        %v2423 = vpop.f32.mrb[0].mxu0
        %2424 = vmatprep.mubr.bf16.mxu0 %v2374
        %2425 = vmatmul.mubr.bf16.gmra.mrb[0].mxu0 %v2293
        %v2426 = vpop.f32.mrb[0].mxu0
        %v2427 = vadd.f32 0.0, %v2426
        %v2428 = vpop.f32.mrb[0].mxu0
        %v2429 = vpop.f32.mrb[0].mxu0
        %v2430 = vpop.f32.mrb[0].mxu0
        %2431 = vdwg.mxu0
        %v2432 = vadd.f32 %v2258, %v2411
        %v2433 = vadd.f32 %v2259, %v2414
        %v2434 = vadd.f32 %v2260, %v2419
        %v2435 = vadd.f32 %v2261, %v2422
        %v2436 = vadd.f32 %v2262, %v2427
        %v2437 = vld [vmem:[%s1114 + $0x10] sm:$0xff]
        %v2438 = vld [vmem:[%s1114 + $0x18] sm:$0xff]
        %v2439 = vld [vmem:[%s1114 + $0x20] sm:$0xff]
        %v2440 = vld [vmem:[%s1114 + $0x28] sm:$0xff]
        %v2441 = vld [vmem:[%s1114 + $0x30] sm:$0xff]
        %v2442 = vld [vmem:[%s1114 + $0x38] sm:$0xff]
        %v2443 = vld [vmem:[%s1114 + $0x40] sm:$0xff]
        %v2444 = vld [vmem:[%s1114 + $0x48] sm:$0xff]
        %v2445 = vld [vmem:[%s1114 + $0x50] sm:$0xff]
        %v2446 = vld [vmem:[%s1114 + $0x58] sm:$0xff]
        %v2447 = vld [vmem:[%s1045 + $0x2a0] sm:$0xf]
        %v2448 = vld [vmem:[%s1045 + $0x2a4] sm:$0xf]
        %v2449 = vld [vmem:[%s1045 + $0x2a8] sm:$0xf]
        %v2450 = vld [vmem:[%s1045 + $0x2ac] sm:$0xf]
        %v2451 = vld [vmem:[%s1045 + $0x2b0] sm:$0xf]
        %v2452 = vld [vmem:[%s1045 + $0x2b4] sm:$0xf]
        %v2453 = vld [vmem:[%s1045 + $0x2b8] sm:$0xf]
        %v2454 = vld [vmem:[%s1045 + $0x2bc] sm:$0xf]
        %v2455 = vld [vmem:[%s1045 + $0x2c0] sm:$0xf]
        %v2456 = vld [vmem:[%s1045 + $0x2c4] sm:$0xf]
        %v2457 = vld [vmem:[%s1045 + $0x2c8] sm:$0xf]
        %v2458 = vld [vmem:[%s1045 + $0x2cc] sm:$0xf]
        %v2459 = vld [vmem:[%s1045 + $0x2d0] sm:$0xf]
        %v2460 = vld [vmem:[%s1045 + $0x2d4] sm:$0xf]
        %v2461 = vld [vmem:[%s1045 + $0x2d8] sm:$0xf]
        %v2462 = vld [vmem:[%s1045 + $0x2dc] sm:$0xf]
        %v2463 = vld [vmem:[%s1045 + $0x2e0] sm:$0xf]
        %v2464 = vld [vmem:[%s1045 + $0x2e4] sm:$0xf]
        %v2465 = vld [vmem:[%s1045 + $0x2e8] sm:$0xf]
        %v2466 = vld [vmem:[%s1045 + $0x2ec] sm:$0xf]
        %v2467 = vld [vmem:[%s1045 + $0x2f0] sm:$0xf]
        %v2468 = vld [vmem:[%s1045 + $0x2f4] sm:$0xf]
        %v2469 = vld [vmem:[%s1045 + $0x2f8] sm:$0xf]
        %v2470 = vld [vmem:[%s1045 + $0x2fc] sm:$0xf]
        %v2471 = vpack.c.bf16 %v2439, %v2437
        %v2472 = vpack.c.bf16 %v2440, %v2438
        %v2473 = vpack.c.bf16 %v2443, %v2441
        %v2474 = vpack.c.bf16 %v2444, %v2442
        %v2475 = vpack.c.bf16 %v2445, %v2445
        %v2476 = vpack.c.bf16 %v2446, %v2446
        %v2501 = vunpack.c.l.b16 %v2447
        %v2502 = vunpack.c.l.b16 %v2448
        %v2503 = vunpack.c.l.b16 %v2449
        %v2504 = vunpack.c.l.b16 %v2450
        %v2505 = vunpack.c.l.b16 %v2451
        %v2506 = vunpack.c.l.b16 %v2452
        %v2507 = vunpack.c.l.b16 %v2453
        %v2508 = vunpack.c.l.b16 %v2454
        %v2509 = vunpack.c.l.b16 %v2455
        %v2510 = vunpack.c.l.b16 %v2456
        %v2511 = vunpack.c.l.b16 %v2457
        %v2512 = vunpack.c.l.b16 %v2458
        %v2513 = vunpack.c.l.b16 %v2459
        %v2514 = vunpack.c.l.b16 %v2460
        %v2515 = vunpack.c.l.b16 %v2461
        %v2516 = vunpack.c.l.b16 %v2462
        %v2517 = vunpack.c.l.b16 %v2463
        %v2518 = vunpack.c.l.b16 %v2464
        %v2519 = vunpack.c.l.b16 %v2465
        %v2520 = vunpack.c.l.b16 %v2466
        %v2521 = vunpack.c.l.b16 %v2467
        %v2522 = vunpack.c.l.b16 %v2468
        %v2523 = vunpack.c.l.b16 %v2469
        %v2524 = vunpack.c.l.b16 %v2470
        %v2525 = vpack.c.b16 %v2502, %v2501
        %v2526 = vpack.c.b16 %v2504, %v2503
        %v2527 = vpack.c.b16 %v2506, %v2505
        %v2528 = vpack.c.b16 %v2508, %v2507
        %v2529 = vpack.c.b16 %v2510, %v2509
        %v2530 = vpack.c.b16 %v2512, %v2511
        %v2531 = vpack.c.b16 %v2514, %v2513
        %v2532 = vpack.c.b16 %v2516, %v2515
        %v2533 = vpack.c.b16 %v2518, %v2517
        %v2534 = vpack.c.b16 %v2520, %v2519
        %v2535 = vpack.c.b16 %v2522, %v2521
        %v2536 = vpack.c.b16 %v2524, %v2523
        %v2550 = vsel %vm1227, %v2472, 0
        %v2553 = vsel %vm1227, %v2474, 0
        %v2556 = vsel %vm1227, %v2476, 0
        %2558 = vmatprep.subr.bf16.mxu0 0
        %2559 = vmatpush1.bf16.msra.mxu0 %v2525
        %2560 = vmatprep.subr.bf16.mxu0 0
        %2561 = vmatpush1.bf16.msra.mxu0 %v2526
        %2562 = vmatprep.subr.bf16.mxu0 0
        %2563 = vmatpush1.bf16.msra.mxu0 %v2527
        %2564 = vmatprep.subr.bf16.mxu0 0
        %2565 = vmatpush1.bf16.msra.mxu0 %v2528
        %2566 = vmatprep.subr.bf16.mxu0 0
        %2567 = vmatpush1.bf16.msra.mxu0 %v2529
        %2568 = vmatprep.subr.bf16.mxu0 0
        %2569 = vmatpush1.bf16.msra.mxu0 %v2530
        %2570 = vmatprep.subr.bf16.mxu0 0
        %2571 = vmatpush1.bf16.msra.mxu0 %v2531
        %2572 = vmatprep.subr.bf16.mxu0 0
        %2573 = vmatpush1.bf16.msra.mxu0 %v2532
        %2574 = vmatprep.subr.bf16.mxu0 0
        %2575 = vmatpush1.bf16.msra.mxu0 %v2533
        %2576 = vmatprep.subr.bf16.mxu0 0
        %2577 = vmatpush1.bf16.msra.mxu0 %v2534
        %2578 = vmatprep.subr.bf16.mxu0 0
        %2579 = vmatpush1.bf16.msra.mxu0 %v2535
        %2580 = vmatprep.subr.bf16.mxu0 0
        %2581 = vmatpush1.bf16.msra.mxu0 %v2536
        %2582 = vmatprep.subr.bf16.mxu0 0
        %2583 = vmatpush1.bf16.msra.mxu0 0
        %2584 = vmatprep.subr.bf16.mxu0 0
        %2585 = vmatpush1.bf16.msra.mxu0 0
        %2586 = vmatprep.subr.bf16.mxu0 0
        %2587 = vmatpush1.bf16.msra.mxu0 0
        %2588 = vmatprep.subr.bf16.mxu0 0
        %2589 = vmatpush1.bf16.msra.mxu0 0
        %2590 = vmatprep.mubr.bf16.mxu0 %v2550
        %2591 = vmatmul.mubr.bf16.gmra.mrb[0].mxu0 %v2471
        %v2592 = vpop.f32.mrb[0].mxu0
        %v2593 = vadd.f32 0.0, %v2592
        %v2594 = vpop.f32.mrb[0].mxu0
        %v2595 = vpop.f32.mrb[0].mxu0
        %v2596 = vadd.f32 0.0, %v2595
        %v2597 = vpop.f32.mrb[0].mxu0
        %2598 = vmatprep.mubr.bf16.mxu0 %v2553
        %2599 = vmatmul.mubr.bf16.gmra.mrb[0].mxu0 %v2473
        %v2600 = vpop.f32.mrb[0].mxu0
        %v2601 = vadd.f32 0.0, %v2600
        %v2602 = vpop.f32.mrb[0].mxu0
        %v2603 = vpop.f32.mrb[0].mxu0
        %v2604 = vadd.f32 0.0, %v2603
        %v2605 = vpop.f32.mrb[0].mxu0
        %2606 = vmatprep.mubr.bf16.mxu0 %v2556
        %2607 = vmatmul.mubr.bf16.gmra.mrb[0].mxu0 %v2475
        %v2608 = vpop.f32.mrb[0].mxu0
        %v2609 = vadd.f32 0.0, %v2608
        %v2610 = vpop.f32.mrb[0].mxu0
        %v2611 = vpop.f32.mrb[0].mxu0
        %v2612 = vpop.f32.mrb[0].mxu0
        %2613 = vdwg.mxu0
        %v2614 = vadd.f32 %v2432, %v2593
        %v2615 = vadd.f32 %v2433, %v2596
        %v2616 = vadd.f32 %v2434, %v2601
        %v2617 = vadd.f32 %v2435, %v2604
        %v2618 = vadd.f32 %v2436, %v2609
        %v2619 = vld [vmem:[%s1072 + $0x10] sm:$0xfe]
        %v2620 = vld [vmem:[%s1072 + $0x18] sm:$0xfe]
        %v2621 = vld [vmem:[%s1072 + $0x20] sm:$0xff]
        %v2622 = vld [vmem:[%s1072 + $0x28] sm:$0xff]
        %v2623 = vld [vmem:[%s1072 + $0x30] sm:$0xff]
        %v2624 = vld [vmem:[%s1072 + $0x38] sm:$0xff]
        %v2625 = vld [vmem:[%s1072 + $0x40] sm:$0xff]
        %v2626 = vld [vmem:[%s1072 + $0x48] sm:$0xff]
        %v2627 = vld [vmem:[%s1072 + $0x50] sm:$0xff]
        %v2628 = vld [vmem:[%s1072 + $0x58] sm:$0xff]
        %v2629 = vld [vmem:[%s1072 + $0x60] sm:$0x1]
        %v2630 = vld [vmem:[%s1072 + $0x68] sm:$0x1]
        %v2631 = vld [vmem:[%s1045 + $0x300] sm:$0xf]
        %v2632 = vld [vmem:[%s1045 + $0x304] sm:$0xf]
        %v2633 = vld [vmem:[%s1045 + $0x308] sm:$0xf]
        %v2634 = vld [vmem:[%s1045 + $0x30c] sm:$0xf]
        %v2635 = vld [vmem:[%s1045 + $0x310] sm:$0xf]
        %v2636 = vld [vmem:[%s1045 + $0x314] sm:$0xf]
        %v2637 = vld [vmem:[%s1045 + $0x318] sm:$0xf]
        %v2638 = vld [vmem:[%s1045 + $0x31c] sm:$0xf]
        %v2639 = vld [vmem:[%s1045 + $0x320] sm:$0xf]
        %v2640 = vld [vmem:[%s1045 + $0x324] sm:$0xf]
        %v2641 = vld [vmem:[%s1045 + $0x328] sm:$0xf]
        %v2642 = vld [vmem:[%s1045 + $0x32c] sm:$0xf]
        %v2643 = vld [vmem:[%s1045 + $0x330] sm:$0xf]
        %v2644 = vld [vmem:[%s1045 + $0x334] sm:$0xf]
        %v2645 = vld [vmem:[%s1045 + $0x338] sm:$0xf]
        %v2646 = vld [vmem:[%s1045 + $0x33c] sm:$0xf]
        %v2647 = vld [vmem:[%s1045 + $0x340] sm:$0xf]
        %v2648 = vld [vmem:[%s1045 + $0x344] sm:$0xf]
        %v2649 = vld [vmem:[%s1045 + $0x348] sm:$0xf]
        %v2650 = vld [vmem:[%s1045 + $0x34c] sm:$0xf]
        %v2651 = vld [vmem:[%s1045 + $0x350] sm:$0xf]
        %v2652 = vld [vmem:[%s1045 + $0x354] sm:$0xf]
        %v2653 = vld [vmem:[%s1045 + $0x358] sm:$0xf]
        %v2654 = vld [vmem:[%s1045 + $0x35c] sm:$0xf]
        %v2655 = vpack.c.bf16 %v2621, %v2619
        %v2656 = vpack.c.bf16 %v2622, %v2620
        %v2657 = vpack.c.bf16 %v2625, %v2623
        %v2658 = vpack.c.bf16 %v2626, %v2624
        %v2659 = vpack.c.bf16 %v2629, %v2627
        %v2660 = vpack.c.bf16 %v2630, %v2628
        %v2662 = vshrl.u32 %v2655, 16
        %v2664 = vshll.u32 %v2655, 16
        %v2666 = vrot.slane %v2664, 1
        %v2667 = vor.u32 %v2662, %v2666
        %v2669 = vshll.u32 %v2657, 16
        %v2671 = vrot.slane %v2669, 1
        %v2672 = vsel %vm1472, %v2667, %v2671
        %v2674 = vshrl.u32 %v2656, 16
        %v2676 = vshll.u32 %v2656, 16
        %v2678 = vrot.slane %v2676, 1
        %v2679 = vor.u32 %v2674, %v2678
        %v2681 = vshll.u32 %v2658, 16
        %v2683 = vrot.slane %v2681, 1
        %v2684 = vsel %vm1472, %v2679, %v2683
        %v2685 = vshrl.u32 %v2657, 16
        %v2687 = vor.u32 %v2685, %v2671
        %v2689 = vshll.u32 %v2659, 16
        %v2691 = vrot.slane %v2689, 1
        %v2692 = vsel %vm1472, %v2687, %v2691
        %v2693 = vshrl.u32 %v2658, 16
        %v2695 = vor.u32 %v2693, %v2683
        %v2697 = vshll.u32 %v2660, 16
        %v2699 = vrot.slane %v2697, 1
        %v2700 = vsel %vm1472, %v2695, %v2699
        %v2701 = vshrl.u32 %v2659, 16
        %v2703 = vor.u32 %v2701, %v2691
        %v2704 = vshrl.u32 %v2660, 16
        %v2706 = vor.u32 %v2704, %v2699
        %v2734 = vunpack.c.l.b16 %v2631
        %v2735 = vunpack.c.l.b16 %v2632
        %v2736 = vunpack.c.l.b16 %v2633
        %v2737 = vunpack.c.l.b16 %v2634
        %v2738 = vunpack.c.l.b16 %v2635
        %v2739 = vunpack.c.l.b16 %v2636
        %v2740 = vunpack.c.l.b16 %v2637
        %v2741 = vunpack.c.l.b16 %v2638
        %v2742 = vunpack.c.l.b16 %v2639
        %v2743 = vunpack.c.l.b16 %v2640
        %v2744 = vunpack.c.l.b16 %v2641
        %v2745 = vunpack.c.l.b16 %v2642
        %v2746 = vunpack.c.l.b16 %v2643
        %v2747 = vunpack.c.l.b16 %v2644
        %v2748 = vunpack.c.l.b16 %v2645
        %v2749 = vunpack.c.l.b16 %v2646
        %v2750 = vunpack.c.l.b16 %v2647
        %v2751 = vunpack.c.l.b16 %v2648
        %v2752 = vunpack.c.l.b16 %v2649
        %v2753 = vunpack.c.l.b16 %v2650
        %v2754 = vunpack.c.l.b16 %v2651
        %v2755 = vunpack.c.l.b16 %v2652
        %v2756 = vunpack.c.l.b16 %v2653
        %v2757 = vunpack.c.l.b16 %v2654
        %v2758 = vpack.c.b16 %v2735, %v2734
        %v2759 = vpack.c.b16 %v2737, %v2736
        %v2760 = vpack.c.b16 %v2739, %v2738
        %v2761 = vpack.c.b16 %v2741, %v2740
        %v2762 = vpack.c.b16 %v2743, %v2742
        %v2763 = vpack.c.b16 %v2745, %v2744
        %v2764 = vpack.c.b16 %v2747, %v2746
        %v2765 = vpack.c.b16 %v2749, %v2748
        %v2766 = vpack.c.b16 %v2751, %v2750
        %v2767 = vpack.c.b16 %v2753, %v2752
        %v2768 = vpack.c.b16 %v2755, %v2754
        %v2769 = vpack.c.b16 %v2757, %v2756
        %v2783 = vsel %vm1227, %v2684, 0
        %v2786 = vsel %vm1227, %v2700, 0
        %v2789 = vsel %vm1227, %v2706, 0
        %2791 = vmatprep.subr.bf16.mxu0 0
        %2792 = vmatpush1.bf16.msra.mxu0 %v2758
        %2793 = vmatprep.subr.bf16.mxu0 0
        %2794 = vmatpush1.bf16.msra.mxu0 %v2759
        %2795 = vmatprep.subr.bf16.mxu0 0
        %2796 = vmatpush1.bf16.msra.mxu0 %v2760
        %2797 = vmatprep.subr.bf16.mxu0 0
        %2798 = vmatpush1.bf16.msra.mxu0 %v2761
        %2799 = vmatprep.subr.bf16.mxu0 0
        %2800 = vmatpush1.bf16.msra.mxu0 %v2762
        %2801 = vmatprep.subr.bf16.mxu0 0
        %2802 = vmatpush1.bf16.msra.mxu0 %v2763
        %2803 = vmatprep.subr.bf16.mxu0 0
        %2804 = vmatpush1.bf16.msra.mxu0 %v2764
        %2805 = vmatprep.subr.bf16.mxu0 0
        %2806 = vmatpush1.bf16.msra.mxu0 %v2765
        %2807 = vmatprep.subr.bf16.mxu0 0
        %2808 = vmatpush1.bf16.msra.mxu0 %v2766
        %2809 = vmatprep.subr.bf16.mxu0 0
        %2810 = vmatpush1.bf16.msra.mxu0 %v2767
        %2811 = vmatprep.subr.bf16.mxu0 0
        %2812 = vmatpush1.bf16.msra.mxu0 %v2768
        %2813 = vmatprep.subr.bf16.mxu0 0
        %2814 = vmatpush1.bf16.msra.mxu0 %v2769
        %2815 = vmatprep.subr.bf16.mxu0 0
        %2816 = vmatpush1.bf16.msra.mxu0 0
        %2817 = vmatprep.subr.bf16.mxu0 0
        %2818 = vmatpush1.bf16.msra.mxu0 0
        %2819 = vmatprep.subr.bf16.mxu0 0
        %2820 = vmatpush1.bf16.msra.mxu0 0
        %2821 = vmatprep.subr.bf16.mxu0 0
        %2822 = vmatpush1.bf16.msra.mxu0 0
        %2823 = vmatprep.mubr.bf16.mxu0 %v2783
        %2824 = vmatmul.mubr.bf16.gmra.mrb[0].mxu0 %v2672
        %v2825 = vpop.f32.mrb[0].mxu0
        %v2826 = vadd.f32 0.0, %v2825
        %v2827 = vpop.f32.mrb[0].mxu0
        %v2828 = vpop.f32.mrb[0].mxu0
        %v2829 = vadd.f32 0.0, %v2828
        %v2830 = vpop.f32.mrb[0].mxu0
        %2831 = vmatprep.mubr.bf16.mxu0 %v2786
        %2832 = vmatmul.mubr.bf16.gmra.mrb[0].mxu0 %v2692
        %v2833 = vpop.f32.mrb[0].mxu0
        %v2834 = vadd.f32 0.0, %v2833
        %v2835 = vpop.f32.mrb[0].mxu0
        %v2836 = vpop.f32.mrb[0].mxu0
        %v2837 = vadd.f32 0.0, %v2836
        %v2838 = vpop.f32.mrb[0].mxu0
        %2839 = vmatprep.mubr.bf16.mxu0 %v2789
        %2840 = vmatmul.mubr.bf16.gmra.mrb[0].mxu0 %v2703
        %v2841 = vpop.f32.mrb[0].mxu0
        %v2842 = vadd.f32 0.0, %v2841
        %v2843 = vpop.f32.mrb[0].mxu0
        %v2844 = vpop.f32.mrb[0].mxu0
        %v2845 = vpop.f32.mrb[0].mxu0
        %2846 = vdwg.mxu0
        %v2847 = vadd.f32 %v2614, %v2826
        %v2848 = vadd.f32 %v2615, %v2829
        %v2849 = vadd.f32 %v2616, %v2834
        %v2850 = vadd.f32 %v2617, %v2837
        %v2851 = vadd.f32 %v2618, %v2842
        %2852 = vst [vmem:[%s1067] sm:$0xff] %v2847
        %2853 = vst [vmem:[%s1067 + $0x8] sm:$0xff] %v2848
        %2854 = vst [vmem:[%s1067 + $0x10] sm:$0xff] %v2849
        %2855 = vst [vmem:[%s1067 + $0x18] sm:$0xff] %v2850
        %2856 = vst [vmem:[%s1067 + $0x20] sm:$0xff] %v2851
        %s2857 = sand.u32 %s87, 1
        %s2858 = sand.u32 %s87, 1
        %s2859 = smul.addr %s2858, 40
        %s2860 = scalar_lea.vmem [#allocation3], %s2859
        // Predicated region
        $region70: #{conv2d_3x3_s2.1} parent=64 // pred_check
          %p2861 = pneg %p97
        $region71: #{conv2d_3x3_s2.1} parent=64 // pred_check_branch
          %2863 = sbr.rel (%p2861) target = $region73
        $region72: #{conv2d_3x3_s2.1} parent=64 // pred_region
          %s2864 = smul.addr %s17, 15
          %s2865 = sadd.s32 %s18, %s2864
          %s2866 = smul.addr %s2865, 8
          %s2867 = scalar_lea.vmem %s2, %s2866
          // Predicated region
          $region74: #{conv2d_3x3_s2.1} parent=72 // pred_check
            _
          $region75: #{conv2d_3x3_s2.1} parent=72 // pred_check_branch
            %2869 = sbr.rel (0) target = $region77
          $region76: #{conv2d_3x3_s2.1} parent=72 // pred_region
            // Predicated region
            $region78: #{conv2d_3x3_s2.1} parent=76 // pred_check
              _
            $region79: #{conv2d_3x3_s2.1} parent=76 // pred_check_branch
              %2871 = sbr.rel (0) target = $region81
            $region80: #{conv2d_3x3_s2.1} parent=76 // pred_region
              // Predicated region
              $region93: #{conv2d_3x3_s2.1} parent=80 // pred_check
                _
              $region94: #{conv2d_3x3_s2.1} parent=80 // pred_check_branch
                %2894 = sbr.rel (0) target = $region96
              $region95: #{conv2d_3x3_s2.1} parent=80 // pred_region
                loop: start=0, step=1, limit=1
                $region97: #{conv2d_3x3_s2.1} parent=95 // loop_pre_header
                  _
                $region98: #{conv2d_3x3_s2.1} parent=95 // loop_header
                  %s2896 = sphi 0, %s2900
                  %p2897 = scmp.ge.s32.totalorder %s2896, 1
                  %s2901 = sphi %s2860, %s2860
                  %s2902 = sphi %s2867, %s2867
                $region99: #{conv2d_3x3_s2.1} parent=95 // loop_header_branch
                  %2899 = sbr.rel (%p2897) target = $region103
                $region100: #{conv2d_3x3_s2.1} parent=95 // loop_body
                  %v2903 = vld [vmem:[%s2901] sm:$0xff]
                  %2904 = vst [vmem:[%s2902] sm:$0xff] %v2903
                  %v2905 = vld [vmem:[%s2901 + $0x8] sm:$0xff]
                  %2906 = vst [vmem:[%s2902 + $0x18] sm:$0xff] %v2905
                  %v2907 = vld [vmem:[%s2901 + $0x10] sm:$0xff]
                  %2908 = vst [vmem:[%s2902 + $0x30] sm:$0xff] %v2907
                  %v2909 = vld [vmem:[%s2901 + $0x18] sm:$0xff]
                  %2910 = vst [vmem:[%s2902 + $0x48] sm:$0xff] %v2909
                  %v2911 = vld [vmem:[%s2901 + $0x20] sm:$0xff]
                  %2912 = vst [vmem:[%s2902 + $0x60] sm:$0xff] %v2911
                $region101: #{conv2d_3x3_s2.1} parent=95 // loop_footer
                  %s2900 = sadd.s32 1, %s2896
                $region102: #{conv2d_3x3_s2.1} parent=95 // loop_footer_branch
                  %2895 = sbr.rel target = $region98
                $region103: #{conv2d_3x3_s2.1} parent=95 // loop_exit
                  _
              $region96: #{conv2d_3x3_s2.1} parent=80 // pred_fallthru
                _
              // Predicated region
              $region104: #{conv2d_3x3_s2.1} parent=80 // pred_check
                _
              $region105: #{conv2d_3x3_s2.1} parent=80 // pred_check_branch
                %2914 = sbr.rel target = $region107
              $region106: #{conv2d_3x3_s2.1} parent=80 // pred_region
                _
              $region107: #{conv2d_3x3_s2.1} parent=80 // pred_fallthru
                _
            $region81: #{conv2d_3x3_s2.1} parent=76 // pred_fallthru
              _
            // Predicated region
            $region82: #{conv2d_3x3_s2.1} parent=76 // pred_check
              _
            $region83: #{conv2d_3x3_s2.1} parent=76 // pred_check_branch
              %2873 = sbr.rel target = $region85
            $region84: #{conv2d_3x3_s2.1} parent=76 // pred_region
              loop: start=0, step=1, limit=1
              $region86: #{conv2d_3x3_s2.1} parent=84 // loop_pre_header
                _
              $region87: #{conv2d_3x3_s2.1} parent=84 // loop_header
                %s2876 = sphi 0, %s2880
                %p2877 = scmp.ge.s32.totalorder %s2876, 1
                %s2881 = sphi %s2860, %s2860
                %s2882 = sphi %s2867, %s2867
              $region88: #{conv2d_3x3_s2.1} parent=84 // loop_header_branch
                %2879 = sbr.rel (%p2877) target = $region92
              $region89: #{conv2d_3x3_s2.1} parent=84 // loop_body
                %v2883 = vld [vmem:[%s2881] sm:$0xff]
                %2884 = vst [vmem:[%s2882] sm:$0xff] %v2883
                %v2885 = vld [vmem:[%s2881 + $0x8] sm:$0xff]
                %2886 = vst [vmem:[%s2882 + $0x18] sm:$0xff] %v2885
                %v2887 = vld [vmem:[%s2881 + $0x10] sm:$0xff]
                %2888 = vst [vmem:[%s2882 + $0x30] sm:$0xff] %v2887
                %v2889 = vld [vmem:[%s2881 + $0x18] sm:$0xff]
                %2890 = vst [vmem:[%s2882 + $0x48] sm:$0xff] %v2889
                %v2891 = vld [vmem:[%s2881 + $0x20] sm:$0xff]
                %2892 = vst [vmem:[%s2882 + $0x60] sm:$0xff] %v2891
              $region90: #{conv2d_3x3_s2.1} parent=84 // loop_footer
                %s2880 = sadd.s32 1, %s2876
              $region91: #{conv2d_3x3_s2.1} parent=84 // loop_footer_branch
                %2875 = sbr.rel target = $region87
              $region92: #{conv2d_3x3_s2.1} parent=84 // loop_exit
                _
            $region85: #{conv2d_3x3_s2.1} parent=76 // pred_fallthru
              _
          $region77: #{conv2d_3x3_s2.1} parent=72 // pred_fallthru
            _
          %2915 = vnop
        $region73: #{conv2d_3x3_s2.1} parent=64 // pred_fallthru
          _
      $region65: #{conv2d_3x3_s2.1} parent=5 // pred_fallthru
        _
      %p2916 = scmp.le.s32.totalorder 2, %s8
      // Predicated region
      $region108: #{conv2d_3x3_s2.1} parent=5 // pred_check
        %p2917 = pneg %p2916
      $region109: #{conv2d_3x3_s2.1} parent=5 // pred_check_branch
        %2919 = sbr.rel (%p2917) target = $region111
      $region110: #{conv2d_3x3_s2.1} parent=5 // pred_region
        %s2920 = ssub.s32 %s8, 2
        // Predicated region
        $region112: #{conv2d_3x3_s2.1} parent=110 // pred_check
          %p2921 = pneg %p103
        $region113: #{conv2d_3x3_s2.1} parent=110 // pred_check_branch
          %2923 = sbr.rel (%p2921) target = $region115
        $region114: #{conv2d_3x3_s2.1} parent=110 // pred_region
          %s2924 = sand.u32 %s88, 1
          %s2925 = sand.u32 %s88, 1
          %s2926 = smul.addr %s2925, 40
          %s2927 = scalar_lea.vmem [#allocation3], %s2926
        $region115: #{conv2d_3x3_s2.1} parent=110 // pred_fallthru
          _
      $region111: #{conv2d_3x3_s2.1} parent=5 // pred_fallthru
        _
    $region6: #{conv2d_3x3_s2.1} parent=1 // loop_footer
      %s12 = sadd.s32 1, %s8
    $region7: #{conv2d_3x3_s2.1} parent=1 // loop_footer_branch
      %7 = sbr.rel target = $region3
    $region8: #{conv2d_3x3_s2.1} parent=1 // loop_exit
      _

</llo_original>
